<compile_context>
chip_gen: v6e
topology: v6e:2x2x1
jax: 0.10.0
libtpu: 0.0.40
codegen_flags: <defaults>
</compile_context>

<pallas_src>
import functools

import jax
import jax.numpy as jnp
from jax import lax
from jax.experimental import pallas as pl
from jax.experimental.pallas import tpu as pltpu

_EPS = 1e-5


# ---------------------------------------------------------------------------
# pass 1: squeeze 1x1 conv as a row-tiled matmul + BN partial sums
# ---------------------------------------------------------------------------
def _squeeze_kernel(x_ref, w_ref, s_ref, sum_ref, sq_ref):
    # x: (TM, Cin) bf16, w: (Cin, Csq) bf16 -> s: (TM, Csq) f32 (pre-BN)
    y = jnp.dot(x_ref[...], w_ref[...], preferred_element_type=jnp.float32)
    s_ref[...] = y
    # per-tile per-column partials (zero-padded rows contribute 0 -> unbiased)
    sum_ref[0] = jnp.sum(y, axis=0, keepdims=True)
    sq_ref[0] = jnp.sum(y * y, axis=0, keepdims=True)


# ---------------------------------------------------------------------------
# pass 2: fused squeeze-BN/ReLU prologue + both expand branches (per image)
# ---------------------------------------------------------------------------
def _expand_kernel(s_ref, scale_ref, shift_ref, w1_ref, w3_ref,
                   e_ref, sum_ref, sq_ref):
    # s:     (1, H+2, W+2, Csq) f32  raw squeeze output with zero halo
    # scale: (1, 1, Csq) f32         squeeze BN scale  (1/sqrt(var+eps))
    # shift: (1, 1, Csq) f32         squeeze BN shift  (-mean*scale)
    # w1:    (Csq, Ce1) bf16
    # w3:    (9, Csq, Ce3) bf16      tap order k = 3*dy + dx
    _, hp2, wp2, csq = s_ref.shape
    H, W = hp2 - 2, wp2 - 2
    ce3 = w3_ref.shape[2]

    s = s_ref[0]                                            # (H+2, W+2, Csq)
    # Squeeze BN + ReLU.  The halo must stay exactly zero (conv zero padding),
    # so mask the normalization to the interior.
    row = lax.broadcasted_iota(jnp.int32, (hp2, wp2, 1), 0)
    col = lax.broadcasted_iota(jnp.int32, (hp2, wp2, 1), 1)
    interior = (row >= 1) & (row <= H) & (col >= 1) & (col <= W)
    act = jnp.where(interior,
                    jnp.maximum(s * scale_ref[...] + shift_ref[...], 0.0),
                    0.0).astype(jnp.bfloat16)               # (H+2, W+2, Csq)

    # 3x3 branch: 9 shifted matmuls instead of an im2col blow-up.
    # The center tap doubles as the 1x1-branch input.
    e3 = jnp.zeros((H * W, csq * 0 + w3_ref.shape[2]), jnp.float32)
    e3 = jnp.zeros((H * W, ce3), jnp.float32)
    center = None
    for dy in range(3):
        for dx in range(3):
            win = act[dy:dy + H, dx:dx + W, :].reshape(H * W, csq)
            if dy == 1 and dx == 1:
                center = win
            e3 = e3 + jnp.dot(win, w3_ref[3 * dy + dx],
                              preferred_element_type=jnp.float32)
    e1 = jnp.dot(center, w1_ref[...], preferred_element_type=jnp.float32)

    e = jnp.concatenate([e1, e3], axis=-1)                  # (H*W, Ce1+Ce3)
    e_ref[0] = e
    sum_ref[0] = jnp.sum(e, axis=0, keepdims=True)
    sq_ref[0] = jnp.sum(e * e, axis=0, keepdims=True)


# ---------------------------------------------------------------------------
# pass 3: expand BN + ReLU (stats are global, hence the separate pass)
# ---------------------------------------------------------------------------
def _finalize_kernel(e_ref, scale_ref, shift_ref, o_ref):
    # e: (1, H*W, Ctot) f32, scale/shift: (1, Ctot) f32
    o_ref[0] = jnp.maximum(e_ref[0] * scale_ref[...] + shift_ref[...], 0.0)


def _finalize_stats(psum, psq, count):
    """Partial (sum, sumsq) -> BN (scale, shift) with gamma=1, beta=0."""
    total = jnp.sum(psum, axis=(0, 1))
    total_sq = jnp.sum(psq, axis=(0, 1))
    mean = total / count
    var = jnp.maximum(total_sq / count - mean * mean, 0.0)
    inv = lax.rsqrt(var + _EPS)
    return inv, -mean * inv


def init_fire_params(key, input_dim, squeeze_dim, expand1x1_dim, expand3x3_dim):
    """Deterministic init matching weight_init: W ~ N(0, 0.01), bias = 0.2.

    The biases are kept for fidelity with the PyTorch module, but they are
    mathematically cancelled by the training-mode BN mean subtraction and are
    therefore not used in the forward pass.
    """
    k1, k2, k3 = jax.random.split(key, 3)
    return {
        # PyTorch conv layout: (Cout, Cin, KH, KW)
        "w_sq": 0.01 * jax.random.normal(k1, (squeeze_dim, input_dim, 1, 1),
                                         jnp.float32),
        "b_sq": jnp.full((squeeze_dim,), 0.2, jnp.float32),
        "w_e1": 0.01 * jax.random.normal(k2, (expand1x1_dim, squeeze_dim, 1, 1),
                                         jnp.float32),
        "b_e1": jnp.full((expand1x1_dim,), 0.2, jnp.float32),
        "w_e3": 0.01 * jax.random.normal(k3, (expand3x3_dim, squeeze_dim, 3, 3),
                                         jnp.float32),
        "b_e3": jnp.full((expand3x3_dim,), 0.2, jnp.float32),
    }


@functools.partial(jax.jit, static_argnames=("tm",))
def fire_module_forward(x_nchw, params, *, tm=256):
    """x_nchw: (N, Cin, H, W) f32 -> (N, Ce1+Ce3, H, W) f32."""
    N, Cin, H, W = x_nchw.shape
    M = N * H * W
    Csq = params["w_sq"].shape[0]
    Ce1 = params["w_e1"].shape[0]
    Ce3 = params["w_e3"].shape[0]
    Ctot = Ce1 + Ce3

    # bf16 MXU operands; conv biases dropped (cancelled by train-mode BN).
    w_sq = params["w_sq"][:, :, 0, 0].T.astype(jnp.bfloat16)          # (Cin,Csq)
    w_e1 = params["w_e1"][:, :, 0, 0].T.astype(jnp.bfloat16)          # (Csq,Ce1)
    w_e3 = jnp.transpose(params["w_e3"], (2, 3, 1, 0)).reshape(
        9, Csq, Ce3).astype(jnp.bfloat16)                             # (9,Csq,Ce3)

    # NCHW -> (M, Cin) rows in NHWC order.
    # TODO(synk): fold the boundary NCHW<->NHWC transposes into the adjacent
    # kernels (in-kernel 2D transpose) once validated on the target Mosaic;
    # kept in XLA here for robustness.
    x_mat = jnp.transpose(x_nchw, (0, 2, 3, 1)).reshape(M, Cin)
    x_mat = x_mat.astype(jnp.bfloat16)

    # ---- pass 1: squeeze matmul tiled over rows, double-buffered by Pallas ----
    mt = pl.cdiv(M, tm)
    m_pad = mt * tm
    if m_pad != M:  # zero rows contribute 0 to the partial sums -> stats exact
        x_mat = jnp.pad(x_mat, ((0, m_pad - M), (0, 0)))

    s_raw, s_psum, s_psq = pl.pallas_call(
        _squeeze_kernel,
        out_shape=(jax.ShapeDtypeStruct((m_pad, Csq), jnp.float32),
                   jax.ShapeDtypeStruct((mt, 1, Csq), jnp.float32),
                   jax.ShapeDtypeStruct((mt, 1, Csq), jnp.float32)),
        grid=(mt,),
        in_specs=[pl.BlockSpec((tm, Cin), lambda i: (i, 0)),
                  pl.BlockSpec((Cin, Csq), lambda i: (0, 0))],
        out_specs=(pl.BlockSpec((tm, Csq), lambda i: (i, 0)),
                   pl.BlockSpec((1, 1, Csq), lambda i: (i, 0, 0)),
                   pl.BlockSpec((1, 1, Csq), lambda i: (i, 0, 0))),
        compiler_params=pltpu.CompilerParams(
            dimension_semantics=("parallel",)),
    )(x_mat, w_sq)

    sq_scale, sq_shift = _finalize_stats(s_psum, s_psq, float(M))

    # ---- pass 2: fused squeeze-BN/ReLU + both expand branches ----
    s_img = s_raw[:M].reshape(N, H, W, Csq)
    s_pad = jnp.pad(s_img, ((0, 0), (1, 1), (1, 1), (0, 0)))

    e_raw, e_psum, e_psq = pl.pallas_call(
        _expand_kernel,
        out_shape=(jax.ShapeDtypeStruct((N, H * W, Ctot), jnp.float32),
                   jax.ShapeDtypeStruct((N, 1, Ctot), jnp.float32),
                   jax.ShapeDtypeStruct((N, 1, Ctot), jnp.float32)),
        grid=(N,),
        in_specs=[pl.BlockSpec((1, H + 2, W + 2, Csq), lambda b: (b, 0, 0, 0)),
                  pl.BlockSpec((1, 1, Csq), lambda b: (0, 0, 0)),
                  pl.BlockSpec((1, 1, Csq), lambda b: (0, 0, 0)),
                  pl.BlockSpec((Csq, Ce1), lambda b: (0, 0)),
                  pl.BlockSpec((9, Csq, Ce3), lambda b: (0, 0, 0))],
        out_specs=(pl.BlockSpec((1, H * W, Ctot), lambda b: (b, 0, 0)),
                   pl.BlockSpec((1, 1, Ctot), lambda b: (b, 0, 0)),
                   pl.BlockSpec((1, 1, Ctot), lambda b: (b, 0, 0))),
        compiler_params=pltpu.CompilerParams(
            dimension_semantics=("parallel",)),
    )(s_pad, sq_scale.reshape(1, 1, Csq), sq_shift.reshape(1, 1, Csq),
      w_e1, w_e3)

    ex_scale, ex_shift = _finalize_stats(e_psum, e_psq, float(M))

    # ---- pass 3: expand BN + ReLU over the lane-dense combined output ----
    out_rows = pl.pallas_call(
        _finalize_kernel,
        out_shape=jax.ShapeDtypeStruct((N, H * W, Ctot), jnp.float32),
        grid=(N,),
        in_specs=[pl.BlockSpec((1, H * W, Ctot), lambda b: (b, 0, 0)),
                  pl.BlockSpec((1, Ctot), lambda b: (0, 0)),
                  pl.BlockSpec((1, Ctot), lambda b: (0, 0))],
        out_specs=pl.BlockSpec((1, H * W, Ctot), lambda b: (b, 0, 0)),
        compiler_params=pltpu.CompilerParams(
            dimension_semantics=("parallel",)),
    )(e_raw, ex_scale.reshape(1, Ctot), ex_shift.reshape(1, Ctot))

    # back to NCHW at the module boundary (channel order: e1 then e3)
    out_nhwc = out_rows.reshape(N, H, W, Ctot)
    return jnp.transpose(out_nhwc, (0, 3, 1, 2))


if __name__ == "__main__":
    # Note: the PyTorch module builds the 3x3-branch BatchNorm with
    # expand1x1_dim features, so its forward only works when
    # expand1x1_dim == expand3x3_dim; we follow that constraint here.
    N, Cin, H, W = 2, 4, 16, 16
    squeeze_dim, expand1x1_dim, expand3x3_dim = 8, 16, 16

    key = jax.random.PRNGKey(0)
    k_x, k_p = jax.random.split(key)
    x = jax.random.normal(k_x, (N, Cin, H, W), jnp.float32)
    params = init_fire_params(k_p, Cin, squeeze_dim, expand1x1_dim,
                              expand3x3_dim)

    out = fire_module_forward(x, params)
    jax.block_until_ready(out)
    assert out.shape == (N, expand1x1_dim + expand3x3_dim, H, W)
    print("KERNEL_OK")
</pallas_src>

<mosaic_0001>
module attributes {stable_mosaic.version = 11 : i64} {
  func.func @_squeeze_kernel(%arg0: i32, %arg1: memref<256x4xbf16, #tpu.memory_space<vmem>>, %arg2: memref<4x8xbf16, #tpu.memory_space<vmem>>, %arg3: memref<256x8xf32, #tpu.memory_space<vmem>>, %arg4: memref<1x1x8xf32, #tpu.memory_space<vmem>>, %arg5: memref<1x1x8xf32, #tpu.memory_space<vmem>>) attributes {dimension_semantics = [#tpu.dimension_semantics<parallel>], iteration_bounds = array<i64: 2>, scalar_prefetch = 0 : i64, scratch_operands = 0 : i64, tpu.core_type = #tpu.core_type<tc>, window_params = [{transform_indices = @transform_0, window_bounds = array<i64: 256, 4>}, {pipeline_mode = #tpu.pipeline_mode<synchronous>, transform_indices = @transform_1, window_bounds = array<i64: 4, 8>}, {transform_indices = @transform_2, window_bounds = array<i64: 256, 8>}, {transform_indices = @transform_3, window_bounds = array<i64: 1, 1, 8>}, {transform_indices = @transform_4, window_bounds = array<i64: 1, 1, 8>}]} {
    %c0 = arith.constant 0 : index
    %c0_0 = arith.constant 0 : index
    %0 = vector.load %arg1[%c0, %c0_0] : memref<256x4xbf16, #tpu.memory_space<vmem>>, vector<256x4xbf16>
    %c0_1 = arith.constant 0 : index
    %c0_2 = arith.constant 0 : index
    %1 = vector.load %arg2[%c0_1, %c0_2] : memref<4x8xbf16, #tpu.memory_space<vmem>>, vector<4x8xbf16>
    %cst = arith.constant dense<0.000000e+00> : vector<256x8xf32>
    %2 = tpu.matmul %0, %1, %cst {dimension_numbers = #tpu.dot_dimension_numbers<[1], [0], [0], [1], [0, 0, 1, 1], [], []>} : vector<256x4xbf16>, vector<4x8xbf16>, vector<256x8xf32> -> vector<256x8xf32>
    %c0_3 = arith.constant 0 : index
    %c0_4 = arith.constant 0 : index
    %3 = vector.load %arg3[%c0_3, %c0_4] : memref<256x8xf32, #tpu.memory_space<vmem>>, vector<256x8xf32>
    tpu.vector_store %arg3[%c0_3, %c0_4], %2 {strides = array<i32>} : memref<256x8xf32, #tpu.memory_space<vmem>>, vector<256x8xf32>,
    %cst_5 = arith.constant dense<0.000000e+00> : vector<8xf32>
    %4 = vector.multi_reduction <add>, %2, %cst_5 [0] : vector<256x8xf32> to vector<8xf32>
    %5 = vector.shape_cast %4 : vector<8xf32> to vector<1x8xf32>
    %c0_6 = arith.constant 0 : index
    %c0_7 = arith.constant 0 : index
    %c0_8 = arith.constant 0 : index
    %6 = vector.load %arg4[%c0_6, %c0_7, %c0_8] : memref<1x1x8xf32, #tpu.memory_space<vmem>>, vector<1x1x8xf32>
    %7 = vector.shape_cast %6 : vector<1x1x8xf32> to vector<1x8xf32>
    %8 = vector.shape_cast %5 : vector<1x8xf32> to vector<1x1x8xf32>
    tpu.vector_store %arg4[%c0_6, %c0_7, %c0_8], %8 {strides = array<i32>} : memref<1x1x8xf32, #tpu.memory_space<vmem>>, vector<1x1x8xf32>,
    %9 = arith.mulf %2, %2 : vector<256x8xf32>
    %cst_9 = arith.constant dense<0.000000e+00> : vector<8xf32>
    %10 = vector.multi_reduction <add>, %9, %cst_9 [0] : vector<256x8xf32> to vector<8xf32>
    %11 = vector.shape_cast %10 : vector<8xf32> to vector<1x8xf32>
    %c0_10 = arith.constant 0 : index
    %c0_11 = arith.constant 0 : index
    %c0_12 = arith.constant 0 : index
    %12 = vector.load %arg5[%c0_10, %c0_11, %c0_12] : memref<1x1x8xf32, #tpu.memory_space<vmem>>, vector<1x1x8xf32>
    %13 = vector.shape_cast %12 : vector<1x1x8xf32> to vector<1x8xf32>
    %14 = vector.shape_cast %11 : vector<1x8xf32> to vector<1x1x8xf32>
    tpu.vector_store %arg5[%c0_10, %c0_11, %c0_12], %14 {strides = array<i32>} : memref<1x1x8xf32, #tpu.memory_space<vmem>>, vector<1x1x8xf32>,
    return
  }
  func.func @transform_0(%arg0: i32) -> (i32, i32) {
    %c0_i32 = arith.constant 0 : i32
    %c0_i32_0 = arith.constant 0 : i32
    return %arg0, %c0_i32 : i32, i32
  }
  func.func @transform_1(%arg0: i32) -> (i32, i32) {
    %c0_i32 = arith.constant 0 : i32
    %c0_i32_0 = arith.constant 0 : i32
    %c0_i32_1 = arith.constant 0 : i32
    return %c0_i32, %c0_i32_0 : i32, i32
  }
  func.func @transform_2(%arg0: i32) -> (i32, i32) {
    %c0_i32 = arith.constant 0 : i32
    %c0_i32_0 = arith.constant 0 : i32
    return %arg0, %c0_i32 : i32, i32
  }
  func.func @transform_3(%arg0: i32) -> (i32, i32, i32) {
    %c0_i32 = arith.constant 0 : i32
    %c0_i32_0 = arith.constant 0 : i32
    %c0_i32_1 = arith.constant 0 : i32
    return %arg0, %c0_i32, %c0_i32_0 : i32, i32, i32
  }
  func.func @transform_4(%arg0: i32) -> (i32, i32, i32) {
    %c0_i32 = arith.constant 0 : i32
    %c0_i32_0 = arith.constant 0 : i32
    %c0_i32_1 = arith.constant 0 : i32
    return %arg0, %c0_i32, %c0_i32_0 : i32, i32, i32
  }
}

module attributes {stable_mosaic.version = 11 : i64} {
  func.func @_expand_kernel(%arg0: i32, %arg1: memref<1x18x18x8xf32, #tpu.memory_space<vmem>>, %arg2: memref<1x1x8xf32, #tpu.memory_space<vmem>>, %arg3: memref<1x1x8xf32, #tpu.memory_space<vmem>>, %arg4: memref<8x16xbf16, #tpu.memory_space<vmem>>, %arg5: memref<9x8x16xbf16, #tpu.memory_space<vmem>>, %arg6: memref<1x256x32xf32, #tpu.memory_space<vmem>>, %arg7: memref<1x1x32xf32, #tpu.memory_space<vmem>>, %arg8: memref<1x1x32xf32, #tpu.memory_space<vmem>>) attributes {dimension_semantics = [#tpu.dimension_semantics<parallel>], iteration_bounds = array<i64: 2>, scalar_prefetch = 0 : i64, scratch_operands = 0 : i64, tpu.core_type = #tpu.core_type<tc>, window_params = [{transform_indices = @transform_0, window_bounds = array<i64: 1, 18, 18, 8>}, {pipeline_mode = #tpu.pipeline_mode<synchronous>, transform_indices = @transform_1, window_bounds = array<i64: 1, 1, 8>}, {pipeline_mode = #tpu.pipeline_mode<synchronous>, transform_indices = @transform_2, window_bounds = array<i64: 1, 1, 8>}, {pipeline_mode = #tpu.pipeline_mode<synchronous>, transform_indices = @transform_3, window_bounds = array<i64: 8, 16>}, {pipeline_mode = #tpu.pipeline_mode<synchronous>, transform_indices = @transform_4, window_bounds = array<i64: 9, 8, 16>}, {transform_indices = @transform_5, window_bounds = array<i64: 1, 256, 32>}, {transform_indices = @transform_6, window_bounds = array<i64: 1, 1, 32>}, {transform_indices = @transform_7, window_bounds = array<i64: 1, 1, 32>}]} {
    %c0 = arith.constant 0 : index
    %c0_0 = arith.constant 0 : index
    %c0_1 = arith.constant 0 : index
    %c0_2 = arith.constant 0 : index
    %0 = vector.load %arg1[%c0, %c0_0, %c0_1, %c0_2] : memref<1x18x18x8xf32, #tpu.memory_space<vmem>>, vector<1x18x18x8xf32>
    %1 = vector.shape_cast %0 : vector<1x18x18x8xf32> to vector<18x18x8xf32>
    %2 = tpu.iota {dimensions = array<i32: 0>} : vector<18x18x1xi32>
    %3 = tpu.iota {dimensions = array<i32: 1>} : vector<18x18x1xi32>
    %c1_i32 = arith.constant 1 : i32
    %4 = vector.broadcast %c1_i32 : i32 to vector<18x18x1xi32>
    %5 = arith.cmpi sge, %2, %4 : vector<18x18x1xi32>
    %c16_i32 = arith.constant 16 : i32
    %6 = vector.broadcast %c16_i32 : i32 to vector<18x18x1xi32>
    %7 = arith.cmpi sle, %2, %6 : vector<18x18x1xi32>
    %8 = arith.andi %5, %7 : vector<18x18x1xi1>
    %c1_i32_3 = arith.constant 1 : i32
    %9 = vector.broadcast %c1_i32_3 : i32 to vector<18x18x1xi32>
    %10 = arith.cmpi sge, %3, %9 : vector<18x18x1xi32>
    %11 = arith.andi %8, %10 : vector<18x18x1xi1>
    %c16_i32_4 = arith.constant 16 : i32
    %12 = vector.broadcast %c16_i32_4 : i32 to vector<18x18x1xi32>
    %13 = arith.cmpi sle, %3, %12 : vector<18x18x1xi32>
    %14 = arith.andi %11, %13 : vector<18x18x1xi1>
    %c0_5 = arith.constant 0 : index
    %c0_6 = arith.constant 0 : index
    %c0_7 = arith.constant 0 : index
    %15 = vector.load %arg2[%c0_5, %c0_6, %c0_7] : memref<1x1x8xf32, #tpu.memory_space<vmem>>, vector<1x1x8xf32>
    %16 = vector.broadcast %15 : vector<1x1x8xf32> to vector<18x18x8xf32>
    %17 = arith.mulf %1, %16 : vector<18x18x8xf32>
    %c0_8 = arith.constant 0 : index
    %c0_9 = arith.constant 0 : index
    %c0_10 = arith.constant 0 : index
    %18 = vector.load %arg3[%c0_8, %c0_9, %c0_10] : memref<1x1x8xf32, #tpu.memory_space<vmem>>, vector<1x1x8xf32>
    %19 = vector.broadcast %18 : vector<1x1x8xf32> to vector<18x18x8xf32>
    %20 = arith.addf %17, %19 : vector<18x18x8xf32>
    %cst = arith.constant 0.000000e+00 : f32
    %21 = vector.broadcast %cst : f32 to vector<18x18x8xf32>
    %22 = arith.maximumf %20, %21 : vector<18x18x8xf32>
    %cst_11 = arith.constant 0.000000e+00 : f32
    %23 = vector.shape_cast %14 : vector<18x18x1xi1> to vector<18x18x1xi1>
    %24 = vector.broadcast %23 : vector<18x18x1xi1> to vector<18x18x8xi1>
    %25 = vector.broadcast %cst_11 : f32 to vector<18x18x8xf32>
    %26 = arith.select %24, %22, %25 : vector<18x18x8xi1>, vector<18x18x8xf32>
    %27 = arith.truncf %26 : vector<18x18x8xf32> to vector<18x18x8xbf16>
    %cst_12 = arith.constant 0.000000e+00 : f32
    %28 = vector.broadcast %cst_12 : f32 to vector<256x16xf32>
    %29 = vector.extract_strided_slice %27 {offsets = [0, 0, 0], sizes = [16, 16, 8], strides = [1, 1, 1]} : vector<18x18x8xbf16> to vector<16x16x8xbf16>
    %30 = vector.shape_cast %29 : vector<16x16x8xbf16> to vector<256x8xbf16>
    %c0_13 = arith.constant 0 : index
    %c0_14 = arith.constant 0 : index
    %c0_15 = arith.constant 0 : index
    %31 = vector.load %arg5[%c0_13, %c0_14, %c0_15] : memref<9x8x16xbf16, #tpu.memory_space<vmem>>, vector<1x8x16xbf16>
    %32 = vector.shape_cast %31 : vector<1x8x16xbf16> to vector<8x16xbf16>
    %cst_16 = arith.constant dense<0.000000e+00> : vector<256x16xf32>
    %33 = tpu.matmul %30, %32, %cst_16 {dimension_numbers = #tpu.dot_dimension_numbers<[1], [0], [0], [1], [0, 0, 1, 1], [], []>} : vector<256x8xbf16>, vector<8x16xbf16>, vector<256x16xf32> -> vector<256x16xf32>
    %34 = arith.addf %28, %33 : vector<256x16xf32>
    %35 = vector.extract_strided_slice %27 {offsets = [0, 1, 0], sizes = [16, 16, 8], strides = [1, 1, 1]} : vector<18x18x8xbf16> to vector<16x16x8xbf16>
    %36 = vector.shape_cast %35 : vector<16x16x8xbf16> to vector<256x8xbf16>
    %c1 = arith.constant 1 : index
    %c0_17 = arith.constant 0 : index
    %c0_18 = arith.constant 0 : index
    %37 = vector.load %arg5[%c1, %c0_17, %c0_18] : memref<9x8x16xbf16, #tpu.memory_space<vmem>>, vector<1x8x16xbf16>
    %38 = vector.shape_cast %37 : vector<1x8x16xbf16> to vector<8x16xbf16>
    %cst_19 = arith.constant dense<0.000000e+00> : vector<256x16xf32>
    %39 = tpu.matmul %36, %38, %cst_19 {dimension_numbers = #tpu.dot_dimension_numbers<[1], [0], [0], [1], [0, 0, 1, 1], [], []>} : vector<256x8xbf16>, vector<8x16xbf16>, vector<256x16xf32> -> vector<256x16xf32>
    %40 = arith.addf %34, %39 : vector<256x16xf32>
    %41 = vector.extract_strided_slice %27 {offsets = [0, 2, 0], sizes = [16, 16, 8], strides = [1, 1, 1]} : vector<18x18x8xbf16> to vector<16x16x8xbf16>
    %42 = vector.shape_cast %41 : vector<16x16x8xbf16> to vector<256x8xbf16>
    %c2 = arith.constant 2 : index
    %c0_20 = arith.constant 0 : index
    %c0_21 = arith.constant 0 : index
    %43 = vector.load %arg5[%c2, %c0_20, %c0_21] : memref<9x8x16xbf16, #tpu.memory_space<vmem>>, vector<1x8x16xbf16>
    %44 = vector.shape_cast %43 : vector<1x8x16xbf16> to vector<8x16xbf16>
    %cst_22 = arith.constant dense<0.000000e+00> : vector<256x16xf32>
    %45 = tpu.matmul %42, %44, %cst_22 {dimension_numbers = #tpu.dot_dimension_numbers<[1], [0], [0], [1], [0, 0, 1, 1], [], []>} : vector<256x8xbf16>, vector<8x16xbf16>, vector<256x16xf32> -> vector<256x16xf32>
    %46 = arith.addf %40, %45 : vector<256x16xf32>
    %47 = vector.extract_strided_slice %27 {offsets = [1, 0, 0], sizes = [16, 16, 8], strides = [1, 1, 1]} : vector<18x18x8xbf16> to vector<16x16x8xbf16>
    %48 = vector.shape_cast %47 : vector<16x16x8xbf16> to vector<256x8xbf16>
    %c3 = arith.constant 3 : index
    %c0_23 = arith.constant 0 : index
    %c0_24 = arith.constant 0 : index
    %49 = vector.load %arg5[%c3, %c0_23, %c0_24] : memref<9x8x16xbf16, #tpu.memory_space<vmem>>, vector<1x8x16xbf16>
    %50 = vector.shape_cast %49 : vector<1x8x16xbf16> to vector<8x16xbf16>
    %cst_25 = arith.constant dense<0.000000e+00> : vector<256x16xf32>
    %51 = tpu.matmul %48, %50, %cst_25 {dimension_numbers = #tpu.dot_dimension_numbers<[1], [0], [0], [1], [0, 0, 1, 1], [], []>} : vector<256x8xbf16>, vector<8x16xbf16>, vector<256x16xf32> -> vector<256x16xf32>
    %52 = arith.addf %46, %51 : vector<256x16xf32>
    %53 = vector.extract_strided_slice %27 {offsets = [1, 1, 0], sizes = [16, 16, 8], strides = [1, 1, 1]} : vector<18x18x8xbf16> to vector<16x16x8xbf16>
    %54 = vector.shape_cast %53 : vector<16x16x8xbf16> to vector<256x8xbf16>
    %c4 = arith.constant 4 : index
    %c0_26 = arith.constant 0 : index
    %c0_27 = arith.constant 0 : index
    %55 = vector.load %arg5[%c4, %c0_26, %c0_27] : memref<9x8x16xbf16, #tpu.memory_space<vmem>>, vector<1x8x16xbf16>
    %56 = vector.shape_cast %55 : vector<1x8x16xbf16> to vector<8x16xbf16>
    %cst_28 = arith.constant dense<0.000000e+00> : vector<256x16xf32>
    %57 = tpu.matmul %54, %56, %cst_28 {dimension_numbers = #tpu.dot_dimension_numbers<[1], [0], [0], [1], [0, 0, 1, 1], [], []>} : vector<256x8xbf16>, vector<8x16xbf16>, vector<256x16xf32> -> vector<256x16xf32>
    %58 = arith.addf %52, %57 : vector<256x16xf32>
    %59 = vector.extract_strided_slice %27 {offsets = [1, 2, 0], sizes = [16, 16, 8], strides = [1, 1, 1]} : vector<18x18x8xbf16> to vector<16x16x8xbf16>
    %60 = vector.shape_cast %59 : vector<16x16x8xbf16> to vector<256x8xbf16>
    %c5 = arith.constant 5 : index
    %c0_29 = arith.constant 0 : index
    %c0_30 = arith.constant 0 : index
    %61 = vector.load %arg5[%c5, %c0_29, %c0_30] : memref<9x8x16xbf16, #tpu.memory_space<vmem>>, vector<1x8x16xbf16>
    %62 = vector.shape_cast %61 : vector<1x8x16xbf16> to vector<8x16xbf16>
    %cst_31 = arith.constant dense<0.000000e+00> : vector<256x16xf32>
    %63 = tpu.matmul %60, %62, %cst_31 {dimension_numbers = #tpu.dot_dimension_numbers<[1], [0], [0], [1], [0, 0, 1, 1], [], []>} : vector<256x8xbf16>, vector<8x16xbf16>, vector<256x16xf32> -> vector<256x16xf32>
    %64 = arith.addf %58, %63 : vector<256x16xf32>
    %65 = vector.extract_strided_slice %27 {offsets = [2, 0, 0], sizes = [16, 16, 8], strides = [1, 1, 1]} : vector<18x18x8xbf16> to vector<16x16x8xbf16>
    %66 = vector.shape_cast %65 : vector<16x16x8xbf16> to vector<256x8xbf16>
    %c6 = arith.constant 6 : index
    %c0_32 = arith.constant 0 : index
    %c0_33 = arith.constant 0 : index
    %67 = vector.load %arg5[%c6, %c0_32, %c0_33] : memref<9x8x16xbf16, #tpu.memory_space<vmem>>, vector<1x8x16xbf16>
    %68 = vector.shape_cast %67 : vector<1x8x16xbf16> to vector<8x16xbf16>
    %cst_34 = arith.constant dense<0.000000e+00> : vector<256x16xf32>
    %69 = tpu.matmul %66, %68, %cst_34 {dimension_numbers = #tpu.dot_dimension_numbers<[1], [0], [0], [1], [0, 0, 1, 1], [], []>} : vector<256x8xbf16>, vector<8x16xbf16>, vector<256x16xf32> -> vector<256x16xf32>
    %70 = arith.addf %64, %69 : vector<256x16xf32>
    %71 = vector.extract_strided_slice %27 {offsets = [2, 1, 0], sizes = [16, 16, 8], strides = [1, 1, 1]} : vector<18x18x8xbf16> to vector<16x16x8xbf16>
    %72 = vector.shape_cast %71 : vector<16x16x8xbf16> to vector<256x8xbf16>
    %c7 = arith.constant 7 : index
    %c0_35 = arith.constant 0 : index
    %c0_36 = arith.constant 0 : index
    %73 = vector.load %arg5[%c7, %c0_35, %c0_36] : memref<9x8x16xbf16, #tpu.memory_space<vmem>>, vector<1x8x16xbf16>
    %74 = vector.shape_cast %73 : vector<1x8x16xbf16> to vector<8x16xbf16>
    %cst_37 = arith.constant dense<0.000000e+00> : vector<256x16xf32>
    %75 = tpu.matmul %72, %74, %cst_37 {dimension_numbers = #tpu.dot_dimension_numbers<[1], [0], [0], [1], [0, 0, 1, 1], [], []>} : vector<256x8xbf16>, vector<8x16xbf16>, vector<256x16xf32> -> vector<256x16xf32>
    %76 = arith.addf %70, %75 : vector<256x16xf32>
    %77 = vector.extract_strided_slice %27 {offsets = [2, 2, 0], sizes = [16, 16, 8], strides = [1, 1, 1]} : vector<18x18x8xbf16> to vector<16x16x8xbf16>
    %78 = vector.shape_cast %77 : vector<16x16x8xbf16> to vector<256x8xbf16>
    %c8 = arith.constant 8 : index
    %c0_38 = arith.constant 0 : index
    %c0_39 = arith.constant 0 : index
    %79 = vector.load %arg5[%c8, %c0_38, %c0_39] : memref<9x8x16xbf16, #tpu.memory_space<vmem>>, vector<1x8x16xbf16>
    %80 = vector.shape_cast %79 : vector<1x8x16xbf16> to vector<8x16xbf16>
    %cst_40 = arith.constant dense<0.000000e+00> : vector<256x16xf32>
    %81 = tpu.matmul %78, %80, %cst_40 {dimension_numbers = #tpu.dot_dimension_numbers<[1], [0], [0], [1], [0, 0, 1, 1], [], []>} : vector<256x8xbf16>, vector<8x16xbf16>, vector<256x16xf32> -> vector<256x16xf32>
    %82 = arith.addf %76, %81 : vector<256x16xf32>
    %c0_41 = arith.constant 0 : index
    %c0_42 = arith.constant 0 : index
    %83 = vector.load %arg4[%c0_41, %c0_42] : memref<8x16xbf16, #tpu.memory_space<vmem>>, vector<8x16xbf16>
    %cst_43 = arith.constant dense<0.000000e+00> : vector<256x16xf32>
    %84 = tpu.matmul %54, %83, %cst_43 {dimension_numbers = #tpu.dot_dimension_numbers<[1], [0], [0], [1], [0, 0, 1, 1], [], []>} : vector<256x8xbf16>, vector<8x16xbf16>, vector<256x16xf32> -> vector<256x16xf32>
    %85 = tpu.concatenate %84, %82 in 1 : vector<256x16xf32>, vector<256x16xf32> -> vector<256x32xf32>
    %c0_44 = arith.constant 0 : index
    %c0_45 = arith.constant 0 : index
    %c0_46 = arith.constant 0 : index
    %86 = vector.load %arg6[%c0_44, %c0_45, %c0_46] : memref<1x256x32xf32, #tpu.memory_space<vmem>>, vector<1x256x32xf32>
    %87 = vector.shape_cast %86 : vector<1x256x32xf32> to vector<256x32xf32>
    %88 = vector.shape_cast %85 : vector<256x32xf32> to vector<1x256x32xf32>
    tpu.vector_store %arg6[%c0_44, %c0_45, %c0_46], %88 {strides = array<i32>} : memref<1x256x32xf32, #tpu.memory_space<vmem>>, vector<1x256x32xf32>,
    %cst_47 = arith.constant dense<0.000000e+00> : vector<32xf32>
    %89 = vector.multi_reduction <add>, %85, %cst_47 [0] : vector<256x32xf32> to vector<32xf32>
    %90 = vector.shape_cast %89 : vector<32xf32> to vector<1x32xf32>
    %c0_48 = arith.constant 0 : index
    %c0_49 = arith.constant 0 : index
    %c0_50 = arith.constant 0 : index
    %91 = vector.load %arg7[%c0_48, %c0_49, %c0_50] : memref<1x1x32xf32, #tpu.memory_space<vmem>>, vector<1x1x32xf32>
    %92 = vector.shape_cast %91 : vector<1x1x32xf32> to vector<1x32xf32>
    %93 = vector.shape_cast %90 : vector<1x32xf32> to vector<1x1x32xf32>
    tpu.vector_store %arg7[%c0_48, %c0_49, %c0_50], %93 {strides = array<i32>} : memref<1x1x32xf32, #tpu.memory_space<vmem>>, vector<1x1x32xf32>,
    %94 = arith.mulf %85, %85 : vector<256x32xf32>
    %cst_51 = arith.constant dense<0.000000e+00> : vector<32xf32>
    %95 = vector.multi_reduction <add>, %94, %cst_51 [0] : vector<256x32xf32> to vector<32xf32>
    %96 = vector.shape_cast %95 : vector<32xf32> to vector<1x32xf32>
    %c0_52 = arith.constant 0 : index
    %c0_53 = arith.constant 0 : index
    %c0_54 = arith.constant 0 : index
    %97 = vector.load %arg8[%c0_52, %c0_53, %c0_54] : memref<1x1x32xf32, #tpu.memory_space<vmem>>, vector<1x1x32xf32>
    %98 = vector.shape_cast %97 : vector<1x1x32xf32> to vector<1x32xf32>
    %99 = vector.shape_cast %96 : vector<1x32xf32> to vector<1x1x32xf32>
    tpu.vector_store %arg8[%c0_52, %c0_53, %c0_54], %99 {strides = array<i32>} : memref<1x1x32xf32, #tpu.memory_space<vmem>>, vector<1x1x32xf32>,
    return
  }
  func.func @transform_0(%arg0: i32) -> (i32, i32, i32, i32) {
    %c0_i32 = arith.constant 0 : i32
    %c0_i32_0 = arith.constant 0 : i32
    %c0_i32_1 = arith.constant 0 : i32
    %c0_i32_2 = arith.constant 0 : i32
    return %arg0, %c0_i32, %c0_i32_0, %c0_i32_1 : i32, i32, i32, i32
  }
  func.func @transform_1(%arg0: i32) -> (i32, i32, i32) {
    %c0_i32 = arith.constant 0 : i32
    %c0_i32_0 = arith.constant 0 : i32
    %c0_i32_1 = arith.constant 0 : i32
    %c0_i32_2 = arith.constant 0 : i32
    return %c0_i32, %c0_i32_0, %c0_i32_1 : i32, i32, i32
  }
  func.func @transform_2(%arg0: i32) -> (i32, i32, i32) {
    %c0_i32 = arith.constant 0 : i32
    %c0_i32_0 = arith.constant 0 : i32
    %c0_i32_1 = arith.constant 0 : i32
    %c0_i32_2 = arith.constant 0 : i32
    return %c0_i32, %c0_i32_0, %c0_i32_1 : i32, i32, i32
  }
  func.func @transform_3(%arg0: i32) -> (i32, i32) {
    %c0_i32 = arith.constant 0 : i32
    %c0_i32_0 = arith.constant 0 : i32
    %c0_i32_1 = arith.constant 0 : i32
    return %c0_i32, %c0_i32_0 : i32, i32
  }
  func.func @transform_4(%arg0: i32) -> (i32, i32, i32) {
    %c0_i32 = arith.constant 0 : i32
    %c0_i32_0 = arith.constant 0 : i32
    %c0_i32_1 = arith.constant 0 : i32
    %c0_i32_2 = arith.constant 0 : i32
    return %c0_i32, %c0_i32_0, %c0_i32_1 : i32, i32, i32
  }
  func.func @transform_5(%arg0: i32) -> (i32, i32, i32) {
    %c0_i32 = arith.constant 0 : i32
    %c0_i32_0 = arith.constant 0 : i32
    %c0_i32_1 = arith.constant 0 : i32
    return %arg0, %c0_i32, %c0_i32_0 : i32, i32, i32
  }
  func.func @transform_6(%arg0: i32) -> (i32, i32, i32) {
    %c0_i32 = arith.constant 0 : i32
    %c0_i32_0 = arith.constant 0 : i32
    %c0_i32_1 = arith.constant 0 : i32
    return %arg0, %c0_i32, %c0_i32_0 : i32, i32, i32
  }
  func.func @transform_7(%arg0: i32) -> (i32, i32, i32) {
    %c0_i32 = arith.constant 0 : i32
    %c0_i32_0 = arith.constant 0 : i32
    %c0_i32_1 = arith.constant 0 : i32
    return %arg0, %c0_i32, %c0_i32_0 : i32, i32, i32
  }
}

module attributes {stable_mosaic.version = 11 : i64} {
  func.func @_finalize_kernel(%arg0: i32, %arg1: memref<1x256x32xf32, #tpu.memory_space<vmem>>, %arg2: memref<1x32xf32, #tpu.memory_space<vmem>>, %arg3: memref<1x32xf32, #tpu.memory_space<vmem>>, %arg4: memref<1x256x32xf32, #tpu.memory_space<vmem>>) attributes {dimension_semantics = [#tpu.dimension_semantics<parallel>], iteration_bounds = array<i64: 2>, scalar_prefetch = 0 : i64, scratch_operands = 0 : i64, tpu.core_type = #tpu.core_type<tc>, window_params = [{transform_indices = @transform_0, window_bounds = array<i64: 1, 256, 32>}, {pipeline_mode = #tpu.pipeline_mode<synchronous>, transform_indices = @transform_1, window_bounds = array<i64: 1, 32>}, {pipeline_mode = #tpu.pipeline_mode<synchronous>, transform_indices = @transform_2, window_bounds = array<i64: 1, 32>}, {transform_indices = @transform_3, window_bounds = array<i64: 1, 256, 32>}]} {
    %c0 = arith.constant 0 : index
    %c0_0 = arith.constant 0 : index
    %c0_1 = arith.constant 0 : index
    %0 = vector.load %arg1[%c0, %c0_0, %c0_1] : memref<1x256x32xf32, #tpu.memory_space<vmem>>, vector<1x256x32xf32>
    %1 = vector.shape_cast %0 : vector<1x256x32xf32> to vector<256x32xf32>
    %c0_2 = arith.constant 0 : index
    %c0_3 = arith.constant 0 : index
    %2 = vector.load %arg2[%c0_2, %c0_3] : memref<1x32xf32, #tpu.memory_space<vmem>>, vector<1x32xf32>
    %3 = vector.broadcast %2 : vector<1x32xf32> to vector<256x32xf32>
    %4 = arith.mulf %1, %3 : vector<256x32xf32>
    %c0_4 = arith.constant 0 : index
    %c0_5 = arith.constant 0 : index
    %5 = vector.load %arg3[%c0_4, %c0_5] : memref<1x32xf32, #tpu.memory_space<vmem>>, vector<1x32xf32>
    %6 = vector.broadcast %5 : vector<1x32xf32> to vector<256x32xf32>
    %7 = arith.addf %4, %6 : vector<256x32xf32>
    %cst = arith.constant 0.000000e+00 : f32
    %8 = vector.broadcast %cst : f32 to vector<256x32xf32>
    %9 = arith.maximumf %7, %8 : vector<256x32xf32>
    %c0_6 = arith.constant 0 : index
    %c0_7 = arith.constant 0 : index
    %c0_8 = arith.constant 0 : index
    %10 = vector.load %arg4[%c0_6, %c0_7, %c0_8] : memref<1x256x32xf32, #tpu.memory_space<vmem>>, vector<1x256x32xf32>
    %11 = vector.shape_cast %10 : vector<1x256x32xf32> to vector<256x32xf32>
    %12 = vector.shape_cast %9 : vector<256x32xf32> to vector<1x256x32xf32>
    tpu.vector_store %arg4[%c0_6, %c0_7, %c0_8], %12 {strides = array<i32>} : memref<1x256x32xf32, #tpu.memory_space<vmem>>, vector<1x256x32xf32>,
    return
  }
  func.func @transform_0(%arg0: i32) -> (i32, i32, i32) {
    %c0_i32 = arith.constant 0 : i32
    %c0_i32_0 = arith.constant 0 : i32
    %c0_i32_1 = arith.constant 0 : i32
    return %arg0, %c0_i32, %c0_i32_0 : i32, i32, i32
  }
  func.func @transform_1(%arg0: i32) -> (i32, i32) {
    %c0_i32 = arith.constant 0 : i32
    %c0_i32_0 = arith.constant 0 : i32
    %c0_i32_1 = arith.constant 0 : i32
    return %c0_i32, %c0_i32_0 : i32, i32
  }
  func.func @transform_2(%arg0: i32) -> (i32, i32) {
    %c0_i32 = arith.constant 0 : i32
    %c0_i32_0 = arith.constant 0 : i32
    %c0_i32_1 = arith.constant 0 : i32
    return %c0_i32, %c0_i32_0 : i32, i32
  }
  func.func @transform_3(%arg0: i32) -> (i32, i32, i32) {
    %c0_i32 = arith.constant 0 : i32
    %c0_i32_0 = arith.constant 0 : i32
    %c0_i32_1 = arith.constant 0 : i32
    return %arg0, %c0_i32, %c0_i32_0 : i32, i32, i32
  }
}

</mosaic_0001>

<llo_original>
// kernel: fire_module_forward.5
$region0: #{fire_module_forward.5}
  #allocation0 [shape = 'u32[]', space=smem, size = 0x4, offset = 0x4, fixed_abs, tag = 'smem constant byte address 0x4 - core index']
  #allocation1 [shape = 'u32[144,128]{1,0:T(1,128)}', space=vmem, size = 0x12000, scoped, tag = 'internal scratch']
  %s0 = inlined_call_operand.vmem [shape: f32[2,256,32], index: 0, kind: input, shape index: {}]
  %s1 = inlined_call_operand.vmem [shape: f32[1,32], index: 1, kind: input, shape index: {}]
  %s2 = inlined_call_operand.vmem [shape: f32[1,32], index: 2, kind: input, shape index: {}]
  %s3 = inlined_call_operand.hbm [shape: f32[2,256,32], index: 3, kind: output, shape index: {}]
  %s4 = sld [smem:[#allocation0]]
  $region45: #{fire_module_forward.5} parent=0
    _
  %s6 = ssub.s32 1, %s4
  %s7 = scalar_select 0, %s6, %s4
  $region1: #{fire_module_forward.5} parent=0
    #allocation2 [shape = 'u8[262144]{0}', space=vmem, size = 0x40000, scoped, tag = 'output window, operand 0']
    #allocation3 [shape = 's32[2]{0}', space=sflag, size = 0x8, scoped, tag = 'scoped memory for fire_module_forward.5']
    %8 = vsyncpa [#allocation3], 0
    %s9 = scalar_lea.sflag [#allocation3], 1
    %10 = vsyncpa %s9, 0
    loop: start=0, step=1, limit=4
    $region2: #{fire_module_forward.5} parent=1 // loop_pre_header
      _
    $region3: #{fire_module_forward.5} parent=1 // loop_header
      %s12 = sphi 0, %s16
      %p13 = scmp.ge.s32.totalorder %s12, 4
      %s22 = sphi 0, %s24
      %s25 = sphi 0, %s22
      %s26 = sphi 0, %s25
      %s42 = sphi 0, %s26
      %s46 = sphi 0, %s46
      %s48 = sphi 0, %s46
      %s49 = sphi 0, %s48
      %s63 = sphi 0, %s49
      %s67 = sphi 0, %s67
      %s69 = sphi 0, %s67
      %s70 = sphi 0, %s69
      %s84 = sphi 0, %s70
      %s90 = sphi 0, %s92
      %s93 = sphi 0, %s90
      %s94 = sphi 0, %s93
      %s110 = sphi 0, %s94
    $region4: #{fire_module_forward.5} parent=1 // loop_header_branch
      %15 = sbr.rel (%p13) target = $region8
    $region5: #{fire_module_forward.5} parent=1 // loop_body
      %s17 = ssub.s32 %s12, 1
      %s18 = ssub.s32 %s12, 2
      %s19 = sadd.s32 %s12, 1
      %s20 = ssub.s32 %s12, %s19
      %p21 = scmp.eq.s32.totalorder %s20, 0
      %s23 = sadd.s32 %s22, 1
      %s24 = scalar_select %p21, %s22, %s23
      %p27 = pneg %p21
      %p28 = scmp.eq.s32.totalorder %s12, 1
      %p29 = por %p27, %p28
      %p30 = scmp.ne.s32.totalorder %s22, %s25
      %p31 = scmp.eq.s32.totalorder %s12, 0
      %p32 = por %p30, %p31
      %p33 = scmp.ne.s32.totalorder %s22, %s25
      %p34 = scmp.eq.s32.totalorder %s17, 1
      %p35 = por %p33, %p34
      %p36 = scmp.ne.s32.totalorder %s25, %s26
      %p37 = scmp.eq.s32.totalorder %s17, 0
      %p38 = por %p36, %p37
      %p39 = scmp.ne.s32.totalorder %s25, %s26
      %p40 = scmp.eq.s32.totalorder %s18, 1
      %p41 = por %p39, %p40
      %p43 = scmp.ne.s32.totalorder %s26, %s42
      %p44 = scmp.eq.s32.totalorder %s18, 0
      %p45 = por %p43, %p44
      %s47 = sadd.s32 %s46, 1
      %p50 = scmp.eq.s32.totalorder %s12, 1
      %p51 = scmp.ne.s32.totalorder %s46, %s48
      %p52 = scmp.eq.s32.totalorder %s12, 0
      %p53 = por %p51, %p52
      %p54 = scmp.ne.s32.totalorder %s46, %s48
      %p55 = scmp.eq.s32.totalorder %s17, 1
      %p56 = por %p54, %p55
      %p57 = scmp.ne.s32.totalorder %s48, %s49
      %p58 = scmp.eq.s32.totalorder %s17, 0
      %p59 = por %p57, %p58
      %p60 = scmp.ne.s32.totalorder %s48, %s49
      %p61 = scmp.eq.s32.totalorder %s18, 1
      %p62 = por %p60, %p61
      %p64 = scmp.ne.s32.totalorder %s49, %s63
      %p65 = scmp.eq.s32.totalorder %s18, 0
      %p66 = por %p64, %p65
      %s68 = sadd.s32 %s67, 1
      %p71 = scmp.eq.s32.totalorder %s12, 1
      %p72 = scmp.ne.s32.totalorder %s67, %s69
      %p73 = scmp.eq.s32.totalorder %s12, 0
      %p74 = por %p72, %p73
      %p75 = scmp.ne.s32.totalorder %s67, %s69
      %p76 = scmp.eq.s32.totalorder %s17, 1
      %p77 = por %p75, %p76
      %p78 = scmp.ne.s32.totalorder %s69, %s70
      %p79 = scmp.eq.s32.totalorder %s17, 0
      %p80 = por %p78, %p79
      %p81 = scmp.ne.s32.totalorder %s69, %s70
      %p82 = scmp.eq.s32.totalorder %s18, 1
      %p83 = por %p81, %p82
      %p85 = scmp.ne.s32.totalorder %s70, %s84
      %p86 = scmp.eq.s32.totalorder %s18, 0
      %p87 = por %p85, %p86
      %s88 = ssub.s32 %s12, %s19
      %p89 = scmp.eq.s32.totalorder %s88, 0
      %s91 = sadd.s32 %s90, 1
      %s92 = scalar_select %p89, %s90, %s91
      %p95 = pneg %p89
      %p96 = scmp.eq.s32.totalorder %s12, 1
      %p97 = por %p95, %p96
      %p98 = scmp.ne.s32.totalorder %s90, %s93
      %p99 = scmp.eq.s32.totalorder %s12, 0
      %p100 = por %p98, %p99
      %p101 = scmp.ne.s32.totalorder %s90, %s93
      %p102 = scmp.eq.s32.totalorder %s17, 1
      %p103 = por %p101, %p102
      %p104 = scmp.ne.s32.totalorder %s93, %s94
      %p105 = scmp.eq.s32.totalorder %s17, 0
      %p106 = por %p104, %p105
      %p107 = scmp.ne.s32.totalorder %s93, %s94
      %p108 = scmp.eq.s32.totalorder %s18, 1
      %p109 = por %p107, %p108
      %p111 = scmp.ne.s32.totalorder %s94, %s110
      %p112 = scmp.eq.s32.totalorder %s18, 0
      %p113 = por %p111, %p112
      %p114 = scmp.le.s32.totalorder 1, %s12
      %p115 = scmp.lt.s32.totalorder %s12, 3
      %p116 = pnand %p114, %p115
      %p117 = pneg %p116
      // Predicated region
      $region9: #{fire_module_forward.5} parent=5 // pred_check
        _
      $region10: #{fire_module_forward.5} parent=5 // pred_check_branch
        %119 = sbr.rel (%p116) target = $region12
      $region11: #{fire_module_forward.5} parent=5 // pred_region
        %s120 = ssub.s32 %s12, 1
        // Predicated region
        $region13: #{fire_module_forward.5} parent=11 // pred_check
          %p121 = pneg %p59
        $region14: #{fire_module_forward.5} parent=11 // pred_check_branch
          %123 = sbr.rel (%p121) target = $region16
        $region15: #{fire_module_forward.5} parent=11 // pred_region
          _
        $region16: #{fire_module_forward.5} parent=11 // pred_fallthru
          _
        // Predicated region
        $region17: #{fire_module_forward.5} parent=11 // pred_check
          %p124 = pneg %p80
        $region18: #{fire_module_forward.5} parent=11 // pred_check_branch
          %126 = sbr.rel (%p124) target = $region20
        $region19: #{fire_module_forward.5} parent=11 // pred_region
          _
        $region20: #{fire_module_forward.5} parent=11 // pred_fallthru
          _
      $region12: #{fire_module_forward.5} parent=5 // pred_fallthru
        _
      %p127 = scmp.lt.s32.totalorder %s12, 2
      // Predicated region
      $region21: #{fire_module_forward.5} parent=5 // pred_check
        %p128 = pneg %p127
      $region22: #{fire_module_forward.5} parent=5 // pred_check_branch
        %130 = sbr.rel (%p128) target = $region24
      $region23: #{fire_module_forward.5} parent=5 // pred_region
        // Predicated region
        $region25: #{fire_module_forward.5} parent=23 // pred_check
          %p131 = pneg %p32
        $region26: #{fire_module_forward.5} parent=23 // pred_check_branch
          %133 = sbr.rel (%p131) target = $region28
        $region27: #{fire_module_forward.5} parent=23 // pred_region
          %p134 = scmp.lt.s32.totalorder %s12, 1
          %s135 = scalar_select %p134, %s12, 1
          %s136 = smul.addr %s135, 32
          %s137 = smul.addr %s136, 8
          %s138 = scalar_lea.vmem %s0, %s137
        $region28: #{fire_module_forward.5} parent=23 // pred_fallthru
          _
      $region24: #{fire_module_forward.5} parent=5 // pred_fallthru
        _
      %p139 = scmp.le.s32.totalorder 1, %s12
      %p140 = scmp.lt.s32.totalorder %s12, 3
      %p141 = pnand %p139, %p140
      %p142 = pneg %p141
      // Predicated region
      $region29: #{fire_module_forward.5} parent=5 // pred_check
        _
      $region30: #{fire_module_forward.5} parent=5 // pred_check_branch
        %144 = sbr.rel (%p141) target = $region32
      $region31: #{fire_module_forward.5} parent=5 // pred_region
        %s145 = ssub.s32 %s12, 1
        %p146 = scmp.lt.s32.totalorder %s17, 1
        %s147 = scalar_select %p146, %s17, 1
        %s148 = smul.addr %s147, 32
        %s149 = smul.addr %s148, 8
        %s150 = scalar_lea.vmem %s0, %s149
        %p151 = pneg %p38
        %p152 = pneg %p35
        %p153 = pneg %p59
        %p154 = pneg %p56
        %p155 = pneg %p80
        %p156 = pneg %p77
        %p157 = pneg %p106
        %p158 = pneg %p103
        %s159 = sand.u32 %s93, 1
        %s160 = scalar_lea.sflag [#allocation3], %s159
        %s161 = sand.u32 %s93, 1
        %s162 = smul.addr %s161, 256
        %s163 = scalar_lea.vmem [#allocation2], %s162
        %p164 = scmp.lt.s32.totalorder %s17, 1
        %s165 = scalar_select %p164, %s17, 1
        %s166 = smul.addr %s165, 32
        %s167 = smul.addr %s166, 8
        %s168 = scalar_lea.vmem %s0, %s167
        %v169 = vld [vmem:[%s168] sm:$0xff]
        %v170 = vld [vmem:[%s168 + $0x8] sm:$0xff]
        %v171 = vld [vmem:[%s168 + $0x10] sm:$0xff]
        %v172 = vld [vmem:[%s168 + $0x18] sm:$0xff]
        %v173 = vld [vmem:[%s168 + $0x20] sm:$0xff]
        %v174 = vld [vmem:[%s168 + $0x28] sm:$0xff]
        %v175 = vld [vmem:[%s168 + $0x30] sm:$0xff]
        %v176 = vld [vmem:[%s168 + $0x38] sm:$0xff]
        %v177 = vld [vmem:[%s168 + $0x40] sm:$0xff]
        %v178 = vld [vmem:[%s168 + $0x48] sm:$0xff]
        %v179 = vld [vmem:[%s168 + $0x50] sm:$0xff]
        %v180 = vld [vmem:[%s168 + $0x58] sm:$0xff]
        %v181 = vld [vmem:[%s168 + $0x60] sm:$0xff]
        %v182 = vld [vmem:[%s168 + $0x68] sm:$0xff]
        %v183 = vld [vmem:[%s168 + $0x70] sm:$0xff]
        %v184 = vld [vmem:[%s168 + $0x78] sm:$0xff]
        %v185 = vld [vmem:[%s168 + $0x80] sm:$0xff]
        %v186 = vld [vmem:[%s168 + $0x88] sm:$0xff]
        %v187 = vld [vmem:[%s168 + $0x90] sm:$0xff]
        %v188 = vld [vmem:[%s168 + $0x98] sm:$0xff]
        %v189 = vld [vmem:[%s168 + $0xa0] sm:$0xff]
        %v190 = vld [vmem:[%s168 + $0xa8] sm:$0xff]
        %v191 = vld [vmem:[%s168 + $0xb0] sm:$0xff]
        %v192 = vld [vmem:[%s168 + $0xb8] sm:$0xff]
        %v193 = vld [vmem:[%s168 + $0xc0] sm:$0xff]
        %v194 = vld [vmem:[%s168 + $0xc8] sm:$0xff]
        %v195 = vld [vmem:[%s168 + $0xd0] sm:$0xff]
        %v196 = vld [vmem:[%s168 + $0xd8] sm:$0xff]
        %v197 = vld [vmem:[%s168 + $0xe0] sm:$0xff]
        %v198 = vld [vmem:[%s168 + $0xe8] sm:$0xff]
        %v199 = vld [vmem:[%s168 + $0xf0] sm:$0xff]
        %v200 = vld [vmem:[%s168 + $0xf8] sm:$0xff]
        %v201 = vld [vmem:[%s1] sm:$0x1]
        %v203 = vlaneseq
        %v204 = vshrl.u32 %v203, 7
        %v205 = vsub.s32 0, %v204
        %v206 = vrot.slane %v201, %v205
        %v208 = vmul.f32 %v169, %v206
        %v209 = vmul.f32 %v170, %v206
        %v210 = vmul.f32 %v171, %v206
        %v211 = vmul.f32 %v172, %v206
        %v212 = vmul.f32 %v173, %v206
        %v213 = vmul.f32 %v174, %v206
        %v214 = vmul.f32 %v175, %v206
        %v215 = vmul.f32 %v176, %v206
        %v216 = vmul.f32 %v177, %v206
        %v217 = vmul.f32 %v178, %v206
        %v218 = vmul.f32 %v179, %v206
        %v219 = vmul.f32 %v180, %v206
        %v220 = vmul.f32 %v181, %v206
        %v221 = vmul.f32 %v182, %v206
        %v222 = vmul.f32 %v183, %v206
        %v223 = vmul.f32 %v184, %v206
        %v224 = vmul.f32 %v185, %v206
        %v225 = vmul.f32 %v186, %v206
        %v226 = vmul.f32 %v187, %v206
        %v227 = vmul.f32 %v188, %v206
        %v228 = vmul.f32 %v189, %v206
        %v229 = vmul.f32 %v190, %v206
        %v230 = vmul.f32 %v191, %v206
        %v231 = vmul.f32 %v192, %v206
        %v232 = vmul.f32 %v193, %v206
        %v233 = vmul.f32 %v194, %v206
        %v234 = vmul.f32 %v195, %v206
        %v235 = vmul.f32 %v196, %v206
        %v236 = vmul.f32 %v197, %v206
        %v237 = vmul.f32 %v198, %v206
        %v238 = vmul.f32 %v199, %v206
        %v239 = vmul.f32 %v200, %v206
        %v240 = vld [vmem:[%s2] sm:$0x1]
        %v242 = vlaneseq
        %v243 = vshrl.u32 %v242, 7
        %v244 = vsub.s32 0, %v243
        %v245 = vrot.slane %v240, %v244
        %v247 = vadd.f32 %v208, %v245
        %v248 = vadd.f32 %v209, %v245
        %v249 = vadd.f32 %v210, %v245
        %v250 = vadd.f32 %v211, %v245
        %v251 = vadd.f32 %v212, %v245
        %v252 = vadd.f32 %v213, %v245
        %v253 = vadd.f32 %v214, %v245
        %v254 = vadd.f32 %v215, %v245
        %v255 = vadd.f32 %v216, %v245
        %v256 = vadd.f32 %v217, %v245
        %v257 = vadd.f32 %v218, %v245
        %v258 = vadd.f32 %v219, %v245
        %v259 = vadd.f32 %v220, %v245
        %v260 = vadd.f32 %v221, %v245
        %v261 = vadd.f32 %v222, %v245
        %v262 = vadd.f32 %v223, %v245
        %v263 = vadd.f32 %v224, %v245
        %v264 = vadd.f32 %v225, %v245
        %v265 = vadd.f32 %v226, %v245
        %v266 = vadd.f32 %v227, %v245
        %v267 = vadd.f32 %v228, %v245
        %v268 = vadd.f32 %v229, %v245
        %v269 = vadd.f32 %v230, %v245
        %v270 = vadd.f32 %v231, %v245
        %v271 = vadd.f32 %v232, %v245
        %v272 = vadd.f32 %v233, %v245
        %v273 = vadd.f32 %v234, %v245
        %v274 = vadd.f32 %v235, %v245
        %v275 = vadd.f32 %v236, %v245
        %v276 = vadd.f32 %v237, %v245
        %v277 = vadd.f32 %v238, %v245
        %v278 = vadd.f32 %v239, %v245
        %v279 = vmax.f32 %v247, 0.0
        %v280 = vmax.f32 %v248, 0.0
        %v281 = vmax.f32 %v249, 0.0
        %v282 = vmax.f32 %v250, 0.0
        %v283 = vmax.f32 %v251, 0.0
        %v284 = vmax.f32 %v252, 0.0
        %v285 = vmax.f32 %v253, 0.0
        %v286 = vmax.f32 %v254, 0.0
        %v287 = vmax.f32 %v255, 0.0
        %v288 = vmax.f32 %v256, 0.0
        %v289 = vmax.f32 %v257, 0.0
        %v290 = vmax.f32 %v258, 0.0
        %v291 = vmax.f32 %v259, 0.0
        %v292 = vmax.f32 %v260, 0.0
        %v293 = vmax.f32 %v261, 0.0
        %v294 = vmax.f32 %v262, 0.0
        %v295 = vmax.f32 %v263, 0.0
        %v296 = vmax.f32 %v264, 0.0
        %v297 = vmax.f32 %v265, 0.0
        %v298 = vmax.f32 %v266, 0.0
        %v299 = vmax.f32 %v267, 0.0
        %v300 = vmax.f32 %v268, 0.0
        %v301 = vmax.f32 %v269, 0.0
        %v302 = vmax.f32 %v270, 0.0
        %v303 = vmax.f32 %v271, 0.0
        %v304 = vmax.f32 %v272, 0.0
        %v305 = vmax.f32 %v273, 0.0
        %v306 = vmax.f32 %v274, 0.0
        %v307 = vmax.f32 %v275, 0.0
        %v308 = vmax.f32 %v276, 0.0
        %v309 = vmax.f32 %v277, 0.0
        %v310 = vmax.f32 %v278, 0.0
        %vm311 = vcmask 261120
        %312 = vst.msk [vmem:[%s163] sm:$0xff] %vm311, %v279
        %313 = vst.msk [vmem:[%s163 + $0x8] sm:$0xff] %vm311, %v280
        %314 = vst.msk [vmem:[%s163 + $0x10] sm:$0xff] %vm311, %v281
        %315 = vst.msk [vmem:[%s163 + $0x18] sm:$0xff] %vm311, %v282
        %316 = vst.msk [vmem:[%s163 + $0x20] sm:$0xff] %vm311, %v283
        %317 = vst.msk [vmem:[%s163 + $0x28] sm:$0xff] %vm311, %v284
        %318 = vst.msk [vmem:[%s163 + $0x30] sm:$0xff] %vm311, %v285
        %319 = vst.msk [vmem:[%s163 + $0x38] sm:$0xff] %vm311, %v286
        %320 = vst.msk [vmem:[%s163 + $0x40] sm:$0xff] %vm311, %v287
        %321 = vst.msk [vmem:[%s163 + $0x48] sm:$0xff] %vm311, %v288
        %322 = vst.msk [vmem:[%s163 + $0x50] sm:$0xff] %vm311, %v289
        %323 = vst.msk [vmem:[%s163 + $0x58] sm:$0xff] %vm311, %v290
        %324 = vst.msk [vmem:[%s163 + $0x60] sm:$0xff] %vm311, %v291
        %325 = vst.msk [vmem:[%s163 + $0x68] sm:$0xff] %vm311, %v292
        %326 = vst.msk [vmem:[%s163 + $0x70] sm:$0xff] %vm311, %v293
        %327 = vst.msk [vmem:[%s163 + $0x78] sm:$0xff] %vm311, %v294
        %328 = vst.msk [vmem:[%s163 + $0x80] sm:$0xff] %vm311, %v295
        %329 = vst.msk [vmem:[%s163 + $0x88] sm:$0xff] %vm311, %v296
        %330 = vst.msk [vmem:[%s163 + $0x90] sm:$0xff] %vm311, %v297
        %331 = vst.msk [vmem:[%s163 + $0x98] sm:$0xff] %vm311, %v298
        %332 = vst.msk [vmem:[%s163 + $0xa0] sm:$0xff] %vm311, %v299
        %333 = vst.msk [vmem:[%s163 + $0xa8] sm:$0xff] %vm311, %v300
        %334 = vst.msk [vmem:[%s163 + $0xb0] sm:$0xff] %vm311, %v301
        %335 = vst.msk [vmem:[%s163 + $0xb8] sm:$0xff] %vm311, %v302
        %336 = vst.msk [vmem:[%s163 + $0xc0] sm:$0xff] %vm311, %v303
        %337 = vst.msk [vmem:[%s163 + $0xc8] sm:$0xff] %vm311, %v304
        %338 = vst.msk [vmem:[%s163 + $0xd0] sm:$0xff] %vm311, %v305
        %339 = vst.msk [vmem:[%s163 + $0xd8] sm:$0xff] %vm311, %v306
        %340 = vst.msk [vmem:[%s163 + $0xe0] sm:$0xff] %vm311, %v307
        %341 = vst.msk [vmem:[%s163 + $0xe8] sm:$0xff] %vm311, %v308
        %342 = vst.msk [vmem:[%s163 + $0xf0] sm:$0xff] %vm311, %v309
        %343 = vst.msk [vmem:[%s163 + $0xf8] sm:$0xff] %vm311, %v310
        %s344 = sand.u32 %s93, 1
        %s345 = scalar_lea.sflag [#allocation3], %s344
        %s346 = sand.u32 %s93, 1
        %s347 = smul.addr %s346, 256
        %s348 = scalar_lea.vmem [#allocation2], %s347
        // Predicated region
        $region33: #{fire_module_forward.5} parent=31 // pred_check
          %p349 = pneg %p103
        $region34: #{fire_module_forward.5} parent=31 // pred_check_branch
          %351 = sbr.rel (%p349) target = $region36
        $region35: #{fire_module_forward.5} parent=31 // pred_region
          %s353 = ssub.s32 4096, 4096
          %354 = vsyncadd %s345, %s353
          %s355 = smul.addr %s17, 32
          %s356 = smul.addr %s355, 128
          %s357 = scalar_lea.hbm %s3, %s356
          %s358 = sshll.u32 %s348, 4
          %s359 = int_to_ptr.vmem [resolvable:$true] %s358
          %364 = dma.vmem_to_hbm [thread:$0]  %s359, 4096, %s357, %s345, 128, 128, 8
        $region36: #{fire_module_forward.5} parent=31 // pred_fallthru
          _
      $region32: #{fire_module_forward.5} parent=5 // pred_fallthru
        _
      %p365 = scmp.le.s32.totalorder 2, %s12
      // Predicated region
      $region37: #{fire_module_forward.5} parent=5 // pred_check
        %p366 = pneg %p365
      $region38: #{fire_module_forward.5} parent=5 // pred_check_branch
        %368 = sbr.rel (%p366) target = $region40
      $region39: #{fire_module_forward.5} parent=5 // pred_region
        %s369 = ssub.s32 %s12, 2
        // Predicated region
        $region41: #{fire_module_forward.5} parent=39 // pred_check
          %p370 = pneg %p109
        $region42: #{fire_module_forward.5} parent=39 // pred_check_branch
          %372 = sbr.rel (%p370) target = $region44
        $region43: #{fire_module_forward.5} parent=39 // pred_region
          %s373 = sand.u32 %s94, 1
          %s374 = scalar_lea.sflag [#allocation3], %s373
          %s375 = sand.u32 %s94, 1
          %s376 = smul.addr %s375, 256
          %s377 = scalar_lea.vmem [#allocation2], %s376
          %378 = dma.done %s374, 4096
        $region44: #{fire_module_forward.5} parent=39 // pred_fallthru
          _
      $region40: #{fire_module_forward.5} parent=5 // pred_fallthru
        _
    $region6: #{fire_module_forward.5} parent=1 // loop_footer
      %s16 = sadd.s32 1, %s12
    $region7: #{fire_module_forward.5} parent=1 // loop_footer_branch
      %11 = sbr.rel target = $region3
    $region8: #{fire_module_forward.5} parent=1 // loop_exit
      _
    %379 = vsyncpa [#allocation3], 1
    %s380 = scalar_lea.sflag [#allocation3], 1
    %381 = vsyncpa %s380, 1

// kernel: fire_module_forward.3
$region0: #{fire_module_forward.3}
  #allocation0 [shape = 'u32[]', space=smem, size = 0x4, offset = 0x4, fixed_abs, tag = 'smem constant byte address 0x4 - core index']
  #allocation1 [shape = 'u32[144,128]{1,0:T(1,128)}', space=vmem, size = 0x12000, scoped, tag = 'internal scratch']
  %s0 = inlined_call_operand.vmem [shape: bf16[512,4], index: 0, kind: input, shape index: {}]
  %s1 = inlined_call_operand.vmem [shape: bf16[4,8], index: 1, kind: input, shape index: {}]
  %s2 = inlined_call_operand.vmem [shape: f32[512,8], index: 2, kind: output, shape index: {0}]
  %s3 = inlined_call_operand.vmem [shape: f32[2,1,8], index: 3, kind: output, shape index: {1}]
  %s4 = inlined_call_operand.vmem [shape: f32[2,1,8], index: 4, kind: output, shape index: {2}]
  %5 = xla_tuple %s2, %s3, %s4
  %s6 = sld [smem:[#allocation0]]
  $region57: #{fire_module_forward.3} parent=0
    _
  %s8 = ssub.s32 1, %s6
  %s9 = scalar_select 0, %s8, %s6
  loop: start=0, step=1, limit=4
  $region2: #{fire_module_forward.3} parent=0 // loop_pre_header
    _
  $region3: #{fire_module_forward.3} parent=0 // loop_header
    %s11 = sphi 0, %s15
    %p12 = scmp.ge.s32.totalorder %s11, 4
    %s21 = sphi 0, %s23
    %s24 = sphi 0, %s21
    %s25 = sphi 0, %s24
    %s41 = sphi 0, %s25
    %s45 = sphi 0, %s45
    %s47 = sphi 0, %s45
    %s48 = sphi 0, %s47
    %s62 = sphi 0, %s48
    %s68 = sphi 0, %s70
    %s71 = sphi 0, %s68
    %s72 = sphi 0, %s71
    %s88 = sphi 0, %s72
    %s94 = sphi 0, %s96
    %s97 = sphi 0, %s94
    %s98 = sphi 0, %s97
    %s114 = sphi 0, %s98
    %s120 = sphi 0, %s122
    %s123 = sphi 0, %s120
    %s124 = sphi 0, %s123
    %s140 = sphi 0, %s124
  $region4: #{fire_module_forward.3} parent=0 // loop_header_branch
    %14 = sbr.rel (%p12) target = $region8
  $region5: #{fire_module_forward.3} parent=0 // loop_body
    %s16 = ssub.s32 %s11, 1
    %s17 = ssub.s32 %s11, 2
    %s18 = sadd.s32 %s11, 1
    %s19 = ssub.s32 %s11, %s18
    %p20 = scmp.eq.s32.totalorder %s19, 0
    %s22 = sadd.s32 %s21, 1
    %s23 = scalar_select %p20, %s21, %s22
    %p26 = pneg %p20
    %p27 = scmp.eq.s32.totalorder %s11, 1
    %p28 = por %p26, %p27
    %p29 = scmp.ne.s32.totalorder %s21, %s24
    %p30 = scmp.eq.s32.totalorder %s11, 0
    %p31 = por %p29, %p30
    %p32 = scmp.ne.s32.totalorder %s21, %s24
    %p33 = scmp.eq.s32.totalorder %s16, 1
    %p34 = por %p32, %p33
    %p35 = scmp.ne.s32.totalorder %s24, %s25
    %p36 = scmp.eq.s32.totalorder %s16, 0
    %p37 = por %p35, %p36
    %p38 = scmp.ne.s32.totalorder %s24, %s25
    %p39 = scmp.eq.s32.totalorder %s17, 1
    %p40 = por %p38, %p39
    %p42 = scmp.ne.s32.totalorder %s25, %s41
    %p43 = scmp.eq.s32.totalorder %s17, 0
    %p44 = por %p42, %p43
    %s46 = sadd.s32 %s45, 1
    %p49 = scmp.eq.s32.totalorder %s11, 1
    %p50 = scmp.ne.s32.totalorder %s45, %s47
    %p51 = scmp.eq.s32.totalorder %s11, 0
    %p52 = por %p50, %p51
    %p53 = scmp.ne.s32.totalorder %s45, %s47
    %p54 = scmp.eq.s32.totalorder %s16, 1
    %p55 = por %p53, %p54
    %p56 = scmp.ne.s32.totalorder %s47, %s48
    %p57 = scmp.eq.s32.totalorder %s16, 0
    %p58 = por %p56, %p57
    %p59 = scmp.ne.s32.totalorder %s47, %s48
    %p60 = scmp.eq.s32.totalorder %s17, 1
    %p61 = por %p59, %p60
    %p63 = scmp.ne.s32.totalorder %s48, %s62
    %p64 = scmp.eq.s32.totalorder %s17, 0
    %p65 = por %p63, %p64
    %s66 = ssub.s32 %s11, %s18
    %p67 = scmp.eq.s32.totalorder %s66, 0
    %s69 = sadd.s32 %s68, 1
    %s70 = scalar_select %p67, %s68, %s69
    %p73 = pneg %p67
    %p74 = scmp.eq.s32.totalorder %s11, 1
    %p75 = por %p73, %p74
    %p76 = scmp.ne.s32.totalorder %s68, %s71
    %p77 = scmp.eq.s32.totalorder %s11, 0
    %p78 = por %p76, %p77
    %p79 = scmp.ne.s32.totalorder %s68, %s71
    %p80 = scmp.eq.s32.totalorder %s16, 1
    %p81 = por %p79, %p80
    %p82 = scmp.ne.s32.totalorder %s71, %s72
    %p83 = scmp.eq.s32.totalorder %s16, 0
    %p84 = por %p82, %p83
    %p85 = scmp.ne.s32.totalorder %s71, %s72
    %p86 = scmp.eq.s32.totalorder %s17, 1
    %p87 = por %p85, %p86
    %p89 = scmp.ne.s32.totalorder %s72, %s88
    %p90 = scmp.eq.s32.totalorder %s17, 0
    %p91 = por %p89, %p90
    %s92 = ssub.s32 %s11, %s18
    %p93 = scmp.eq.s32.totalorder %s92, 0
    %s95 = sadd.s32 %s94, 1
    %s96 = scalar_select %p93, %s94, %s95
    %p99 = pneg %p93
    %p100 = scmp.eq.s32.totalorder %s11, 1
    %p101 = por %p99, %p100
    %p102 = scmp.ne.s32.totalorder %s94, %s97
    %p103 = scmp.eq.s32.totalorder %s11, 0
    %p104 = por %p102, %p103
    %p105 = scmp.ne.s32.totalorder %s94, %s97
    %p106 = scmp.eq.s32.totalorder %s16, 1
    %p107 = por %p105, %p106
    %p108 = scmp.ne.s32.totalorder %s97, %s98
    %p109 = scmp.eq.s32.totalorder %s16, 0
    %p110 = por %p108, %p109
    %p111 = scmp.ne.s32.totalorder %s97, %s98
    %p112 = scmp.eq.s32.totalorder %s17, 1
    %p113 = por %p111, %p112
    %p115 = scmp.ne.s32.totalorder %s98, %s114
    %p116 = scmp.eq.s32.totalorder %s17, 0
    %p117 = por %p115, %p116
    %s118 = ssub.s32 %s11, %s18
    %p119 = scmp.eq.s32.totalorder %s118, 0
    %s121 = sadd.s32 %s120, 1
    %s122 = scalar_select %p119, %s120, %s121
    %p125 = pneg %p119
    %p126 = scmp.eq.s32.totalorder %s11, 1
    %p127 = por %p125, %p126
    %p128 = scmp.ne.s32.totalorder %s120, %s123
    %p129 = scmp.eq.s32.totalorder %s11, 0
    %p130 = por %p128, %p129
    %p131 = scmp.ne.s32.totalorder %s120, %s123
    %p132 = scmp.eq.s32.totalorder %s16, 1
    %p133 = por %p131, %p132
    %p134 = scmp.ne.s32.totalorder %s123, %s124
    %p135 = scmp.eq.s32.totalorder %s16, 0
    %p136 = por %p134, %p135
    %p137 = scmp.ne.s32.totalorder %s123, %s124
    %p138 = scmp.eq.s32.totalorder %s17, 1
    %p139 = por %p137, %p138
    %p141 = scmp.ne.s32.totalorder %s124, %s140
    %p142 = scmp.eq.s32.totalorder %s17, 0
    %p143 = por %p141, %p142
    %p144 = scmp.le.s32.totalorder 1, %s11
    %p145 = scmp.lt.s32.totalorder %s11, 3
    %p146 = pnand %p144, %p145
    %p147 = pneg %p146
    // Predicated region
    $region9: #{fire_module_forward.3} parent=5 // pred_check
      _
    $region10: #{fire_module_forward.3} parent=5 // pred_check_branch
      %149 = sbr.rel (%p146) target = $region12
    $region11: #{fire_module_forward.3} parent=5 // pred_region
      %s150 = ssub.s32 %s11, 1
      // Predicated region
      $region13: #{fire_module_forward.3} parent=11 // pred_check
        %p151 = pneg %p58
      $region14: #{fire_module_forward.3} parent=11 // pred_check_branch
        %153 = sbr.rel (%p151) target = $region16
      $region15: #{fire_module_forward.3} parent=11 // pred_region
        _
      $region16: #{fire_module_forward.3} parent=11 // pred_fallthru
        _
    $region12: #{fire_module_forward.3} parent=5 // pred_fallthru
      _
    %p154 = scmp.lt.s32.totalorder %s11, 2
    // Predicated region
    $region17: #{fire_module_forward.3} parent=5 // pred_check
      %p155 = pneg %p154
    $region18: #{fire_module_forward.3} parent=5 // pred_check_branch
      %157 = sbr.rel (%p155) target = $region20
    $region19: #{fire_module_forward.3} parent=5 // pred_region
      // Predicated region
      $region21: #{fire_module_forward.3} parent=19 // pred_check
        %p158 = pneg %p31
      $region22: #{fire_module_forward.3} parent=19 // pred_check_branch
        %160 = sbr.rel (%p158) target = $region24
      $region23: #{fire_module_forward.3} parent=19 // pred_region
        %s161 = smul.u32 32, %s11
        %p162 = scmp.lt.s32.totalorder %s161, 63
        %s163 = scalar_select %p162, %s161, 63
        %s164 = smul.addr %s163, 4
        %s165 = scalar_lea.vmem %s0, %s164
        %s166 = smul.u32 32, %s11
      $region24: #{fire_module_forward.3} parent=19 // pred_fallthru
        _
    $region20: #{fire_module_forward.3} parent=5 // pred_fallthru
      _
    %p167 = scmp.le.s32.totalorder 1, %s11
    %p168 = scmp.lt.s32.totalorder %s11, 3
    %p169 = pnand %p167, %p168
    %p170 = pneg %p169
    // Predicated region
    $region25: #{fire_module_forward.3} parent=5 // pred_check
      _
    $region26: #{fire_module_forward.3} parent=5 // pred_check_branch
      %172 = sbr.rel (%p169) target = $region28
    $region27: #{fire_module_forward.3} parent=5 // pred_region
      %s173 = ssub.s32 %s11, 1
      %s174 = smul.u32 32, %s16
      %p175 = scmp.lt.s32.totalorder %s174, 63
      %s176 = scalar_select %p175, %s174, 63
      %s177 = smul.addr %s176, 4
      %s178 = scalar_lea.vmem %s0, %s177
      %p179 = pneg %p37
      %p180 = pneg %p34
      %p181 = pneg %p58
      %p182 = pneg %p55
      %p183 = pneg %p84
      %p184 = pneg %p81
      %s185 = smul.u32 32, %s16
      %p186 = scmp.lt.s32.totalorder %s185, 63
      %s187 = scalar_select %p186, %s185, 63
      %s188 = smul.addr %s187, 8
      %s189 = scalar_lea.vmem %s2, %s188
      %p190 = pneg %p110
      %p191 = pneg %p107
      %p192 = scmp.lt.s32.totalorder %s16, 1
      %s193 = scalar_select %p192, %s16, 1
      %s194 = scalar_lea.vmem %s3, %s193
      %p195 = pneg %p136
      %p196 = pneg %p133
      %p197 = scmp.lt.s32.totalorder %s16, 1
      %s198 = scalar_select %p197, %s16, 1
      %s199 = scalar_lea.vmem %s4, %s198
      %s200 = smul.u32 32, %s16
      %p201 = scmp.lt.s32.totalorder %s200, 63
      %s202 = scalar_select %p201, %s200, 63
      %s203 = smul.addr %s202, 4
      %s204 = scalar_lea.vmem %s0, %s203
      %s205 = smul.u32 32, %s16
      %s206 = smul.u32 32, %s16
      %p207 = scmp.lt.s32.totalorder %s206, 63
      %s208 = scalar_select %p207, %s206, 63
      %s209 = smul.addr %s208, 8
      %s210 = scalar_lea.vmem %s2, %s209
      %s211 = smul.u32 32, %s16
      %p212 = scmp.lt.s32.totalorder %s16, 1
      %s213 = scalar_select %p212, %s16, 1
      %s214 = scalar_lea.vmem %s3, %s213
      %p215 = scmp.lt.s32.totalorder %s16, 1
      %s216 = scalar_select %p215, %s16, 1
      %s217 = scalar_lea.vmem %s4, %s216
      %v219 = vld [vmem:[%s204] sm:$0xf]
      %v220 = vld [vmem:[%s204 + $0x4] sm:$0xf]
      %v221 = vld [vmem:[%s204 + $0x8] sm:$0xf]
      %v222 = vld [vmem:[%s204 + $0xc] sm:$0xf]
      %v223 = vld [vmem:[%s204 + $0x10] sm:$0xf]
      %v224 = vld [vmem:[%s204 + $0x14] sm:$0xf]
      %v225 = vld [vmem:[%s204 + $0x18] sm:$0xf]
      %v226 = vld [vmem:[%s204 + $0x1c] sm:$0xf]
      %v227 = vld [vmem:[%s204 + $0x20] sm:$0xf]
      %v228 = vld [vmem:[%s204 + $0x24] sm:$0xf]
      %v229 = vld [vmem:[%s204 + $0x28] sm:$0xf]
      %v230 = vld [vmem:[%s204 + $0x2c] sm:$0xf]
      %v231 = vld [vmem:[%s204 + $0x30] sm:$0xf]
      %v232 = vld [vmem:[%s204 + $0x34] sm:$0xf]
      %v233 = vld [vmem:[%s204 + $0x38] sm:$0xf]
      %v234 = vld [vmem:[%s204 + $0x3c] sm:$0xf]
      %v235 = vld [vmem:[%s204 + $0x40] sm:$0xf]
      %v236 = vld [vmem:[%s204 + $0x44] sm:$0xf]
      %v237 = vld [vmem:[%s204 + $0x48] sm:$0xf]
      %v238 = vld [vmem:[%s204 + $0x4c] sm:$0xf]
      %v239 = vld [vmem:[%s204 + $0x50] sm:$0xf]
      %v240 = vld [vmem:[%s204 + $0x54] sm:$0xf]
      %v241 = vld [vmem:[%s204 + $0x58] sm:$0xf]
      %v242 = vld [vmem:[%s204 + $0x5c] sm:$0xf]
      %v243 = vld [vmem:[%s204 + $0x60] sm:$0xf]
      %v244 = vld [vmem:[%s204 + $0x64] sm:$0xf]
      %v245 = vld [vmem:[%s204 + $0x68] sm:$0xf]
      %v246 = vld [vmem:[%s204 + $0x6c] sm:$0xf]
      %v247 = vld [vmem:[%s204 + $0x70] sm:$0xf]
      %v248 = vld [vmem:[%s204 + $0x74] sm:$0xf]
      %v249 = vld [vmem:[%s204 + $0x78] sm:$0xf]
      %v250 = vld [vmem:[%s204 + $0x7c] sm:$0xf]
      %v251 = vld [vmem:[%s1] sm:$0x3]
      %v284 = vunpack.c.l.b16 %v219
      %v285 = vunpack.c.l.b16 %v220
      %v286 = vunpack.c.l.b16 %v221
      %v287 = vunpack.c.l.b16 %v222
      %v288 = vunpack.c.l.b16 %v223
      %v289 = vunpack.c.l.b16 %v224
      %v290 = vunpack.c.l.b16 %v225
      %v291 = vunpack.c.l.b16 %v226
      %v292 = vunpack.c.l.b16 %v227
      %v293 = vunpack.c.l.b16 %v228
      %v294 = vunpack.c.l.b16 %v229
      %v295 = vunpack.c.l.b16 %v230
      %v296 = vunpack.c.l.b16 %v231
      %v297 = vunpack.c.l.b16 %v232
      %v298 = vunpack.c.l.b16 %v233
      %v299 = vunpack.c.l.b16 %v234
      %v300 = vunpack.c.l.b16 %v235
      %v301 = vunpack.c.l.b16 %v236
      %v302 = vunpack.c.l.b16 %v237
      %v303 = vunpack.c.l.b16 %v238
      %v304 = vunpack.c.l.b16 %v239
      %v305 = vunpack.c.l.b16 %v240
      %v306 = vunpack.c.l.b16 %v241
      %v307 = vunpack.c.l.b16 %v242
      %v308 = vunpack.c.l.b16 %v243
      %v309 = vunpack.c.l.b16 %v244
      %v310 = vunpack.c.l.b16 %v245
      %v311 = vunpack.c.l.b16 %v246
      %v312 = vunpack.c.l.b16 %v247
      %v313 = vunpack.c.l.b16 %v248
      %v314 = vunpack.c.l.b16 %v249
      %v315 = vunpack.c.l.b16 %v250
      %v316 = vpack.c.b16 %v285, %v284
      %v317 = vpack.c.b16 %v287, %v286
      %v318 = vpack.c.b16 %v289, %v288
      %v319 = vpack.c.b16 %v291, %v290
      %v320 = vpack.c.b16 %v293, %v292
      %v321 = vpack.c.b16 %v295, %v294
      %v322 = vpack.c.b16 %v297, %v296
      %v323 = vpack.c.b16 %v299, %v298
      %v324 = vpack.c.b16 %v301, %v300
      %v325 = vpack.c.b16 %v303, %v302
      %v326 = vpack.c.b16 %v305, %v304
      %v327 = vpack.c.b16 %v307, %v306
      %v328 = vpack.c.b16 %v309, %v308
      %v329 = vpack.c.b16 %v311, %v310
      %v330 = vpack.c.b16 %v313, %v312
      %v331 = vpack.c.b16 %v315, %v314
      %vm332 = vcmask 31744
      %v334 = vsel %vm332, %v316, 0
      %v337 = vsel %vm332, %v317, 0
      %v340 = vsel %vm332, %v318, 0
      %v343 = vsel %vm332, %v319, 0
      %v346 = vsel %vm332, %v320, 0
      %v349 = vsel %vm332, %v321, 0
      %v352 = vsel %vm332, %v322, 0
      %v355 = vsel %vm332, %v323, 0
      %v358 = vsel %vm332, %v324, 0
      %v361 = vsel %vm332, %v325, 0
      %v364 = vsel %vm332, %v326, 0
      %v367 = vsel %vm332, %v327, 0
      %v370 = vsel %vm332, %v328, 0
      %v373 = vsel %vm332, %v329, 0
      %v376 = vsel %vm332, %v330, 0
      %v379 = vsel %vm332, %v331, 0
      %vm381 = vcmask 1041408
      %v383 = vsel %vm381, %v251, 0
      %385 = vmatprep.subr.bf16.mxu0 0
      %386 = vmatpush1.bf16.msra.mxu0 0
      %387 = vmatprep.subr.bf16.mxu0 0
      %388 = vmatpush1.bf16.msra.mxu0 0
      %389 = vmatprep.subr.bf16.mxu0 0
      %390 = vmatpush1.bf16.msra.mxu0 0
      %391 = vmatprep.subr.bf16.mxu0 0
      %392 = vmatpush1.bf16.msra.mxu0 0
      %393 = vmatprep.subr.bf16.mxu0 0
      %394 = vmatpush1.bf16.msra.mxu0 0
      %395 = vmatprep.subr.bf16.mxu0 0
      %396 = vmatpush1.bf16.msra.mxu0 0
      %397 = vmatprep.subr.bf16.mxu0 0
      %398 = vmatpush1.bf16.msra.mxu0 0
      %399 = vmatprep.subr.bf16.mxu0 0
      %400 = vmatpush1.bf16.msra.mxu0 %v383
      %401 = vmatprep.subr.bf16.mxu0 0
      %402 = vmatpush2.bf16.msra.mxu0 0
      %403 = vmatprep.subr.bf16.mxu0 0
      %404 = vmatpush2.bf16.msra.mxu0 0
      %405 = vmatprep.subr.bf16.mxu0 0
      %406 = vmatpush2.bf16.msra.mxu0 0
      %407 = vmatprep.subr.bf16.mxu0 0
      %408 = vmatpush2.bf16.msra.mxu0 0
      %409 = vmatprep.subr.bf16.mxu0 0
      %410 = vmatpush2.bf16.msra.mxu0 0
      %411 = vmatprep.subr.bf16.mxu0 0
      %412 = vmatpush2.bf16.msra.mxu0 0
      %413 = vmatprep.subr.bf16.mxu0 0
      %414 = vmatpush2.bf16.msra.mxu0 0
      %415 = vmatprep.subr.bf16.mxu0 0
      %416 = vmatpush2.bf16.msra.mxu0 0
      %417 = vmatprep.mubr.bf16.mxu0 0
      %418 = vmatmul.mubr.bf16.gmra.mxu0 %v334
      %v419 = vpop.f32.mrf.mxu0
      %v420 = vadd.f32 0.0, %v419
      %v421 = vpop.f32.mrf.mxu0
      %v422 = vpop.f32.mrf.mxu0
      %v423 = vadd.f32 0.0, %v422
      %v424 = vpop.f32.mrf.mxu0
      %425 = vmatprep.mubr.bf16.mxu0 0
      %426 = vmatmul.mubr.bf16.gmra.mxu0 %v337
      %v427 = vpop.f32.mrf.mxu0
      %v428 = vadd.f32 0.0, %v427
      %v429 = vpop.f32.mrf.mxu0
      %v430 = vpop.f32.mrf.mxu0
      %v431 = vadd.f32 0.0, %v430
      %v432 = vpop.f32.mrf.mxu0
      %433 = vmatprep.mubr.bf16.mxu0 0
      %434 = vmatmul.mubr.bf16.gmra.mxu0 %v340
      %v435 = vpop.f32.mrf.mxu0
      %v436 = vadd.f32 0.0, %v435
      %v437 = vpop.f32.mrf.mxu0
      %v438 = vpop.f32.mrf.mxu0
      %v439 = vadd.f32 0.0, %v438
      %v440 = vpop.f32.mrf.mxu0
      %441 = vmatprep.mubr.bf16.mxu0 0
      %442 = vmatmul.mubr.bf16.gmra.mxu0 %v343
      %v443 = vpop.f32.mrf.mxu0
      %v444 = vadd.f32 0.0, %v443
      %v445 = vpop.f32.mrf.mxu0
      %v446 = vpop.f32.mrf.mxu0
      %v447 = vadd.f32 0.0, %v446
      %v448 = vpop.f32.mrf.mxu0
      %449 = vmatprep.mubr.bf16.mxu0 0
      %450 = vmatmul.mubr.bf16.gmra.mxu0 %v346
      %v451 = vpop.f32.mrf.mxu0
      %v452 = vadd.f32 0.0, %v451
      %v453 = vpop.f32.mrf.mxu0
      %v454 = vpop.f32.mrf.mxu0
      %v455 = vadd.f32 0.0, %v454
      %v456 = vpop.f32.mrf.mxu0
      %457 = vmatprep.mubr.bf16.mxu0 0
      %458 = vmatmul.mubr.bf16.gmra.mxu0 %v349
      %v459 = vpop.f32.mrf.mxu0
      %v460 = vadd.f32 0.0, %v459
      %v461 = vpop.f32.mrf.mxu0
      %v462 = vpop.f32.mrf.mxu0
      %v463 = vadd.f32 0.0, %v462
      %v464 = vpop.f32.mrf.mxu0
      %465 = vmatprep.mubr.bf16.mxu0 0
      %466 = vmatmul.mubr.bf16.gmra.mxu0 %v352
      %v467 = vpop.f32.mrf.mxu0
      %v468 = vadd.f32 0.0, %v467
      %v469 = vpop.f32.mrf.mxu0
      %v470 = vpop.f32.mrf.mxu0
      %v471 = vadd.f32 0.0, %v470
      %v472 = vpop.f32.mrf.mxu0
      %473 = vmatprep.mubr.bf16.mxu0 0
      %474 = vmatmul.mubr.bf16.gmra.mxu0 %v355
      %v475 = vpop.f32.mrf.mxu0
      %v476 = vadd.f32 0.0, %v475
      %v477 = vpop.f32.mrf.mxu0
      %v478 = vpop.f32.mrf.mxu0
      %v479 = vadd.f32 0.0, %v478
      %v480 = vpop.f32.mrf.mxu0
      %481 = vmatprep.mubr.bf16.mxu0 0
      %482 = vmatmul.mubr.bf16.gmra.mxu0 %v358
      %v483 = vpop.f32.mrf.mxu0
      %v484 = vadd.f32 0.0, %v483
      %v485 = vpop.f32.mrf.mxu0
      %v486 = vpop.f32.mrf.mxu0
      %v487 = vadd.f32 0.0, %v486
      %v488 = vpop.f32.mrf.mxu0
      %489 = vmatprep.mubr.bf16.mxu0 0
      %490 = vmatmul.mubr.bf16.gmra.mxu0 %v361
      %v491 = vpop.f32.mrf.mxu0
      %v492 = vadd.f32 0.0, %v491
      %v493 = vpop.f32.mrf.mxu0
      %v494 = vpop.f32.mrf.mxu0
      %v495 = vadd.f32 0.0, %v494
      %v496 = vpop.f32.mrf.mxu0
      %497 = vmatprep.mubr.bf16.mxu0 0
      %498 = vmatmul.mubr.bf16.gmra.mxu0 %v364
      %v499 = vpop.f32.mrf.mxu0
      %v500 = vadd.f32 0.0, %v499
      %v501 = vpop.f32.mrf.mxu0
      %v502 = vpop.f32.mrf.mxu0
      %v503 = vadd.f32 0.0, %v502
      %v504 = vpop.f32.mrf.mxu0
      %505 = vmatprep.mubr.bf16.mxu0 0
      %506 = vmatmul.mubr.bf16.gmra.mxu0 %v367
      %v507 = vpop.f32.mrf.mxu0
      %v508 = vadd.f32 0.0, %v507
      %v509 = vpop.f32.mrf.mxu0
      %v510 = vpop.f32.mrf.mxu0
      %v511 = vadd.f32 0.0, %v510
      %v512 = vpop.f32.mrf.mxu0
      %513 = vmatprep.mubr.bf16.mxu0 0
      %514 = vmatmul.mubr.bf16.gmra.mxu0 %v370
      %v515 = vpop.f32.mrf.mxu0
      %v516 = vadd.f32 0.0, %v515
      %v517 = vpop.f32.mrf.mxu0
      %v518 = vpop.f32.mrf.mxu0
      %v519 = vadd.f32 0.0, %v518
      %v520 = vpop.f32.mrf.mxu0
      %521 = vmatprep.mubr.bf16.mxu0 0
      %522 = vmatmul.mubr.bf16.gmra.mxu0 %v373
      %v523 = vpop.f32.mrf.mxu0
      %v524 = vadd.f32 0.0, %v523
      %v525 = vpop.f32.mrf.mxu0
      %v526 = vpop.f32.mrf.mxu0
      %v527 = vadd.f32 0.0, %v526
      %v528 = vpop.f32.mrf.mxu0
      %529 = vmatprep.mubr.bf16.mxu0 0
      %530 = vmatmul.mubr.bf16.gmra.mxu0 %v376
      %v531 = vpop.f32.mrf.mxu0
      %v532 = vadd.f32 0.0, %v531
      %v533 = vpop.f32.mrf.mxu0
      %v534 = vpop.f32.mrf.mxu0
      %v535 = vadd.f32 0.0, %v534
      %v536 = vpop.f32.mrf.mxu0
      %537 = vmatprep.mubr.bf16.mxu0 0
      %538 = vmatmul.mubr.bf16.gmra.mxu0 %v379
      %v539 = vpop.f32.mrf.mxu0
      %v540 = vadd.f32 0.0, %v539
      %v541 = vpop.f32.mrf.mxu0
      %v542 = vpop.f32.mrf.mxu0
      %v543 = vadd.f32 0.0, %v542
      %v544 = vpop.f32.mrf.mxu0
      %545 = vdwg.mxu0
      %vm546 = vcmask 64512
      %547 = vst.msk [vmem:[%s210] sm:$0xff] %vm546, %v420
      %548 = vst.msk [vmem:[%s210 + $0x8] sm:$0xff] %vm546, %v423
      %549 = vst.msk [vmem:[%s210 + $0x10] sm:$0xff] %vm546, %v428
      %550 = vst.msk [vmem:[%s210 + $0x18] sm:$0xff] %vm546, %v431
      %551 = vst.msk [vmem:[%s210 + $0x20] sm:$0xff] %vm546, %v436
      %552 = vst.msk [vmem:[%s210 + $0x28] sm:$0xff] %vm546, %v439
      %553 = vst.msk [vmem:[%s210 + $0x30] sm:$0xff] %vm546, %v444
      %554 = vst.msk [vmem:[%s210 + $0x38] sm:$0xff] %vm546, %v447
      %555 = vst.msk [vmem:[%s210 + $0x40] sm:$0xff] %vm546, %v452
      %556 = vst.msk [vmem:[%s210 + $0x48] sm:$0xff] %vm546, %v455
      %557 = vst.msk [vmem:[%s210 + $0x50] sm:$0xff] %vm546, %v460
      %558 = vst.msk [vmem:[%s210 + $0x58] sm:$0xff] %vm546, %v463
      %559 = vst.msk [vmem:[%s210 + $0x60] sm:$0xff] %vm546, %v468
      %560 = vst.msk [vmem:[%s210 + $0x68] sm:$0xff] %vm546, %v471
      %561 = vst.msk [vmem:[%s210 + $0x70] sm:$0xff] %vm546, %v476
      %562 = vst.msk [vmem:[%s210 + $0x78] sm:$0xff] %vm546, %v479
      %563 = vst.msk [vmem:[%s210 + $0x80] sm:$0xff] %vm546, %v484
      %564 = vst.msk [vmem:[%s210 + $0x88] sm:$0xff] %vm546, %v487
      %565 = vst.msk [vmem:[%s210 + $0x90] sm:$0xff] %vm546, %v492
      %566 = vst.msk [vmem:[%s210 + $0x98] sm:$0xff] %vm546, %v495
      %567 = vst.msk [vmem:[%s210 + $0xa0] sm:$0xff] %vm546, %v500
      %568 = vst.msk [vmem:[%s210 + $0xa8] sm:$0xff] %vm546, %v503
      %569 = vst.msk [vmem:[%s210 + $0xb0] sm:$0xff] %vm546, %v508
      %570 = vst.msk [vmem:[%s210 + $0xb8] sm:$0xff] %vm546, %v511
      %571 = vst.msk [vmem:[%s210 + $0xc0] sm:$0xff] %vm546, %v516
      %572 = vst.msk [vmem:[%s210 + $0xc8] sm:$0xff] %vm546, %v519
      %573 = vst.msk [vmem:[%s210 + $0xd0] sm:$0xff] %vm546, %v524
      %574 = vst.msk [vmem:[%s210 + $0xd8] sm:$0xff] %vm546, %v527
      %575 = vst.msk [vmem:[%s210 + $0xe0] sm:$0xff] %vm546, %v532
      %576 = vst.msk [vmem:[%s210 + $0xe8] sm:$0xff] %vm546, %v535
      %577 = vst.msk [vmem:[%s210 + $0xf0] sm:$0xff] %vm546, %v540
      %578 = vst.msk [vmem:[%s210 + $0xf8] sm:$0xff] %vm546, %v543
      %v579 = vsel %vm546, %v420, 0.0
      %v580 = vsel %vm546, %v423, 0.0
      %v581 = vadd.f32 %v579, %v580
      %v582 = vsel %vm546, %v428, 0.0
      %v583 = vadd.f32 %v581, %v582
      %v584 = vsel %vm546, %v431, 0.0
      %v585 = vadd.f32 %v583, %v584
      %v586 = vsel %vm546, %v436, 0.0
      %v587 = vadd.f32 %v585, %v586
      %v588 = vsel %vm546, %v439, 0.0
      %v589 = vadd.f32 %v587, %v588
      %v590 = vsel %vm546, %v444, 0.0
      %v591 = vadd.f32 %v589, %v590
      %v592 = vsel %vm546, %v447, 0.0
      %v593 = vadd.f32 %v591, %v592
      %v594 = vsel %vm546, %v452, 0.0
      %v595 = vadd.f32 %v593, %v594
      %v596 = vsel %vm546, %v455, 0.0
      %v597 = vadd.f32 %v595, %v596
      %v598 = vsel %vm546, %v460, 0.0
      %v599 = vadd.f32 %v597, %v598
      %v600 = vsel %vm546, %v463, 0.0
      %v601 = vadd.f32 %v599, %v600
      %v602 = vsel %vm546, %v468, 0.0
      %v603 = vadd.f32 %v601, %v602
      %v604 = vsel %vm546, %v471, 0.0
      %v605 = vadd.f32 %v603, %v604
      %v606 = vsel %vm546, %v476, 0.0
      %v607 = vadd.f32 %v605, %v606
      %v608 = vsel %vm546, %v479, 0.0
      %v609 = vadd.f32 %v607, %v608
      %v610 = vsel %vm546, %v484, 0.0
      %v611 = vadd.f32 %v609, %v610
      %v612 = vsel %vm546, %v487, 0.0
      %v613 = vadd.f32 %v611, %v612
      %v614 = vsel %vm546, %v492, 0.0
      %v615 = vadd.f32 %v613, %v614
      %v616 = vsel %vm546, %v495, 0.0
      %v617 = vadd.f32 %v615, %v616
      %v618 = vsel %vm546, %v500, 0.0
      %v619 = vadd.f32 %v617, %v618
      %v620 = vsel %vm546, %v503, 0.0
      %v621 = vadd.f32 %v619, %v620
      %v622 = vsel %vm546, %v508, 0.0
      %v623 = vadd.f32 %v621, %v622
      %v624 = vsel %vm546, %v511, 0.0
      %v625 = vadd.f32 %v623, %v624
      %v626 = vsel %vm546, %v516, 0.0
      %v627 = vadd.f32 %v625, %v626
      %v628 = vsel %vm546, %v519, 0.0
      %v629 = vadd.f32 %v627, %v628
      %v630 = vsel %vm546, %v524, 0.0
      %v631 = vadd.f32 %v629, %v630
      %v632 = vsel %vm546, %v527, 0.0
      %v633 = vadd.f32 %v631, %v632
      %v634 = vsel %vm546, %v532, 0.0
      %v635 = vadd.f32 %v633, %v634
      %v636 = vsel %vm546, %v535, 0.0
      %v637 = vadd.f32 %v635, %v636
      %v638 = vsel %vm546, %v540, 0.0
      %v639 = vadd.f32 %v637, %v638
      %v640 = vsel %vm546, %v543, 0.0
      %v641 = vadd.f32 %v639, %v640
      %v642 = vrot.slane %v641, 4
      %v643 = vadd.f32 %v641, %v642
      %v644 = vrot.slane %v643, 2
      %v645 = vadd.f32 %v643, %v644
      %v646 = vrot.slane %v645, 1
      %v647 = vadd.f32 %v645, %v646
      %vm648 = vcmask 57344
      %649 = vst.msk [vmem:[%s214] sm:$0x1] %vm648, %v647
      %v650 = vmul.f32 %v420, %v420
      %v651 = vmul.f32 %v423, %v423
      %v652 = vmul.f32 %v428, %v428
      %v653 = vmul.f32 %v431, %v431
      %v654 = vmul.f32 %v436, %v436
      %v655 = vmul.f32 %v439, %v439
      %v656 = vmul.f32 %v444, %v444
      %v657 = vmul.f32 %v447, %v447
      %v658 = vmul.f32 %v452, %v452
      %v659 = vmul.f32 %v455, %v455
      %v660 = vmul.f32 %v460, %v460
      %v661 = vmul.f32 %v463, %v463
      %v662 = vmul.f32 %v468, %v468
      %v663 = vmul.f32 %v471, %v471
      %v664 = vmul.f32 %v476, %v476
      %v665 = vmul.f32 %v479, %v479
      %v666 = vmul.f32 %v484, %v484
      %v667 = vmul.f32 %v487, %v487
      %v668 = vmul.f32 %v492, %v492
      %v669 = vmul.f32 %v495, %v495
      %v670 = vmul.f32 %v500, %v500
      %v671 = vmul.f32 %v503, %v503
      %v672 = vmul.f32 %v508, %v508
      %v673 = vmul.f32 %v511, %v511
      %v674 = vmul.f32 %v516, %v516
      %v675 = vmul.f32 %v519, %v519
      %v676 = vmul.f32 %v524, %v524
      %v677 = vmul.f32 %v527, %v527
      %v678 = vmul.f32 %v532, %v532
      %v679 = vmul.f32 %v535, %v535
      %v680 = vmul.f32 %v540, %v540
      %v681 = vmul.f32 %v543, %v543
      %v682 = vsel %vm546, %v650, 0.0
      %v683 = vsel %vm546, %v651, 0.0
      %v684 = vadd.f32 %v682, %v683
      %v685 = vsel %vm546, %v652, 0.0
      %v686 = vadd.f32 %v684, %v685
      %v687 = vsel %vm546, %v653, 0.0
      %v688 = vadd.f32 %v686, %v687
      %v689 = vsel %vm546, %v654, 0.0
      %v690 = vadd.f32 %v688, %v689
      %v691 = vsel %vm546, %v655, 0.0
      %v692 = vadd.f32 %v690, %v691
      %v693 = vsel %vm546, %v656, 0.0
      %v694 = vadd.f32 %v692, %v693
      %v695 = vsel %vm546, %v657, 0.0
      %v696 = vadd.f32 %v694, %v695
      %v697 = vsel %vm546, %v658, 0.0
      %v698 = vadd.f32 %v696, %v697
      %v699 = vsel %vm546, %v659, 0.0
      %v700 = vadd.f32 %v698, %v699
      %v701 = vsel %vm546, %v660, 0.0
      %v702 = vadd.f32 %v700, %v701
      %v703 = vsel %vm546, %v661, 0.0
      %v704 = vadd.f32 %v702, %v703
      %v705 = vsel %vm546, %v662, 0.0
      %v706 = vadd.f32 %v704, %v705
      %v707 = vsel %vm546, %v663, 0.0
      %v708 = vadd.f32 %v706, %v707
      %v709 = vsel %vm546, %v664, 0.0
      %v710 = vadd.f32 %v708, %v709
      %v711 = vsel %vm546, %v665, 0.0
      %v712 = vadd.f32 %v710, %v711
      %v713 = vsel %vm546, %v666, 0.0
      %v714 = vadd.f32 %v712, %v713
      %v715 = vsel %vm546, %v667, 0.0
      %v716 = vadd.f32 %v714, %v715
      %v717 = vsel %vm546, %v668, 0.0
      %v718 = vadd.f32 %v716, %v717
      %v719 = vsel %vm546, %v669, 0.0
      %v720 = vadd.f32 %v718, %v719
      %v721 = vsel %vm546, %v670, 0.0
      %v722 = vadd.f32 %v720, %v721
      %v723 = vsel %vm546, %v671, 0.0
      %v724 = vadd.f32 %v722, %v723
      %v725 = vsel %vm546, %v672, 0.0
      %v726 = vadd.f32 %v724, %v725
      %v727 = vsel %vm546, %v673, 0.0
      %v728 = vadd.f32 %v726, %v727
      %v729 = vsel %vm546, %v674, 0.0
      %v730 = vadd.f32 %v728, %v729
      %v731 = vsel %vm546, %v675, 0.0
      %v732 = vadd.f32 %v730, %v731
      %v733 = vsel %vm546, %v676, 0.0
      %v734 = vadd.f32 %v732, %v733
      %v735 = vsel %vm546, %v677, 0.0
      %v736 = vadd.f32 %v734, %v735
      %v737 = vsel %vm546, %v678, 0.0
      %v738 = vadd.f32 %v736, %v737
      %v739 = vsel %vm546, %v679, 0.0
      %v740 = vadd.f32 %v738, %v739
      %v741 = vsel %vm546, %v680, 0.0
      %v742 = vadd.f32 %v740, %v741
      %v743 = vsel %vm546, %v681, 0.0
      %v744 = vadd.f32 %v742, %v743
      %v745 = vrot.slane %v744, 4
      %v746 = vadd.f32 %v744, %v745
      %v747 = vrot.slane %v746, 2
      %v748 = vadd.f32 %v746, %v747
      %v749 = vrot.slane %v748, 1
      %v750 = vadd.f32 %v748, %v749
      %751 = vst.msk [vmem:[%s217] sm:$0x1] %vm648, %v750
      %s752 = smul.u32 32, %s16
      %p753 = scmp.lt.s32.totalorder %s752, 63
      %s754 = scalar_select %p753, %s752, 63
      %s755 = smul.addr %s754, 8
      %s756 = scalar_lea.vmem %s2, %s755
      %p757 = scmp.lt.s32.totalorder %s16, 1
      %s758 = scalar_select %p757, %s16, 1
      %s759 = scalar_lea.vmem %s3, %s758
      %p760 = scmp.lt.s32.totalorder %s16, 1
      %s761 = scalar_select %p760, %s16, 1
      %s762 = scalar_lea.vmem %s4, %s761
      // Predicated region
      $region29: #{fire_module_forward.3} parent=27 // pred_check
        %p763 = pneg %p81
      $region30: #{fire_module_forward.3} parent=27 // pred_check_branch
        %765 = sbr.rel (%p763) target = $region32
      $region31: #{fire_module_forward.3} parent=27 // pred_region
        %s766 = smul.u32 32, %s16
      $region32: #{fire_module_forward.3} parent=27 // pred_fallthru
        _
      // Predicated region
      $region33: #{fire_module_forward.3} parent=27 // pred_check
        %p767 = pneg %p107
      $region34: #{fire_module_forward.3} parent=27 // pred_check_branch
        %769 = sbr.rel (%p767) target = $region36
      $region35: #{fire_module_forward.3} parent=27 // pred_region
        _
      $region36: #{fire_module_forward.3} parent=27 // pred_fallthru
        _
      // Predicated region
      $region37: #{fire_module_forward.3} parent=27 // pred_check
        %p770 = pneg %p133
      $region38: #{fire_module_forward.3} parent=27 // pred_check_branch
        %772 = sbr.rel (%p770) target = $region40
      $region39: #{fire_module_forward.3} parent=27 // pred_region
        _
      $region40: #{fire_module_forward.3} parent=27 // pred_fallthru
        _
    $region28: #{fire_module_forward.3} parent=5 // pred_fallthru
      _
    %p773 = scmp.le.s32.totalorder 2, %s11
    // Predicated region
    $region41: #{fire_module_forward.3} parent=5 // pred_check
      %p774 = pneg %p773
    $region42: #{fire_module_forward.3} parent=5 // pred_check_branch
      %776 = sbr.rel (%p774) target = $region44
    $region43: #{fire_module_forward.3} parent=5 // pred_region
      %s777 = ssub.s32 %s11, 2
      // Predicated region
      $region45: #{fire_module_forward.3} parent=43 // pred_check
        %p778 = pneg %p87
      $region46: #{fire_module_forward.3} parent=43 // pred_check_branch
        %780 = sbr.rel (%p778) target = $region48
      $region47: #{fire_module_forward.3} parent=43 // pred_region
        %s781 = smul.u32 32, %s17
        %p782 = scmp.lt.s32.totalorder %s781, 63
        %s783 = scalar_select %p782, %s781, 63
        %s784 = smul.addr %s783, 8
        %s785 = scalar_lea.vmem %s2, %s784
      $region48: #{fire_module_forward.3} parent=43 // pred_fallthru
        _
      // Predicated region
      $region49: #{fire_module_forward.3} parent=43 // pred_check
        %p786 = pneg %p113
      $region50: #{fire_module_forward.3} parent=43 // pred_check_branch
        %788 = sbr.rel (%p786) target = $region52
      $region51: #{fire_module_forward.3} parent=43 // pred_region
        %p789 = scmp.lt.s32.totalorder %s17, 1
        %s790 = scalar_select %p789, %s17, 1
        %s791 = scalar_lea.vmem %s3, %s790
      $region52: #{fire_module_forward.3} parent=43 // pred_fallthru
        _
      // Predicated region
      $region53: #{fire_module_forward.3} parent=43 // pred_check
        %p792 = pneg %p139
      $region54: #{fire_module_forward.3} parent=43 // pred_check_branch
        %794 = sbr.rel (%p792) target = $region56
      $region55: #{fire_module_forward.3} parent=43 // pred_region
        %p795 = scmp.lt.s32.totalorder %s17, 1
        %s796 = scalar_select %p795, %s17, 1
        %s797 = scalar_lea.vmem %s4, %s796
      $region56: #{fire_module_forward.3} parent=43 // pred_fallthru
        _
    $region44: #{fire_module_forward.3} parent=5 // pred_fallthru
      _
  $region6: #{fire_module_forward.3} parent=0 // loop_footer
    %s15 = sadd.s32 1, %s11
  $region7: #{fire_module_forward.3} parent=0 // loop_footer_branch
    %10 = sbr.rel target = $region3
  $region8: #{fire_module_forward.3} parent=0 // loop_exit
    _

// kernel: fire_module_forward.4
$region0: #{fire_module_forward.4}
  #allocation0 [shape = 'u32[]', space=smem, size = 0x4, offset = 0x4, fixed_abs, tag = 'smem constant byte address 0x4 - core index']
  #allocation1 [shape = 'u32[144,128]{1,0:T(1,128)}', space=vmem, size = 0x12000, scoped, tag = 'internal scratch']
  %s0 = inlined_call_operand.vmem [shape: f32[2,18,18,8], index: 0, kind: input, shape index: {}]
  %s1 = inlined_call_operand.vmem [shape: f32[1,1,8], index: 1, kind: input, shape index: {}]
  %s2 = inlined_call_operand.vmem [shape: f32[1,1,8], index: 2, kind: input, shape index: {}]
  %s3 = inlined_call_operand.vmem [shape: bf16[8,16], index: 3, kind: input, shape index: {}]
  %s4 = inlined_call_operand.vmem [shape: bf16[9,8,16], index: 4, kind: input, shape index: {}]
  %s5 = inlined_call_operand.vmem [shape: f32[2,256,32], index: 5, kind: output, shape index: {0}]
  %s6 = inlined_call_operand.vmem [shape: f32[2,1,32], index: 6, kind: output, shape index: {1}]
  %s7 = inlined_call_operand.vmem [shape: f32[2,1,32], index: 7, kind: output, shape index: {2}]
  %8 = xla_tuple %s5, %s6, %s7
  %s9 = sld [smem:[#allocation0]]
  $region69: #{fire_module_forward.4} parent=0
    _
  %s11 = ssub.s32 1, %s9
  %s12 = scalar_select 0, %s11, %s9
  loop: start=0, step=1, limit=4
  $region2: #{fire_module_forward.4} parent=0 // loop_pre_header
    _
  $region3: #{fire_module_forward.4} parent=0 // loop_header
    %s14 = sphi 0, %s18
    %p15 = scmp.ge.s32.totalorder %s14, 4
    %s24 = sphi 0, %s26
    %s27 = sphi 0, %s24
    %s28 = sphi 0, %s27
    %s44 = sphi 0, %s28
    %s48 = sphi 0, %s48
    %s50 = sphi 0, %s48
    %s51 = sphi 0, %s50
    %s65 = sphi 0, %s51
    %s69 = sphi 0, %s69
    %s71 = sphi 0, %s69
    %s72 = sphi 0, %s71
    %s86 = sphi 0, %s72
    %s90 = sphi 0, %s90
    %s92 = sphi 0, %s90
    %s93 = sphi 0, %s92
    %s107 = sphi 0, %s93
    %s111 = sphi 0, %s111
    %s113 = sphi 0, %s111
    %s114 = sphi 0, %s113
    %s128 = sphi 0, %s114
    %s134 = sphi 0, %s136
    %s137 = sphi 0, %s134
    %s138 = sphi 0, %s137
    %s154 = sphi 0, %s138
    %s160 = sphi 0, %s162
    %s163 = sphi 0, %s160
    %s164 = sphi 0, %s163
    %s180 = sphi 0, %s164
    %s186 = sphi 0, %s188
    %s189 = sphi 0, %s186
    %s190 = sphi 0, %s189
    %s206 = sphi 0, %s190
  $region4: #{fire_module_forward.4} parent=0 // loop_header_branch
    %17 = sbr.rel (%p15) target = $region8
  $region5: #{fire_module_forward.4} parent=0 // loop_body
    %s19 = ssub.s32 %s14, 1
    %s20 = ssub.s32 %s14, 2
    %s21 = sadd.s32 %s14, 1
    %s22 = ssub.s32 %s14, %s21
    %p23 = scmp.eq.s32.totalorder %s22, 0
    %s25 = sadd.s32 %s24, 1
    %s26 = scalar_select %p23, %s24, %s25
    %p29 = pneg %p23
    %p30 = scmp.eq.s32.totalorder %s14, 1
    %p31 = por %p29, %p30
    %p32 = scmp.ne.s32.totalorder %s24, %s27
    %p33 = scmp.eq.s32.totalorder %s14, 0
    %p34 = por %p32, %p33
    %p35 = scmp.ne.s32.totalorder %s24, %s27
    %p36 = scmp.eq.s32.totalorder %s19, 1
    %p37 = por %p35, %p36
    %p38 = scmp.ne.s32.totalorder %s27, %s28
    %p39 = scmp.eq.s32.totalorder %s19, 0
    %p40 = por %p38, %p39
    %p41 = scmp.ne.s32.totalorder %s27, %s28
    %p42 = scmp.eq.s32.totalorder %s20, 1
    %p43 = por %p41, %p42
    %p45 = scmp.ne.s32.totalorder %s28, %s44
    %p46 = scmp.eq.s32.totalorder %s20, 0
    %p47 = por %p45, %p46
    %s49 = sadd.s32 %s48, 1
    %p52 = scmp.eq.s32.totalorder %s14, 1
    %p53 = scmp.ne.s32.totalorder %s48, %s50
    %p54 = scmp.eq.s32.totalorder %s14, 0
    %p55 = por %p53, %p54
    %p56 = scmp.ne.s32.totalorder %s48, %s50
    %p57 = scmp.eq.s32.totalorder %s19, 1
    %p58 = por %p56, %p57
    %p59 = scmp.ne.s32.totalorder %s50, %s51
    %p60 = scmp.eq.s32.totalorder %s19, 0
    %p61 = por %p59, %p60
    %p62 = scmp.ne.s32.totalorder %s50, %s51
    %p63 = scmp.eq.s32.totalorder %s20, 1
    %p64 = por %p62, %p63
    %p66 = scmp.ne.s32.totalorder %s51, %s65
    %p67 = scmp.eq.s32.totalorder %s20, 0
    %p68 = por %p66, %p67
    %s70 = sadd.s32 %s69, 1
    %p73 = scmp.eq.s32.totalorder %s14, 1
    %p74 = scmp.ne.s32.totalorder %s69, %s71
    %p75 = scmp.eq.s32.totalorder %s14, 0
    %p76 = por %p74, %p75
    %p77 = scmp.ne.s32.totalorder %s69, %s71
    %p78 = scmp.eq.s32.totalorder %s19, 1
    %p79 = por %p77, %p78
    %p80 = scmp.ne.s32.totalorder %s71, %s72
    %p81 = scmp.eq.s32.totalorder %s19, 0
    %p82 = por %p80, %p81
    %p83 = scmp.ne.s32.totalorder %s71, %s72
    %p84 = scmp.eq.s32.totalorder %s20, 1
    %p85 = por %p83, %p84
    %p87 = scmp.ne.s32.totalorder %s72, %s86
    %p88 = scmp.eq.s32.totalorder %s20, 0
    %p89 = por %p87, %p88
    %s91 = sadd.s32 %s90, 1
    %p94 = scmp.eq.s32.totalorder %s14, 1
    %p95 = scmp.ne.s32.totalorder %s90, %s92
    %p96 = scmp.eq.s32.totalorder %s14, 0
    %p97 = por %p95, %p96
    %p98 = scmp.ne.s32.totalorder %s90, %s92
    %p99 = scmp.eq.s32.totalorder %s19, 1
    %p100 = por %p98, %p99
    %p101 = scmp.ne.s32.totalorder %s92, %s93
    %p102 = scmp.eq.s32.totalorder %s19, 0
    %p103 = por %p101, %p102
    %p104 = scmp.ne.s32.totalorder %s92, %s93
    %p105 = scmp.eq.s32.totalorder %s20, 1
    %p106 = por %p104, %p105
    %p108 = scmp.ne.s32.totalorder %s93, %s107
    %p109 = scmp.eq.s32.totalorder %s20, 0
    %p110 = por %p108, %p109
    %s112 = sadd.s32 %s111, 1
    %p115 = scmp.eq.s32.totalorder %s14, 1
    %p116 = scmp.ne.s32.totalorder %s111, %s113
    %p117 = scmp.eq.s32.totalorder %s14, 0
    %p118 = por %p116, %p117
    %p119 = scmp.ne.s32.totalorder %s111, %s113
    %p120 = scmp.eq.s32.totalorder %s19, 1
    %p121 = por %p119, %p120
    %p122 = scmp.ne.s32.totalorder %s113, %s114
    %p123 = scmp.eq.s32.totalorder %s19, 0
    %p124 = por %p122, %p123
    %p125 = scmp.ne.s32.totalorder %s113, %s114
    %p126 = scmp.eq.s32.totalorder %s20, 1
    %p127 = por %p125, %p126
    %p129 = scmp.ne.s32.totalorder %s114, %s128
    %p130 = scmp.eq.s32.totalorder %s20, 0
    %p131 = por %p129, %p130
    %s132 = ssub.s32 %s14, %s21
    %p133 = scmp.eq.s32.totalorder %s132, 0
    %s135 = sadd.s32 %s134, 1
    %s136 = scalar_select %p133, %s134, %s135
    %p139 = pneg %p133
    %p140 = scmp.eq.s32.totalorder %s14, 1
    %p141 = por %p139, %p140
    %p142 = scmp.ne.s32.totalorder %s134, %s137
    %p143 = scmp.eq.s32.totalorder %s14, 0
    %p144 = por %p142, %p143
    %p145 = scmp.ne.s32.totalorder %s134, %s137
    %p146 = scmp.eq.s32.totalorder %s19, 1
    %p147 = por %p145, %p146
    %p148 = scmp.ne.s32.totalorder %s137, %s138
    %p149 = scmp.eq.s32.totalorder %s19, 0
    %p150 = por %p148, %p149
    %p151 = scmp.ne.s32.totalorder %s137, %s138
    %p152 = scmp.eq.s32.totalorder %s20, 1
    %p153 = por %p151, %p152
    %p155 = scmp.ne.s32.totalorder %s138, %s154
    %p156 = scmp.eq.s32.totalorder %s20, 0
    %p157 = por %p155, %p156
    %s158 = ssub.s32 %s14, %s21
    %p159 = scmp.eq.s32.totalorder %s158, 0
    %s161 = sadd.s32 %s160, 1
    %s162 = scalar_select %p159, %s160, %s161
    %p165 = pneg %p159
    %p166 = scmp.eq.s32.totalorder %s14, 1
    %p167 = por %p165, %p166
    %p168 = scmp.ne.s32.totalorder %s160, %s163
    %p169 = scmp.eq.s32.totalorder %s14, 0
    %p170 = por %p168, %p169
    %p171 = scmp.ne.s32.totalorder %s160, %s163
    %p172 = scmp.eq.s32.totalorder %s19, 1
    %p173 = por %p171, %p172
    %p174 = scmp.ne.s32.totalorder %s163, %s164
    %p175 = scmp.eq.s32.totalorder %s19, 0
    %p176 = por %p174, %p175
    %p177 = scmp.ne.s32.totalorder %s163, %s164
    %p178 = scmp.eq.s32.totalorder %s20, 1
    %p179 = por %p177, %p178
    %p181 = scmp.ne.s32.totalorder %s164, %s180
    %p182 = scmp.eq.s32.totalorder %s20, 0
    %p183 = por %p181, %p182
    %s184 = ssub.s32 %s14, %s21
    %p185 = scmp.eq.s32.totalorder %s184, 0
    %s187 = sadd.s32 %s186, 1
    %s188 = scalar_select %p185, %s186, %s187
    %p191 = pneg %p185
    %p192 = scmp.eq.s32.totalorder %s14, 1
    %p193 = por %p191, %p192
    %p194 = scmp.ne.s32.totalorder %s186, %s189
    %p195 = scmp.eq.s32.totalorder %s14, 0
    %p196 = por %p194, %p195
    %p197 = scmp.ne.s32.totalorder %s186, %s189
    %p198 = scmp.eq.s32.totalorder %s19, 1
    %p199 = por %p197, %p198
    %p200 = scmp.ne.s32.totalorder %s189, %s190
    %p201 = scmp.eq.s32.totalorder %s19, 0
    %p202 = por %p200, %p201
    %p203 = scmp.ne.s32.totalorder %s189, %s190
    %p204 = scmp.eq.s32.totalorder %s20, 1
    %p205 = por %p203, %p204
    %p207 = scmp.ne.s32.totalorder %s190, %s206
    %p208 = scmp.eq.s32.totalorder %s20, 0
    %p209 = por %p207, %p208
    %p210 = scmp.le.s32.totalorder 1, %s14
    %p211 = scmp.lt.s32.totalorder %s14, 3
    %p212 = pnand %p210, %p211
    %p213 = pneg %p212
    // Predicated region
    $region9: #{fire_module_forward.4} parent=5 // pred_check
      _
    $region10: #{fire_module_forward.4} parent=5 // pred_check_branch
      %215 = sbr.rel (%p212) target = $region12
    $region11: #{fire_module_forward.4} parent=5 // pred_region
      %s216 = ssub.s32 %s14, 1
      // Predicated region
      $region13: #{fire_module_forward.4} parent=11 // pred_check
        %p217 = pneg %p61
      $region14: #{fire_module_forward.4} parent=11 // pred_check_branch
        %219 = sbr.rel (%p217) target = $region16
      $region15: #{fire_module_forward.4} parent=11 // pred_region
        _
      $region16: #{fire_module_forward.4} parent=11 // pred_fallthru
        _
      // Predicated region
      $region17: #{fire_module_forward.4} parent=11 // pred_check
        %p220 = pneg %p82
      $region18: #{fire_module_forward.4} parent=11 // pred_check_branch
        %222 = sbr.rel (%p220) target = $region20
      $region19: #{fire_module_forward.4} parent=11 // pred_region
        _
      $region20: #{fire_module_forward.4} parent=11 // pred_fallthru
        _
      // Predicated region
      $region21: #{fire_module_forward.4} parent=11 // pred_check
        %p223 = pneg %p103
      $region22: #{fire_module_forward.4} parent=11 // pred_check_branch
        %225 = sbr.rel (%p223) target = $region24
      $region23: #{fire_module_forward.4} parent=11 // pred_region
        _
      $region24: #{fire_module_forward.4} parent=11 // pred_fallthru
        _
      // Predicated region
      $region25: #{fire_module_forward.4} parent=11 // pred_check
        %p226 = pneg %p124
      $region26: #{fire_module_forward.4} parent=11 // pred_check_branch
        %228 = sbr.rel (%p226) target = $region28
      $region27: #{fire_module_forward.4} parent=11 // pred_region
        _
      $region28: #{fire_module_forward.4} parent=11 // pred_fallthru
        _
    $region12: #{fire_module_forward.4} parent=5 // pred_fallthru
      _
    %p229 = scmp.lt.s32.totalorder %s14, 2
    // Predicated region
    $region29: #{fire_module_forward.4} parent=5 // pred_check
      %p230 = pneg %p229
    $region30: #{fire_module_forward.4} parent=5 // pred_check_branch
      %232 = sbr.rel (%p230) target = $region32
    $region31: #{fire_module_forward.4} parent=5 // pred_region
      // Predicated region
      $region33: #{fire_module_forward.4} parent=31 // pred_check
        %p233 = pneg %p34
      $region34: #{fire_module_forward.4} parent=31 // pred_check_branch
        %235 = sbr.rel (%p233) target = $region36
      $region35: #{fire_module_forward.4} parent=31 // pred_region
        %p236 = scmp.lt.s32.totalorder %s14, 1
        %s237 = scalar_select %p236, %s14, 1
        %s238 = smul.addr %s237, 54
        %s239 = smul.addr %s238, 8
        %s240 = scalar_lea.vmem %s0, %s239
      $region36: #{fire_module_forward.4} parent=31 // pred_fallthru
        _
    $region32: #{fire_module_forward.4} parent=5 // pred_fallthru
      _
    %p241 = scmp.le.s32.totalorder 1, %s14
    %p242 = scmp.lt.s32.totalorder %s14, 3
    %p243 = pnand %p241, %p242
    %p244 = pneg %p243
    // Predicated region
    $region37: #{fire_module_forward.4} parent=5 // pred_check
      _
    $region38: #{fire_module_forward.4} parent=5 // pred_check_branch
      %246 = sbr.rel (%p243) target = $region40
    $region39: #{fire_module_forward.4} parent=5 // pred_region
      %s247 = ssub.s32 %s14, 1
      %p248 = scmp.lt.s32.totalorder %s19, 1
      %s249 = scalar_select %p248, %s19, 1
      %s250 = smul.addr %s249, 54
      %s251 = smul.addr %s250, 8
      %s252 = scalar_lea.vmem %s0, %s251
      %p253 = pneg %p40
      %p254 = pneg %p37
      %p255 = pneg %p61
      %p256 = pneg %p58
      %p257 = pneg %p82
      %p258 = pneg %p79
      %p259 = pneg %p103
      %p260 = pneg %p100
      %p261 = pneg %p124
      %p262 = pneg %p121
      %p263 = pneg %p150
      %p264 = pneg %p147
      %p265 = scmp.lt.s32.totalorder %s19, 1
      %s266 = scalar_select %p265, %s19, 1
      %s267 = smul.addr %s266, 32
      %s268 = smul.addr %s267, 8
      %s269 = scalar_lea.vmem %s5, %s268
      %p270 = pneg %p176
      %p271 = pneg %p173
      %p272 = scmp.lt.s32.totalorder %s19, 1
      %s273 = scalar_select %p272, %s19, 1
      %s274 = scalar_lea.vmem %s6, %s273
      %p275 = pneg %p202
      %p276 = pneg %p199
      %p277 = scmp.lt.s32.totalorder %s19, 1
      %s278 = scalar_select %p277, %s19, 1
      %s279 = scalar_lea.vmem %s7, %s278
      %p280 = scmp.lt.s32.totalorder %s19, 1
      %s281 = scalar_select %p280, %s19, 1
      %s282 = smul.addr %s281, 54
      %s283 = smul.addr %s282, 8
      %s284 = scalar_lea.vmem %s0, %s283
      %p285 = scmp.lt.s32.totalorder %s19, 1
      %s286 = scalar_select %p285, %s19, 1
      %s287 = smul.addr %s286, 32
      %s288 = smul.addr %s287, 8
      %s289 = scalar_lea.vmem %s5, %s288
      %p290 = scmp.lt.s32.totalorder %s19, 1
      %s291 = scalar_select %p290, %s19, 1
      %s292 = scalar_lea.vmem %s6, %s291
      %p293 = scmp.lt.s32.totalorder %s19, 1
      %s294 = scalar_select %p293, %s19, 1
      %s295 = scalar_lea.vmem %s7, %s294
      %v297 = vld [vmem:[%s284] sm:$0xff]
      %v298 = vld [vmem:[%s284 + $0x8] sm:$0xff]
      %v299 = vld [vmem:[%s284 + $0x10] sm:$0x3]
      %v300 = vld [vmem:[%s284 + $0x18] sm:$0xff]
      %v301 = vld [vmem:[%s284 + $0x20] sm:$0xff]
      %v302 = vld [vmem:[%s284 + $0x28] sm:$0x3]
      %v303 = vld [vmem:[%s284 + $0x30] sm:$0xff]
      %v304 = vld [vmem:[%s284 + $0x38] sm:$0xff]
      %v305 = vld [vmem:[%s284 + $0x40] sm:$0x3]
      %v306 = vld [vmem:[%s284 + $0x48] sm:$0xff]
      %v307 = vld [vmem:[%s284 + $0x50] sm:$0xff]
      %v308 = vld [vmem:[%s284 + $0x58] sm:$0x3]
      %v309 = vld [vmem:[%s284 + $0x60] sm:$0xff]
      %v310 = vld [vmem:[%s284 + $0x68] sm:$0xff]
      %v311 = vld [vmem:[%s284 + $0x70] sm:$0x3]
      %v312 = vld [vmem:[%s284 + $0x78] sm:$0xff]
      %v313 = vld [vmem:[%s284 + $0x80] sm:$0xff]
      %v314 = vld [vmem:[%s284 + $0x88] sm:$0x3]
      %v315 = vld [vmem:[%s284 + $0x90] sm:$0xff]
      %v316 = vld [vmem:[%s284 + $0x98] sm:$0xff]
      %v317 = vld [vmem:[%s284 + $0xa0] sm:$0x3]
      %v318 = vld [vmem:[%s284 + $0xa8] sm:$0xff]
      %v319 = vld [vmem:[%s284 + $0xb0] sm:$0xff]
      %v320 = vld [vmem:[%s284 + $0xb8] sm:$0x3]
      %v321 = vld [vmem:[%s284 + $0xc0] sm:$0xff]
      %v322 = vld [vmem:[%s284 + $0xc8] sm:$0xff]
      %v323 = vld [vmem:[%s284 + $0xd0] sm:$0x3]
      %v324 = vld [vmem:[%s284 + $0xd8] sm:$0xff]
      %v325 = vld [vmem:[%s284 + $0xe0] sm:$0xff]
      %v326 = vld [vmem:[%s284 + $0xe8] sm:$0x3]
      %v327 = vld [vmem:[%s284 + $0xf0] sm:$0xff]
      %v328 = vld [vmem:[%s284 + $0xf8] sm:$0xff]
      %v329 = vld [vmem:[%s284 + $0x100] sm:$0x3]
      %v330 = vld [vmem:[%s284 + $0x108] sm:$0xff]
      %v331 = vld [vmem:[%s284 + $0x110] sm:$0xff]
      %v332 = vld [vmem:[%s284 + $0x118] sm:$0x3]
      %v333 = vld [vmem:[%s284 + $0x120] sm:$0xff]
      %v334 = vld [vmem:[%s284 + $0x128] sm:$0xff]
      %v335 = vld [vmem:[%s284 + $0x130] sm:$0x3]
      %v336 = vld [vmem:[%s284 + $0x138] sm:$0xff]
      %v337 = vld [vmem:[%s284 + $0x140] sm:$0xff]
      %v338 = vld [vmem:[%s284 + $0x148] sm:$0x3]
      %v339 = vld [vmem:[%s284 + $0x150] sm:$0xff]
      %v340 = vld [vmem:[%s284 + $0x158] sm:$0xff]
      %v341 = vld [vmem:[%s284 + $0x160] sm:$0x3]
      %v342 = vld [vmem:[%s284 + $0x168] sm:$0xff]
      %v343 = vld [vmem:[%s284 + $0x170] sm:$0xff]
      %v344 = vld [vmem:[%s284 + $0x178] sm:$0x3]
      %v345 = vld [vmem:[%s284 + $0x180] sm:$0xff]
      %v346 = vld [vmem:[%s284 + $0x188] sm:$0xff]
      %v347 = vld [vmem:[%s284 + $0x190] sm:$0x3]
      %v348 = vld [vmem:[%s284 + $0x198] sm:$0xff]
      %v349 = vld [vmem:[%s284 + $0x1a0] sm:$0xff]
      %v350 = vld [vmem:[%s284 + $0x1a8] sm:$0x3]
      %v351 = vlaneseq
      %v352 = vshrl.u32 %v351, 7
      %v353 = vadd.s32 %v352, 8
      %v354 = vadd.s32 %v352, 16
      %vm355 = vcmp.ge.s32.totalorder %v352, 1
      %vm356 = vcmp.ge.s32.totalorder %v353, 1
      %vm357 = vcmp.ge.s32.totalorder %v354, 1
      %vm358 = vmand 0, %vm355
      %vm359 = vmand 0, %vm356
      %vm360 = vmand 0, %vm357
      %vm361 = vmand 1, %vm355
      %vm362 = vmand 1, %vm356
      %vm363 = vmand 1, %vm357
      %vm364 = vcmp.le.s32.totalorder %v352, 16
      %vm365 = vcmp.le.s32.totalorder %v353, 16
      %vm366 = vcmp.le.s32.totalorder %v354, 16
      %vm367 = vmand %vm358, %vm364
      %vm368 = vmand %vm359, %vm365
      %vm369 = vmand %vm360, %vm366
      %vm370 = vmand %vm361, %vm364
      %vm371 = vmand %vm362, %vm365
      %vm372 = vmand %vm363, %vm366
      %v373 = vld [vmem:[%s1] sm:$0x1]
      %v375 = vlaneseq
      %v376 = vshrl.u32 %v375, 7
      %v377 = vsub.s32 0, %v376
      %v378 = vrot.slane %v373, %v377
      %v380 = vmul.f32 %v297, %v378
      %v381 = vmul.f32 %v298, %v378
      %v382 = vmul.f32 %v299, %v378
      %v383 = vmul.f32 %v300, %v378
      %v384 = vmul.f32 %v301, %v378
      %v385 = vmul.f32 %v302, %v378
      %v386 = vmul.f32 %v303, %v378
      %v387 = vmul.f32 %v304, %v378
      %v388 = vmul.f32 %v305, %v378
      %v389 = vmul.f32 %v306, %v378
      %v390 = vmul.f32 %v307, %v378
      %v391 = vmul.f32 %v308, %v378
      %v392 = vmul.f32 %v309, %v378
      %v393 = vmul.f32 %v310, %v378
      %v394 = vmul.f32 %v311, %v378
      %v395 = vmul.f32 %v312, %v378
      %v396 = vmul.f32 %v313, %v378
      %v397 = vmul.f32 %v314, %v378
      %v398 = vmul.f32 %v315, %v378
      %v399 = vmul.f32 %v316, %v378
      %v400 = vmul.f32 %v317, %v378
      %v401 = vmul.f32 %v318, %v378
      %v402 = vmul.f32 %v319, %v378
      %v403 = vmul.f32 %v320, %v378
      %v404 = vmul.f32 %v321, %v378
      %v405 = vmul.f32 %v322, %v378
      %v406 = vmul.f32 %v323, %v378
      %v407 = vmul.f32 %v324, %v378
      %v408 = vmul.f32 %v325, %v378
      %v409 = vmul.f32 %v326, %v378
      %v410 = vmul.f32 %v327, %v378
      %v411 = vmul.f32 %v328, %v378
      %v412 = vmul.f32 %v329, %v378
      %v413 = vmul.f32 %v330, %v378
      %v414 = vmul.f32 %v331, %v378
      %v415 = vmul.f32 %v332, %v378
      %v416 = vmul.f32 %v333, %v378
      %v417 = vmul.f32 %v334, %v378
      %v418 = vmul.f32 %v335, %v378
      %v419 = vmul.f32 %v336, %v378
      %v420 = vmul.f32 %v337, %v378
      %v421 = vmul.f32 %v338, %v378
      %v422 = vmul.f32 %v339, %v378
      %v423 = vmul.f32 %v340, %v378
      %v424 = vmul.f32 %v341, %v378
      %v425 = vmul.f32 %v342, %v378
      %v426 = vmul.f32 %v343, %v378
      %v427 = vmul.f32 %v344, %v378
      %v428 = vmul.f32 %v345, %v378
      %v429 = vmul.f32 %v346, %v378
      %v430 = vmul.f32 %v347, %v378
      %v431 = vmul.f32 %v348, %v378
      %v432 = vmul.f32 %v349, %v378
      %v433 = vmul.f32 %v350, %v378
      %v434 = vld [vmem:[%s2] sm:$0x1]
      %v436 = vlaneseq
      %v437 = vshrl.u32 %v436, 7
      %v438 = vsub.s32 0, %v437
      %v439 = vrot.slane %v434, %v438
      %v441 = vadd.f32 %v380, %v439
      %v442 = vadd.f32 %v381, %v439
      %v443 = vadd.f32 %v382, %v439
      %v444 = vadd.f32 %v383, %v439
      %v445 = vadd.f32 %v384, %v439
      %v446 = vadd.f32 %v385, %v439
      %v447 = vadd.f32 %v386, %v439
      %v448 = vadd.f32 %v387, %v439
      %v449 = vadd.f32 %v388, %v439
      %v450 = vadd.f32 %v389, %v439
      %v451 = vadd.f32 %v390, %v439
      %v452 = vadd.f32 %v391, %v439
      %v453 = vadd.f32 %v392, %v439
      %v454 = vadd.f32 %v393, %v439
      %v455 = vadd.f32 %v394, %v439
      %v456 = vadd.f32 %v395, %v439
      %v457 = vadd.f32 %v396, %v439
      %v458 = vadd.f32 %v397, %v439
      %v459 = vadd.f32 %v398, %v439
      %v460 = vadd.f32 %v399, %v439
      %v461 = vadd.f32 %v400, %v439
      %v462 = vadd.f32 %v401, %v439
      %v463 = vadd.f32 %v402, %v439
      %v464 = vadd.f32 %v403, %v439
      %v465 = vadd.f32 %v404, %v439
      %v466 = vadd.f32 %v405, %v439
      %v467 = vadd.f32 %v406, %v439
      %v468 = vadd.f32 %v407, %v439
      %v469 = vadd.f32 %v408, %v439
      %v470 = vadd.f32 %v409, %v439
      %v471 = vadd.f32 %v410, %v439
      %v472 = vadd.f32 %v411, %v439
      %v473 = vadd.f32 %v412, %v439
      %v474 = vadd.f32 %v413, %v439
      %v475 = vadd.f32 %v414, %v439
      %v476 = vadd.f32 %v415, %v439
      %v477 = vadd.f32 %v416, %v439
      %v478 = vadd.f32 %v417, %v439
      %v479 = vadd.f32 %v418, %v439
      %v480 = vadd.f32 %v419, %v439
      %v481 = vadd.f32 %v420, %v439
      %v482 = vadd.f32 %v421, %v439
      %v483 = vadd.f32 %v422, %v439
      %v484 = vadd.f32 %v423, %v439
      %v485 = vadd.f32 %v424, %v439
      %v486 = vadd.f32 %v425, %v439
      %v487 = vadd.f32 %v426, %v439
      %v488 = vadd.f32 %v427, %v439
      %v489 = vadd.f32 %v428, %v439
      %v490 = vadd.f32 %v429, %v439
      %v491 = vadd.f32 %v430, %v439
      %v492 = vadd.f32 %v431, %v439
      %v493 = vadd.f32 %v432, %v439
      %v494 = vadd.f32 %v433, %v439
      %v495 = vmax.f32 %v441, 0.0
      %v496 = vmax.f32 %v442, 0.0
      %v497 = vmax.f32 %v443, 0.0
      %v498 = vmax.f32 %v444, 0.0
      %v499 = vmax.f32 %v445, 0.0
      %v500 = vmax.f32 %v446, 0.0
      %v501 = vmax.f32 %v447, 0.0
      %v502 = vmax.f32 %v448, 0.0
      %v503 = vmax.f32 %v449, 0.0
      %v504 = vmax.f32 %v450, 0.0
      %v505 = vmax.f32 %v451, 0.0
      %v506 = vmax.f32 %v452, 0.0
      %v507 = vmax.f32 %v453, 0.0
      %v508 = vmax.f32 %v454, 0.0
      %v509 = vmax.f32 %v455, 0.0
      %v510 = vmax.f32 %v456, 0.0
      %v511 = vmax.f32 %v457, 0.0
      %v512 = vmax.f32 %v458, 0.0
      %v513 = vmax.f32 %v459, 0.0
      %v514 = vmax.f32 %v460, 0.0
      %v515 = vmax.f32 %v461, 0.0
      %v516 = vmax.f32 %v462, 0.0
      %v517 = vmax.f32 %v463, 0.0
      %v518 = vmax.f32 %v464, 0.0
      %v519 = vmax.f32 %v465, 0.0
      %v520 = vmax.f32 %v466, 0.0
      %v521 = vmax.f32 %v467, 0.0
      %v522 = vmax.f32 %v468, 0.0
      %v523 = vmax.f32 %v469, 0.0
      %v524 = vmax.f32 %v470, 0.0
      %v525 = vmax.f32 %v471, 0.0
      %v526 = vmax.f32 %v472, 0.0
      %v527 = vmax.f32 %v473, 0.0
      %v528 = vmax.f32 %v474, 0.0
      %v529 = vmax.f32 %v475, 0.0
      %v530 = vmax.f32 %v476, 0.0
      %v531 = vmax.f32 %v477, 0.0
      %v532 = vmax.f32 %v478, 0.0
      %v533 = vmax.f32 %v479, 0.0
      %v534 = vmax.f32 %v480, 0.0
      %v535 = vmax.f32 %v481, 0.0
      %v536 = vmax.f32 %v482, 0.0
      %v537 = vmax.f32 %v483, 0.0
      %v538 = vmax.f32 %v484, 0.0
      %v539 = vmax.f32 %v485, 0.0
      %v540 = vmax.f32 %v486, 0.0
      %v541 = vmax.f32 %v487, 0.0
      %v542 = vmax.f32 %v488, 0.0
      %v543 = vmax.f32 %v489, 0.0
      %v544 = vmax.f32 %v490, 0.0
      %v545 = vmax.f32 %v491, 0.0
      %v546 = vmax.f32 %v492, 0.0
      %v547 = vmax.f32 %v493, 0.0
      %v548 = vmax.f32 %v494, 0.0
      %v549 = vsel %vm367, 1, 0
      %v550 = vsel %vm368, 1, 0
      %v551 = vsel %vm369, 1, 0
      %v552 = vsel %vm370, 1, 0
      %v553 = vsel %vm371, 1, 0
      %v554 = vsel %vm372, 1, 0
      %vm555 = vcmp.eq.s32.totalorder %v549, 1
      %vm556 = vcmp.eq.s32.totalorder %v550, 1
      %vm557 = vcmp.eq.s32.totalorder %v551, 1
      %vm558 = vcmp.eq.s32.totalorder %v552, 1
      %vm559 = vcmp.eq.s32.totalorder %v553, 1
      %vm560 = vcmp.eq.s32.totalorder %v554, 1
      %v561 = vsel %vm555, %v495, 0.0
      %v562 = vsel %vm556, %v496, 0.0
      %v563 = vsel %vm557, %v497, 0.0
      %v564 = vsel %vm558, %v498, 0.0
      %v565 = vsel %vm559, %v499, 0.0
      %v566 = vsel %vm560, %v500, 0.0
      %v567 = vsel %vm558, %v501, 0.0
      %v568 = vsel %vm559, %v502, 0.0
      %v569 = vsel %vm560, %v503, 0.0
      %v570 = vsel %vm558, %v504, 0.0
      %v571 = vsel %vm559, %v505, 0.0
      %v572 = vsel %vm560, %v506, 0.0
      %v573 = vsel %vm558, %v507, 0.0
      %v574 = vsel %vm559, %v508, 0.0
      %v575 = vsel %vm560, %v509, 0.0
      %v576 = vsel %vm558, %v510, 0.0
      %v577 = vsel %vm559, %v511, 0.0
      %v578 = vsel %vm560, %v512, 0.0
      %v579 = vsel %vm558, %v513, 0.0
      %v580 = vsel %vm559, %v514, 0.0
      %v581 = vsel %vm560, %v515, 0.0
      %v582 = vsel %vm558, %v516, 0.0
      %v583 = vsel %vm559, %v517, 0.0
      %v584 = vsel %vm560, %v518, 0.0
      %v585 = vsel %vm558, %v519, 0.0
      %v586 = vsel %vm559, %v520, 0.0
      %v587 = vsel %vm560, %v521, 0.0
      %v588 = vsel %vm558, %v522, 0.0
      %v589 = vsel %vm559, %v523, 0.0
      %v590 = vsel %vm560, %v524, 0.0
      %v591 = vsel %vm558, %v525, 0.0
      %v592 = vsel %vm559, %v526, 0.0
      %v593 = vsel %vm560, %v527, 0.0
      %v594 = vsel %vm558, %v528, 0.0
      %v595 = vsel %vm559, %v529, 0.0
      %v596 = vsel %vm560, %v530, 0.0
      %v597 = vsel %vm558, %v531, 0.0
      %v598 = vsel %vm559, %v532, 0.0
      %v599 = vsel %vm560, %v533, 0.0
      %v600 = vsel %vm558, %v534, 0.0
      %v601 = vsel %vm559, %v535, 0.0
      %v602 = vsel %vm560, %v536, 0.0
      %v603 = vsel %vm558, %v537, 0.0
      %v604 = vsel %vm559, %v538, 0.0
      %v605 = vsel %vm560, %v539, 0.0
      %v606 = vsel %vm558, %v540, 0.0
      %v607 = vsel %vm559, %v541, 0.0
      %v608 = vsel %vm560, %v542, 0.0
      %v609 = vsel %vm558, %v543, 0.0
      %v610 = vsel %vm559, %v544, 0.0
      %v611 = vsel %vm560, %v545, 0.0
      %v612 = vsel %vm555, %v546, 0.0
      %v613 = vsel %vm556, %v547, 0.0
      %v614 = vsel %vm557, %v548, 0.0
      %v615 = vpack.c.bf16 %v562, %v561
      %v616 = vpack.c.bf16 %v563, %v563
      %v617 = vpack.c.bf16 %v565, %v564
      %v618 = vpack.c.bf16 %v566, %v566
      %v619 = vpack.c.bf16 %v568, %v567
      %v620 = vpack.c.bf16 %v569, %v569
      %v621 = vpack.c.bf16 %v571, %v570
      %v622 = vpack.c.bf16 %v572, %v572
      %v623 = vpack.c.bf16 %v574, %v573
      %v624 = vpack.c.bf16 %v575, %v575
      %v625 = vpack.c.bf16 %v577, %v576
      %v626 = vpack.c.bf16 %v578, %v578
      %v627 = vpack.c.bf16 %v580, %v579
      %v628 = vpack.c.bf16 %v581, %v581
      %v629 = vpack.c.bf16 %v583, %v582
      %v630 = vpack.c.bf16 %v584, %v584
      %v631 = vpack.c.bf16 %v586, %v585
      %v632 = vpack.c.bf16 %v587, %v587
      %v633 = vpack.c.bf16 %v589, %v588
      %v634 = vpack.c.bf16 %v590, %v590
      %v635 = vpack.c.bf16 %v592, %v591
      %v636 = vpack.c.bf16 %v593, %v593
      %v637 = vpack.c.bf16 %v595, %v594
      %v638 = vpack.c.bf16 %v596, %v596
      %v639 = vpack.c.bf16 %v598, %v597
      %v640 = vpack.c.bf16 %v599, %v599
      %v641 = vpack.c.bf16 %v601, %v600
      %v642 = vpack.c.bf16 %v602, %v602
      %v643 = vpack.c.bf16 %v604, %v603
      %v644 = vpack.c.bf16 %v605, %v605
      %v645 = vpack.c.bf16 %v607, %v606
      %v646 = vpack.c.bf16 %v608, %v608
      %v647 = vpack.c.bf16 %v610, %v609
      %v648 = vpack.c.bf16 %v611, %v611
      %v649 = vpack.c.bf16 %v613, %v612
      %v650 = vpack.c.bf16 %v614, %v614
      %v651 = vld [vmem:[%s4] sm:$0xf]
      %vm652 = vsmask.f32 7424
      %v654 = vshrl.u32 %v615, 16
      %v656 = vshll.u32 %v615, 16
      %v658 = vrot.slane %v656, 1
      %v659 = vor.u32 %v654, %v658
      %v661 = vshll.u32 %v616, 16
      %v663 = vrot.slane %v661, 1
      %v664 = vsel %vm652, %v659, %v663
      %v666 = vshrl.u32 %v617, 16
      %v668 = vshll.u32 %v617, 16
      %v670 = vrot.slane %v668, 1
      %v671 = vor.u32 %v666, %v670
      %v673 = vshll.u32 %v618, 16
      %v675 = vrot.slane %v673, 1
      %v676 = vsel %vm652, %v671, %v675
      %v678 = vshrl.u32 %v619, 16
      %v680 = vshll.u32 %v619, 16
      %v682 = vrot.slane %v680, 1
      %v683 = vor.u32 %v678, %v682
      %v685 = vshll.u32 %v620, 16
      %v687 = vrot.slane %v685, 1
      %v688 = vsel %vm652, %v683, %v687
      %v690 = vshrl.u32 %v621, 16
      %v692 = vshll.u32 %v621, 16
      %v694 = vrot.slane %v692, 1
      %v695 = vor.u32 %v690, %v694
      %v697 = vshll.u32 %v622, 16
      %v699 = vrot.slane %v697, 1
      %v700 = vsel %vm652, %v695, %v699
      %v702 = vshrl.u32 %v623, 16
      %v704 = vshll.u32 %v623, 16
      %v706 = vrot.slane %v704, 1
      %v707 = vor.u32 %v702, %v706
      %v709 = vshll.u32 %v624, 16
      %v711 = vrot.slane %v709, 1
      %v712 = vsel %vm652, %v707, %v711
      %v714 = vshrl.u32 %v625, 16
      %v716 = vshll.u32 %v625, 16
      %v718 = vrot.slane %v716, 1
      %v719 = vor.u32 %v714, %v718
      %v721 = vshll.u32 %v626, 16
      %v723 = vrot.slane %v721, 1
      %v724 = vsel %vm652, %v719, %v723
      %v726 = vshrl.u32 %v627, 16
      %v728 = vshll.u32 %v627, 16
      %v730 = vrot.slane %v728, 1
      %v731 = vor.u32 %v726, %v730
      %v733 = vshll.u32 %v628, 16
      %v735 = vrot.slane %v733, 1
      %v736 = vsel %vm652, %v731, %v735
      %v738 = vshrl.u32 %v629, 16
      %v740 = vshll.u32 %v629, 16
      %v742 = vrot.slane %v740, 1
      %v743 = vor.u32 %v738, %v742
      %v745 = vshll.u32 %v630, 16
      %v747 = vrot.slane %v745, 1
      %v748 = vsel %vm652, %v743, %v747
      %v750 = vshrl.u32 %v631, 16
      %v752 = vshll.u32 %v631, 16
      %v754 = vrot.slane %v752, 1
      %v755 = vor.u32 %v750, %v754
      %v757 = vshll.u32 %v632, 16
      %v759 = vrot.slane %v757, 1
      %v760 = vsel %vm652, %v755, %v759
      %v762 = vshrl.u32 %v633, 16
      %v764 = vshll.u32 %v633, 16
      %v766 = vrot.slane %v764, 1
      %v767 = vor.u32 %v762, %v766
      %v769 = vshll.u32 %v634, 16
      %v771 = vrot.slane %v769, 1
      %v772 = vsel %vm652, %v767, %v771
      %v774 = vshrl.u32 %v635, 16
      %v776 = vshll.u32 %v635, 16
      %v778 = vrot.slane %v776, 1
      %v779 = vor.u32 %v774, %v778
      %v781 = vshll.u32 %v636, 16
      %v783 = vrot.slane %v781, 1
      %v784 = vsel %vm652, %v779, %v783
      %v786 = vshrl.u32 %v637, 16
      %v788 = vshll.u32 %v637, 16
      %v790 = vrot.slane %v788, 1
      %v791 = vor.u32 %v786, %v790
      %v793 = vshll.u32 %v638, 16
      %v795 = vrot.slane %v793, 1
      %v796 = vsel %vm652, %v791, %v795
      %v798 = vshrl.u32 %v639, 16
      %v800 = vshll.u32 %v639, 16
      %v802 = vrot.slane %v800, 1
      %v803 = vor.u32 %v798, %v802
      %v805 = vshll.u32 %v640, 16
      %v807 = vrot.slane %v805, 1
      %v808 = vsel %vm652, %v803, %v807
      %v810 = vshrl.u32 %v641, 16
      %v812 = vshll.u32 %v641, 16
      %v814 = vrot.slane %v812, 1
      %v815 = vor.u32 %v810, %v814
      %v817 = vshll.u32 %v642, 16
      %v819 = vrot.slane %v817, 1
      %v820 = vsel %vm652, %v815, %v819
      %v822 = vshrl.u32 %v643, 16
      %v824 = vshll.u32 %v643, 16
      %v826 = vrot.slane %v824, 1
      %v827 = vor.u32 %v822, %v826
      %v829 = vshll.u32 %v644, 16
      %v831 = vrot.slane %v829, 1
      %v832 = vsel %vm652, %v827, %v831
      %v834 = vshrl.u32 %v645, 16
      %v836 = vshll.u32 %v645, 16
      %v838 = vrot.slane %v836, 1
      %v839 = vor.u32 %v834, %v838
      %v841 = vshll.u32 %v646, 16
      %v843 = vrot.slane %v841, 1
      %v844 = vsel %vm652, %v839, %v843
      %s845 = scalar_lea.vmem %s4, 4
      %v846 = vld [vmem:[%s845] sm:$0xf]
      %vm847 = vcmask 64512
      %v849 = vsel %vm847, %v664, 0
      %v852 = vsel %vm847, %v676, 0
      %v855 = vsel %vm847, %v688, 0
      %v858 = vsel %vm847, %v700, 0
      %v861 = vsel %vm847, %v712, 0
      %v864 = vsel %vm847, %v724, 0
      %v867 = vsel %vm847, %v736, 0
      %v870 = vsel %vm847, %v748, 0
      %v873 = vsel %vm847, %v760, 0
      %v876 = vsel %vm847, %v772, 0
      %v879 = vsel %vm847, %v784, 0
      %v882 = vsel %vm847, %v796, 0
      %v885 = vsel %vm847, %v808, 0
      %v888 = vsel %vm847, %v820, 0
      %v891 = vsel %vm847, %v832, 0
      %v894 = vsel %vm847, %v844, 0
      %vm896 = vcmask 1043456
      %v898 = vsel %vm896, %v846, 0
      %900 = vmatprep.subr.bf16.mxu0 0
      %901 = vmatpush1.bf16.msra.mxu0 0
      %902 = vmatprep.subr.bf16.mxu0 0
      %903 = vmatpush1.bf16.msra.mxu0 0
      %904 = vmatprep.subr.bf16.mxu0 0
      %905 = vmatpush1.bf16.msra.mxu0 0
      %906 = vmatprep.subr.bf16.mxu0 0
      %907 = vmatpush1.bf16.msra.mxu0 0
      %908 = vmatprep.subr.bf16.mxu0 0
      %909 = vmatpush1.bf16.msra.mxu0 0
      %910 = vmatprep.subr.bf16.mxu0 0
      %911 = vmatpush1.bf16.msra.mxu0 0
      %912 = vmatprep.subr.bf16.mxu0 0
      %913 = vmatpush1.bf16.msra.mxu0 0
      %914 = vmatprep.subr.bf16.mxu0 0
      %915 = vmatpush1.bf16.msra.mxu0 %v898
      %916 = vmatprep.subr.bf16.mxu0 0
      %917 = vmatpush2.bf16.msra.mxu0 0
      %918 = vmatprep.subr.bf16.mxu0 0
      %919 = vmatpush2.bf16.msra.mxu0 0
      %920 = vmatprep.subr.bf16.mxu0 0
      %921 = vmatpush2.bf16.msra.mxu0 0
      %922 = vmatprep.subr.bf16.mxu0 0
      %923 = vmatpush2.bf16.msra.mxu0 0
      %924 = vmatprep.subr.bf16.mxu0 0
      %925 = vmatpush2.bf16.msra.mxu0 0
      %926 = vmatprep.subr.bf16.mxu0 0
      %927 = vmatpush2.bf16.msra.mxu0 0
      %928 = vmatprep.subr.bf16.mxu0 0
      %929 = vmatpush2.bf16.msra.mxu0 0
      %930 = vmatprep.subr.bf16.mxu0 0
      %931 = vmatpush2.bf16.msra.mxu0 0
      %932 = vmatprep.mubr.bf16.mxu0 0
      %933 = vmatmul.mubr.bf16.gmra.mxu0 %v849
      %v934 = vpop.f32.mrf.mxu0
      %v935 = vadd.f32 0.0, %v934
      %v936 = vpop.f32.mrf.mxu0
      %v937 = vpop.f32.mrf.mxu0
      %v938 = vadd.f32 0.0, %v937
      %v939 = vpop.f32.mrf.mxu0
      %940 = vmatprep.mubr.bf16.mxu0 0
      %941 = vmatmul.mubr.bf16.gmra.mxu0 %v852
      %v942 = vpop.f32.mrf.mxu0
      %v943 = vadd.f32 0.0, %v942
      %v944 = vpop.f32.mrf.mxu0
      %v945 = vpop.f32.mrf.mxu0
      %v946 = vadd.f32 0.0, %v945
      %v947 = vpop.f32.mrf.mxu0
      %948 = vmatprep.mubr.bf16.mxu0 0
      %949 = vmatmul.mubr.bf16.gmra.mxu0 %v855
      %v950 = vpop.f32.mrf.mxu0
      %v951 = vadd.f32 0.0, %v950
      %v952 = vpop.f32.mrf.mxu0
      %v953 = vpop.f32.mrf.mxu0
      %v954 = vadd.f32 0.0, %v953
      %v955 = vpop.f32.mrf.mxu0
      %956 = vmatprep.mubr.bf16.mxu0 0
      %957 = vmatmul.mubr.bf16.gmra.mxu0 %v858
      %v958 = vpop.f32.mrf.mxu0
      %v959 = vadd.f32 0.0, %v958
      %v960 = vpop.f32.mrf.mxu0
      %v961 = vpop.f32.mrf.mxu0
      %v962 = vadd.f32 0.0, %v961
      %v963 = vpop.f32.mrf.mxu0
      %964 = vmatprep.mubr.bf16.mxu0 0
      %965 = vmatmul.mubr.bf16.gmra.mxu0 %v861
      %v966 = vpop.f32.mrf.mxu0
      %v967 = vadd.f32 0.0, %v966
      %v968 = vpop.f32.mrf.mxu0
      %v969 = vpop.f32.mrf.mxu0
      %v970 = vadd.f32 0.0, %v969
      %v971 = vpop.f32.mrf.mxu0
      %972 = vmatprep.mubr.bf16.mxu0 0
      %973 = vmatmul.mubr.bf16.gmra.mxu0 %v864
      %v974 = vpop.f32.mrf.mxu0
      %v975 = vadd.f32 0.0, %v974
      %v976 = vpop.f32.mrf.mxu0
      %v977 = vpop.f32.mrf.mxu0
      %v978 = vadd.f32 0.0, %v977
      %v979 = vpop.f32.mrf.mxu0
      %980 = vmatprep.mubr.bf16.mxu0 0
      %981 = vmatmul.mubr.bf16.gmra.mxu0 %v867
      %v982 = vpop.f32.mrf.mxu0
      %v983 = vadd.f32 0.0, %v982
      %v984 = vpop.f32.mrf.mxu0
      %v985 = vpop.f32.mrf.mxu0
      %v986 = vadd.f32 0.0, %v985
      %v987 = vpop.f32.mrf.mxu0
      %988 = vmatprep.mubr.bf16.mxu0 0
      %989 = vmatmul.mubr.bf16.gmra.mxu0 %v870
      %v990 = vpop.f32.mrf.mxu0
      %v991 = vadd.f32 0.0, %v990
      %v992 = vpop.f32.mrf.mxu0
      %v993 = vpop.f32.mrf.mxu0
      %v994 = vadd.f32 0.0, %v993
      %v995 = vpop.f32.mrf.mxu0
      %996 = vmatprep.mubr.bf16.mxu0 0
      %997 = vmatmul.mubr.bf16.gmra.mxu0 %v873
      %v998 = vpop.f32.mrf.mxu0
      %v999 = vadd.f32 0.0, %v998
      %v1000 = vpop.f32.mrf.mxu0
      %v1001 = vpop.f32.mrf.mxu0
      %v1002 = vadd.f32 0.0, %v1001
      %v1003 = vpop.f32.mrf.mxu0
      %1004 = vmatprep.mubr.bf16.mxu0 0
      %1005 = vmatmul.mubr.bf16.gmra.mxu0 %v876
      %v1006 = vpop.f32.mrf.mxu0
      %v1007 = vadd.f32 0.0, %v1006
      %v1008 = vpop.f32.mrf.mxu0
      %v1009 = vpop.f32.mrf.mxu0
      %v1010 = vadd.f32 0.0, %v1009
      %v1011 = vpop.f32.mrf.mxu0
      %1012 = vmatprep.mubr.bf16.mxu0 0
      %1013 = vmatmul.mubr.bf16.gmra.mxu0 %v879
      %v1014 = vpop.f32.mrf.mxu0
      %v1015 = vadd.f32 0.0, %v1014
      %v1016 = vpop.f32.mrf.mxu0
      %v1017 = vpop.f32.mrf.mxu0
      %v1018 = vadd.f32 0.0, %v1017
      %v1019 = vpop.f32.mrf.mxu0
      %1020 = vmatprep.mubr.bf16.mxu0 0
      %1021 = vmatmul.mubr.bf16.gmra.mxu0 %v882
      %v1022 = vpop.f32.mrf.mxu0
      %v1023 = vadd.f32 0.0, %v1022
      %v1024 = vpop.f32.mrf.mxu0
      %v1025 = vpop.f32.mrf.mxu0
      %v1026 = vadd.f32 0.0, %v1025
      %v1027 = vpop.f32.mrf.mxu0
      %1028 = vmatprep.mubr.bf16.mxu0 0
      %1029 = vmatmul.mubr.bf16.gmra.mxu0 %v885
      %v1030 = vpop.f32.mrf.mxu0
      %v1031 = vadd.f32 0.0, %v1030
      %v1032 = vpop.f32.mrf.mxu0
      %v1033 = vpop.f32.mrf.mxu0
      %v1034 = vadd.f32 0.0, %v1033
      %v1035 = vpop.f32.mrf.mxu0
      %1036 = vmatprep.mubr.bf16.mxu0 0
      %1037 = vmatmul.mubr.bf16.gmra.mxu0 %v888
      %v1038 = vpop.f32.mrf.mxu0
      %v1039 = vadd.f32 0.0, %v1038
      %v1040 = vpop.f32.mrf.mxu0
      %v1041 = vpop.f32.mrf.mxu0
      %v1042 = vadd.f32 0.0, %v1041
      %v1043 = vpop.f32.mrf.mxu0
      %1044 = vmatprep.mubr.bf16.mxu0 0
      %1045 = vmatmul.mubr.bf16.gmra.mxu0 %v891
      %v1046 = vpop.f32.mrf.mxu0
      %v1047 = vadd.f32 0.0, %v1046
      %v1048 = vpop.f32.mrf.mxu0
      %v1049 = vpop.f32.mrf.mxu0
      %v1050 = vadd.f32 0.0, %v1049
      %v1051 = vpop.f32.mrf.mxu0
      %1052 = vmatprep.mubr.bf16.mxu0 0
      %1053 = vmatmul.mubr.bf16.gmra.mxu0 %v894
      %v1054 = vpop.f32.mrf.mxu0
      %v1055 = vadd.f32 0.0, %v1054
      %v1056 = vpop.f32.mrf.mxu0
      %v1057 = vpop.f32.mrf.mxu0
      %v1058 = vadd.f32 0.0, %v1057
      %v1059 = vpop.f32.mrf.mxu0
      %1060 = vdwg.mxu0
      %v1061 = vsel %vm847, %v615, 0
      %v1063 = vsel %vm847, %v617, 0
      %v1065 = vsel %vm847, %v619, 0
      %v1067 = vsel %vm847, %v621, 0
      %v1069 = vsel %vm847, %v623, 0
      %v1071 = vsel %vm847, %v625, 0
      %v1073 = vsel %vm847, %v627, 0
      %v1075 = vsel %vm847, %v629, 0
      %v1077 = vsel %vm847, %v631, 0
      %v1079 = vsel %vm847, %v633, 0
      %v1081 = vsel %vm847, %v635, 0
      %v1083 = vsel %vm847, %v637, 0
      %v1085 = vsel %vm847, %v639, 0
      %v1087 = vsel %vm847, %v641, 0
      %v1089 = vsel %vm847, %v643, 0
      %v1091 = vsel %vm847, %v645, 0
      %v1094 = vsel %vm896, %v651, 0
      %1096 = vmatprep.subr.bf16.mxu0 0
      %1097 = vmatpush1.bf16.msra.mxu0 0
      %1098 = vmatprep.subr.bf16.mxu0 0
      %1099 = vmatpush1.bf16.msra.mxu0 0
      %1100 = vmatprep.subr.bf16.mxu0 0
      %1101 = vmatpush1.bf16.msra.mxu0 0
      %1102 = vmatprep.subr.bf16.mxu0 0
      %1103 = vmatpush1.bf16.msra.mxu0 0
      %1104 = vmatprep.subr.bf16.mxu0 0
      %1105 = vmatpush1.bf16.msra.mxu0 0
      %1106 = vmatprep.subr.bf16.mxu0 0
      %1107 = vmatpush1.bf16.msra.mxu0 0
      %1108 = vmatprep.subr.bf16.mxu0 0
      %1109 = vmatpush1.bf16.msra.mxu0 0
      %1110 = vmatprep.subr.bf16.mxu0 0
      %1111 = vmatpush1.bf16.msra.mxu0 %v1094
      %1112 = vmatprep.subr.bf16.mxu0 0
      %1113 = vmatpush2.bf16.msra.mxu0 0
      %1114 = vmatprep.subr.bf16.mxu0 0
      %1115 = vmatpush2.bf16.msra.mxu0 0
      %1116 = vmatprep.subr.bf16.mxu0 0
      %1117 = vmatpush2.bf16.msra.mxu0 0
      %1118 = vmatprep.subr.bf16.mxu0 0
      %1119 = vmatpush2.bf16.msra.mxu0 0
      %1120 = vmatprep.subr.bf16.mxu0 0
      %1121 = vmatpush2.bf16.msra.mxu0 0
      %1122 = vmatprep.subr.bf16.mxu0 0
      %1123 = vmatpush2.bf16.msra.mxu0 0
      %1124 = vmatprep.subr.bf16.mxu0 0
      %1125 = vmatpush2.bf16.msra.mxu0 0
      %1126 = vmatprep.subr.bf16.mxu0 0
      %1127 = vmatpush2.bf16.msra.mxu0 0
      %1128 = vmatprep.mubr.bf16.mxu0 0
      %1129 = vmatmul.mubr.bf16.gmra.mxu0 %v1061
      %v1130 = vpop.f32.mrf.mxu0
      %v1131 = vadd.f32 %v935, %v1130
      %v1132 = vpop.f32.mrf.mxu0
      %v1133 = vpop.f32.mrf.mxu0
      %v1134 = vadd.f32 %v938, %v1133
      %v1135 = vpop.f32.mrf.mxu0
      %1136 = vmatprep.mubr.bf16.mxu0 0
      %1137 = vmatmul.mubr.bf16.gmra.mxu0 %v1063
      %v1138 = vpop.f32.mrf.mxu0
      %v1139 = vadd.f32 %v943, %v1138
      %v1140 = vpop.f32.mrf.mxu0
      %v1141 = vpop.f32.mrf.mxu0
      %v1142 = vadd.f32 %v946, %v1141
      %v1143 = vpop.f32.mrf.mxu0
      %1144 = vmatprep.mubr.bf16.mxu0 0
      %1145 = vmatmul.mubr.bf16.gmra.mxu0 %v1065
      %v1146 = vpop.f32.mrf.mxu0
      %v1147 = vadd.f32 %v951, %v1146
      %v1148 = vpop.f32.mrf.mxu0
      %v1149 = vpop.f32.mrf.mxu0
      %v1150 = vadd.f32 %v954, %v1149
      %v1151 = vpop.f32.mrf.mxu0
      %1152 = vmatprep.mubr.bf16.mxu0 0
      %1153 = vmatmul.mubr.bf16.gmra.mxu0 %v1067
      %v1154 = vpop.f32.mrf.mxu0
      %v1155 = vadd.f32 %v959, %v1154
      %v1156 = vpop.f32.mrf.mxu0
      %v1157 = vpop.f32.mrf.mxu0
      %v1158 = vadd.f32 %v962, %v1157
      %v1159 = vpop.f32.mrf.mxu0
      %1160 = vmatprep.mubr.bf16.mxu0 0
      %1161 = vmatmul.mubr.bf16.gmra.mxu0 %v1069
      %v1162 = vpop.f32.mrf.mxu0
      %v1163 = vadd.f32 %v967, %v1162
      %v1164 = vpop.f32.mrf.mxu0
      %v1165 = vpop.f32.mrf.mxu0
      %v1166 = vadd.f32 %v970, %v1165
      %v1167 = vpop.f32.mrf.mxu0
      %1168 = vmatprep.mubr.bf16.mxu0 0
      %1169 = vmatmul.mubr.bf16.gmra.mxu0 %v1071
      %v1170 = vpop.f32.mrf.mxu0
      %v1171 = vadd.f32 %v975, %v1170
      %v1172 = vpop.f32.mrf.mxu0
      %v1173 = vpop.f32.mrf.mxu0
      %v1174 = vadd.f32 %v978, %v1173
      %v1175 = vpop.f32.mrf.mxu0
      %1176 = vmatprep.mubr.bf16.mxu0 0
      %1177 = vmatmul.mubr.bf16.gmra.mxu0 %v1073
      %v1178 = vpop.f32.mrf.mxu0
      %v1179 = vadd.f32 %v983, %v1178
      %v1180 = vpop.f32.mrf.mxu0
      %v1181 = vpop.f32.mrf.mxu0
      %v1182 = vadd.f32 %v986, %v1181
      %v1183 = vpop.f32.mrf.mxu0
      %1184 = vmatprep.mubr.bf16.mxu0 0
      %1185 = vmatmul.mubr.bf16.gmra.mxu0 %v1075
      %v1186 = vpop.f32.mrf.mxu0
      %v1187 = vadd.f32 %v991, %v1186
      %v1188 = vpop.f32.mrf.mxu0
      %v1189 = vpop.f32.mrf.mxu0
      %v1190 = vadd.f32 %v994, %v1189
      %v1191 = vpop.f32.mrf.mxu0
      %1192 = vmatprep.mubr.bf16.mxu0 0
      %1193 = vmatmul.mubr.bf16.gmra.mxu0 %v1077
      %v1194 = vpop.f32.mrf.mxu0
      %v1195 = vadd.f32 %v999, %v1194
      %v1196 = vpop.f32.mrf.mxu0
      %v1197 = vpop.f32.mrf.mxu0
      %v1198 = vadd.f32 %v1002, %v1197
      %v1199 = vpop.f32.mrf.mxu0
      %1200 = vmatprep.mubr.bf16.mxu0 0
      %1201 = vmatmul.mubr.bf16.gmra.mxu0 %v1079
      %v1202 = vpop.f32.mrf.mxu0
      %v1203 = vadd.f32 %v1007, %v1202
      %v1204 = vpop.f32.mrf.mxu0
      %v1205 = vpop.f32.mrf.mxu0
      %v1206 = vadd.f32 %v1010, %v1205
      %v1207 = vpop.f32.mrf.mxu0
      %1208 = vmatprep.mubr.bf16.mxu0 0
      %1209 = vmatmul.mubr.bf16.gmra.mxu0 %v1081
      %v1210 = vpop.f32.mrf.mxu0
      %v1211 = vadd.f32 %v1015, %v1210
      %v1212 = vpop.f32.mrf.mxu0
      %v1213 = vpop.f32.mrf.mxu0
      %v1214 = vadd.f32 %v1018, %v1213
      %v1215 = vpop.f32.mrf.mxu0
      %1216 = vmatprep.mubr.bf16.mxu0 0
      %1217 = vmatmul.mubr.bf16.gmra.mxu0 %v1083
      %v1218 = vpop.f32.mrf.mxu0
      %v1219 = vadd.f32 %v1023, %v1218
      %v1220 = vpop.f32.mrf.mxu0
      %v1221 = vpop.f32.mrf.mxu0
      %v1222 = vadd.f32 %v1026, %v1221
      %v1223 = vpop.f32.mrf.mxu0
      %1224 = vmatprep.mubr.bf16.mxu0 0
      %1225 = vmatmul.mubr.bf16.gmra.mxu0 %v1085
      %v1226 = vpop.f32.mrf.mxu0
      %v1227 = vadd.f32 %v1031, %v1226
      %v1228 = vpop.f32.mrf.mxu0
      %v1229 = vpop.f32.mrf.mxu0
      %v1230 = vadd.f32 %v1034, %v1229
      %v1231 = vpop.f32.mrf.mxu0
      %1232 = vmatprep.mubr.bf16.mxu0 0
      %1233 = vmatmul.mubr.bf16.gmra.mxu0 %v1087
      %v1234 = vpop.f32.mrf.mxu0
      %v1235 = vadd.f32 %v1039, %v1234
      %v1236 = vpop.f32.mrf.mxu0
      %v1237 = vpop.f32.mrf.mxu0
      %v1238 = vadd.f32 %v1042, %v1237
      %v1239 = vpop.f32.mrf.mxu0
      %1240 = vmatprep.mubr.bf16.mxu0 0
      %1241 = vmatmul.mubr.bf16.gmra.mxu0 %v1089
      %v1242 = vpop.f32.mrf.mxu0
      %v1243 = vadd.f32 %v1047, %v1242
      %v1244 = vpop.f32.mrf.mxu0
      %v1245 = vpop.f32.mrf.mxu0
      %v1246 = vadd.f32 %v1050, %v1245
      %v1247 = vpop.f32.mrf.mxu0
      %1248 = vmatprep.mubr.bf16.mxu0 0
      %1249 = vmatmul.mubr.bf16.gmra.mxu0 %v1091
      %v1250 = vpop.f32.mrf.mxu0
      %v1251 = vadd.f32 %v1055, %v1250
      %v1252 = vpop.f32.mrf.mxu0
      %v1253 = vpop.f32.mrf.mxu0
      %v1254 = vadd.f32 %v1058, %v1253
      %v1255 = vpop.f32.mrf.mxu0
      %1256 = vdwg.mxu0
      %vm1289 = vcmask 1046528
      %v1290 = vrot.slane %v615, 1
      %v1291 = vrot.slane %v616, 1
      %v1292 = vsel %vm1289, %v1290, %v1291
      %v1293 = vrot.slane %v617, 1
      %v1294 = vrot.slane %v618, 1
      %v1295 = vsel %vm1289, %v1293, %v1294
      %v1296 = vrot.slane %v619, 1
      %v1297 = vrot.slane %v620, 1
      %v1298 = vsel %vm1289, %v1296, %v1297
      %v1299 = vrot.slane %v621, 1
      %v1300 = vrot.slane %v622, 1
      %v1301 = vsel %vm1289, %v1299, %v1300
      %v1302 = vrot.slane %v623, 1
      %v1303 = vrot.slane %v624, 1
      %v1304 = vsel %vm1289, %v1302, %v1303
      %v1305 = vrot.slane %v625, 1
      %v1306 = vrot.slane %v626, 1
      %v1307 = vsel %vm1289, %v1305, %v1306
      %v1308 = vrot.slane %v627, 1
      %v1309 = vrot.slane %v628, 1
      %v1310 = vsel %vm1289, %v1308, %v1309
      %v1311 = vrot.slane %v629, 1
      %v1312 = vrot.slane %v630, 1
      %v1313 = vsel %vm1289, %v1311, %v1312
      %v1314 = vrot.slane %v631, 1
      %v1315 = vrot.slane %v632, 1
      %v1316 = vsel %vm1289, %v1314, %v1315
      %v1317 = vrot.slane %v633, 1
      %v1318 = vrot.slane %v634, 1
      %v1319 = vsel %vm1289, %v1317, %v1318
      %v1320 = vrot.slane %v635, 1
      %v1321 = vrot.slane %v636, 1
      %v1322 = vsel %vm1289, %v1320, %v1321
      %v1323 = vrot.slane %v637, 1
      %v1324 = vrot.slane %v638, 1
      %v1325 = vsel %vm1289, %v1323, %v1324
      %v1326 = vrot.slane %v639, 1
      %v1327 = vrot.slane %v640, 1
      %v1328 = vsel %vm1289, %v1326, %v1327
      %v1329 = vrot.slane %v641, 1
      %v1330 = vrot.slane %v642, 1
      %v1331 = vsel %vm1289, %v1329, %v1330
      %v1332 = vrot.slane %v643, 1
      %v1333 = vrot.slane %v644, 1
      %v1334 = vsel %vm1289, %v1332, %v1333
      %v1335 = vrot.slane %v645, 1
      %v1336 = vrot.slane %v646, 1
      %v1337 = vsel %vm1289, %v1335, %v1336
      %s1338 = scalar_lea.vmem %s4, 8
      %v1339 = vld [vmem:[%s1338] sm:$0xf]
      %v1341 = vsel %vm847, %v1292, 0
      %v1344 = vsel %vm847, %v1295, 0
      %v1347 = vsel %vm847, %v1298, 0
      %v1350 = vsel %vm847, %v1301, 0
      %v1353 = vsel %vm847, %v1304, 0
      %v1356 = vsel %vm847, %v1307, 0
      %v1359 = vsel %vm847, %v1310, 0
      %v1362 = vsel %vm847, %v1313, 0
      %v1365 = vsel %vm847, %v1316, 0
      %v1368 = vsel %vm847, %v1319, 0
      %v1371 = vsel %vm847, %v1322, 0
      %v1374 = vsel %vm847, %v1325, 0
      %v1377 = vsel %vm847, %v1328, 0
      %v1380 = vsel %vm847, %v1331, 0
      %v1383 = vsel %vm847, %v1334, 0
      %v1386 = vsel %vm847, %v1337, 0
      %v1389 = vsel %vm896, %v1339, 0
      %1391 = vmatprep.subr.bf16.mxu0 0
      %1392 = vmatpush1.bf16.msra.mxu0 0
      %1393 = vmatprep.subr.bf16.mxu0 0
      %1394 = vmatpush1.bf16.msra.mxu0 0
      %1395 = vmatprep.subr.bf16.mxu0 0
      %1396 = vmatpush1.bf16.msra.mxu0 0
      %1397 = vmatprep.subr.bf16.mxu0 0
      %1398 = vmatpush1.bf16.msra.mxu0 0
      %1399 = vmatprep.subr.bf16.mxu0 0
      %1400 = vmatpush1.bf16.msra.mxu0 0
      %1401 = vmatprep.subr.bf16.mxu0 0
      %1402 = vmatpush1.bf16.msra.mxu0 0
      %1403 = vmatprep.subr.bf16.mxu0 0
      %1404 = vmatpush1.bf16.msra.mxu0 0
      %1405 = vmatprep.subr.bf16.mxu0 0
      %1406 = vmatpush1.bf16.msra.mxu0 %v1389
      %1407 = vmatprep.subr.bf16.mxu0 0
      %1408 = vmatpush2.bf16.msra.mxu0 0
      %1409 = vmatprep.subr.bf16.mxu0 0
      %1410 = vmatpush2.bf16.msra.mxu0 0
      %1411 = vmatprep.subr.bf16.mxu0 0
      %1412 = vmatpush2.bf16.msra.mxu0 0
      %1413 = vmatprep.subr.bf16.mxu0 0
      %1414 = vmatpush2.bf16.msra.mxu0 0
      %1415 = vmatprep.subr.bf16.mxu0 0
      %1416 = vmatpush2.bf16.msra.mxu0 0
      %1417 = vmatprep.subr.bf16.mxu0 0
      %1418 = vmatpush2.bf16.msra.mxu0 0
      %1419 = vmatprep.subr.bf16.mxu0 0
      %1420 = vmatpush2.bf16.msra.mxu0 0
      %1421 = vmatprep.subr.bf16.mxu0 0
      %1422 = vmatpush2.bf16.msra.mxu0 0
      %1423 = vmatprep.mubr.bf16.mxu0 0
      %1424 = vmatmul.mubr.bf16.gmra.mxu0 %v1341
      %v1425 = vpop.f32.mrf.mxu0
      %v1426 = vadd.f32 0.0, %v1425
      %v1427 = vpop.f32.mrf.mxu0
      %v1428 = vpop.f32.mrf.mxu0
      %v1429 = vadd.f32 0.0, %v1428
      %v1430 = vpop.f32.mrf.mxu0
      %1431 = vmatprep.mubr.bf16.mxu0 0
      %1432 = vmatmul.mubr.bf16.gmra.mxu0 %v1344
      %v1433 = vpop.f32.mrf.mxu0
      %v1434 = vadd.f32 0.0, %v1433
      %v1435 = vpop.f32.mrf.mxu0
      %v1436 = vpop.f32.mrf.mxu0
      %v1437 = vadd.f32 0.0, %v1436
      %v1438 = vpop.f32.mrf.mxu0
      %1439 = vmatprep.mubr.bf16.mxu0 0
      %1440 = vmatmul.mubr.bf16.gmra.mxu0 %v1347
      %v1441 = vpop.f32.mrf.mxu0
      %v1442 = vadd.f32 0.0, %v1441
      %v1443 = vpop.f32.mrf.mxu0
      %v1444 = vpop.f32.mrf.mxu0
      %v1445 = vadd.f32 0.0, %v1444
      %v1446 = vpop.f32.mrf.mxu0
      %1447 = vmatprep.mubr.bf16.mxu0 0
      %1448 = vmatmul.mubr.bf16.gmra.mxu0 %v1350
      %v1449 = vpop.f32.mrf.mxu0
      %v1450 = vadd.f32 0.0, %v1449
      %v1451 = vpop.f32.mrf.mxu0
      %v1452 = vpop.f32.mrf.mxu0
      %v1453 = vadd.f32 0.0, %v1452
      %v1454 = vpop.f32.mrf.mxu0
      %1455 = vmatprep.mubr.bf16.mxu0 0
      %1456 = vmatmul.mubr.bf16.gmra.mxu0 %v1353
      %v1457 = vpop.f32.mrf.mxu0
      %v1458 = vadd.f32 0.0, %v1457
      %v1459 = vpop.f32.mrf.mxu0
      %v1460 = vpop.f32.mrf.mxu0
      %v1461 = vadd.f32 0.0, %v1460
      %v1462 = vpop.f32.mrf.mxu0
      %1463 = vmatprep.mubr.bf16.mxu0 0
      %1464 = vmatmul.mubr.bf16.gmra.mxu0 %v1356
      %v1465 = vpop.f32.mrf.mxu0
      %v1466 = vadd.f32 0.0, %v1465
      %v1467 = vpop.f32.mrf.mxu0
      %v1468 = vpop.f32.mrf.mxu0
      %v1469 = vadd.f32 0.0, %v1468
      %v1470 = vpop.f32.mrf.mxu0
      %1471 = vmatprep.mubr.bf16.mxu0 0
      %1472 = vmatmul.mubr.bf16.gmra.mxu0 %v1359
      %v1473 = vpop.f32.mrf.mxu0
      %v1474 = vadd.f32 0.0, %v1473
      %v1475 = vpop.f32.mrf.mxu0
      %v1476 = vpop.f32.mrf.mxu0
      %v1477 = vadd.f32 0.0, %v1476
      %v1478 = vpop.f32.mrf.mxu0
      %1479 = vmatprep.mubr.bf16.mxu0 0
      %1480 = vmatmul.mubr.bf16.gmra.mxu0 %v1362
      %v1481 = vpop.f32.mrf.mxu0
      %v1482 = vadd.f32 0.0, %v1481
      %v1483 = vpop.f32.mrf.mxu0
      %v1484 = vpop.f32.mrf.mxu0
      %v1485 = vadd.f32 0.0, %v1484
      %v1486 = vpop.f32.mrf.mxu0
      %1487 = vmatprep.mubr.bf16.mxu0 0
      %1488 = vmatmul.mubr.bf16.gmra.mxu0 %v1365
      %v1489 = vpop.f32.mrf.mxu0
      %v1490 = vadd.f32 0.0, %v1489
      %v1491 = vpop.f32.mrf.mxu0
      %v1492 = vpop.f32.mrf.mxu0
      %v1493 = vadd.f32 0.0, %v1492
      %v1494 = vpop.f32.mrf.mxu0
      %1495 = vmatprep.mubr.bf16.mxu0 0
      %1496 = vmatmul.mubr.bf16.gmra.mxu0 %v1368
      %v1497 = vpop.f32.mrf.mxu0
      %v1498 = vadd.f32 0.0, %v1497
      %v1499 = vpop.f32.mrf.mxu0
      %v1500 = vpop.f32.mrf.mxu0
      %v1501 = vadd.f32 0.0, %v1500
      %v1502 = vpop.f32.mrf.mxu0
      %1503 = vmatprep.mubr.bf16.mxu0 0
      %1504 = vmatmul.mubr.bf16.gmra.mxu0 %v1371
      %v1505 = vpop.f32.mrf.mxu0
      %v1506 = vadd.f32 0.0, %v1505
      %v1507 = vpop.f32.mrf.mxu0
      %v1508 = vpop.f32.mrf.mxu0
      %v1509 = vadd.f32 0.0, %v1508
      %v1510 = vpop.f32.mrf.mxu0
      %1511 = vmatprep.mubr.bf16.mxu0 0
      %1512 = vmatmul.mubr.bf16.gmra.mxu0 %v1374
      %v1513 = vpop.f32.mrf.mxu0
      %v1514 = vadd.f32 0.0, %v1513
      %v1515 = vpop.f32.mrf.mxu0
      %v1516 = vpop.f32.mrf.mxu0
      %v1517 = vadd.f32 0.0, %v1516
      %v1518 = vpop.f32.mrf.mxu0
      %1519 = vmatprep.mubr.bf16.mxu0 0
      %1520 = vmatmul.mubr.bf16.gmra.mxu0 %v1377
      %v1521 = vpop.f32.mrf.mxu0
      %v1522 = vadd.f32 0.0, %v1521
      %v1523 = vpop.f32.mrf.mxu0
      %v1524 = vpop.f32.mrf.mxu0
      %v1525 = vadd.f32 0.0, %v1524
      %v1526 = vpop.f32.mrf.mxu0
      %1527 = vmatprep.mubr.bf16.mxu0 0
      %1528 = vmatmul.mubr.bf16.gmra.mxu0 %v1380
      %v1529 = vpop.f32.mrf.mxu0
      %v1530 = vadd.f32 0.0, %v1529
      %v1531 = vpop.f32.mrf.mxu0
      %v1532 = vpop.f32.mrf.mxu0
      %v1533 = vadd.f32 0.0, %v1532
      %v1534 = vpop.f32.mrf.mxu0
      %1535 = vmatprep.mubr.bf16.mxu0 0
      %1536 = vmatmul.mubr.bf16.gmra.mxu0 %v1383
      %v1537 = vpop.f32.mrf.mxu0
      %v1538 = vadd.f32 0.0, %v1537
      %v1539 = vpop.f32.mrf.mxu0
      %v1540 = vpop.f32.mrf.mxu0
      %v1541 = vadd.f32 0.0, %v1540
      %v1542 = vpop.f32.mrf.mxu0
      %1543 = vmatprep.mubr.bf16.mxu0 0
      %1544 = vmatmul.mubr.bf16.gmra.mxu0 %v1386
      %v1545 = vpop.f32.mrf.mxu0
      %v1546 = vadd.f32 0.0, %v1545
      %v1547 = vpop.f32.mrf.mxu0
      %v1548 = vpop.f32.mrf.mxu0
      %v1549 = vadd.f32 0.0, %v1548
      %v1550 = vpop.f32.mrf.mxu0
      %1551 = vdwg.mxu0
      %v1552 = vadd.f32 %v1131, %v1426
      %v1553 = vadd.f32 %v1134, %v1429
      %v1554 = vadd.f32 %v1139, %v1434
      %v1555 = vadd.f32 %v1142, %v1437
      %v1556 = vadd.f32 %v1147, %v1442
      %v1557 = vadd.f32 %v1150, %v1445
      %v1558 = vadd.f32 %v1155, %v1450
      %v1559 = vadd.f32 %v1158, %v1453
      %v1560 = vadd.f32 %v1163, %v1458
      %v1561 = vadd.f32 %v1166, %v1461
      %v1562 = vadd.f32 %v1171, %v1466
      %v1563 = vadd.f32 %v1174, %v1469
      %v1564 = vadd.f32 %v1179, %v1474
      %v1565 = vadd.f32 %v1182, %v1477
      %v1566 = vadd.f32 %v1187, %v1482
      %v1567 = vadd.f32 %v1190, %v1485
      %v1568 = vadd.f32 %v1195, %v1490
      %v1569 = vadd.f32 %v1198, %v1493
      %v1570 = vadd.f32 %v1203, %v1498
      %v1571 = vadd.f32 %v1206, %v1501
      %v1572 = vadd.f32 %v1211, %v1506
      %v1573 = vadd.f32 %v1214, %v1509
      %v1574 = vadd.f32 %v1219, %v1514
      %v1575 = vadd.f32 %v1222, %v1517
      %v1576 = vadd.f32 %v1227, %v1522
      %v1577 = vadd.f32 %v1230, %v1525
      %v1578 = vadd.f32 %v1235, %v1530
      %v1579 = vadd.f32 %v1238, %v1533
      %v1580 = vadd.f32 %v1243, %v1538
      %v1581 = vadd.f32 %v1246, %v1541
      %v1582 = vadd.f32 %v1251, %v1546
      %v1583 = vadd.f32 %v1254, %v1549
      %s1584 = scalar_lea.vmem %s4, 12
      %v1585 = vld [vmem:[%s1584] sm:$0xf]
      %v1587 = vsel %vm847, %v647, 0
      %v1590 = vsel %vm896, %v1585, 0
      %1592 = vmatprep.subr.bf16.mxu0 0
      %1593 = vmatpush1.bf16.msra.mxu0 0
      %1594 = vmatprep.subr.bf16.mxu0 0
      %1595 = vmatpush1.bf16.msra.mxu0 0
      %1596 = vmatprep.subr.bf16.mxu0 0
      %1597 = vmatpush1.bf16.msra.mxu0 0
      %1598 = vmatprep.subr.bf16.mxu0 0
      %1599 = vmatpush1.bf16.msra.mxu0 0
      %1600 = vmatprep.subr.bf16.mxu0 0
      %1601 = vmatpush1.bf16.msra.mxu0 0
      %1602 = vmatprep.subr.bf16.mxu0 0
      %1603 = vmatpush1.bf16.msra.mxu0 0
      %1604 = vmatprep.subr.bf16.mxu0 0
      %1605 = vmatpush1.bf16.msra.mxu0 0
      %1606 = vmatprep.subr.bf16.mxu0 0
      %1607 = vmatpush1.bf16.msra.mxu0 %v1590
      %1608 = vmatprep.subr.bf16.mxu0 0
      %1609 = vmatpush2.bf16.msra.mxu0 0
      %1610 = vmatprep.subr.bf16.mxu0 0
      %1611 = vmatpush2.bf16.msra.mxu0 0
      %1612 = vmatprep.subr.bf16.mxu0 0
      %1613 = vmatpush2.bf16.msra.mxu0 0
      %1614 = vmatprep.subr.bf16.mxu0 0
      %1615 = vmatpush2.bf16.msra.mxu0 0
      %1616 = vmatprep.subr.bf16.mxu0 0
      %1617 = vmatpush2.bf16.msra.mxu0 0
      %1618 = vmatprep.subr.bf16.mxu0 0
      %1619 = vmatpush2.bf16.msra.mxu0 0
      %1620 = vmatprep.subr.bf16.mxu0 0
      %1621 = vmatpush2.bf16.msra.mxu0 0
      %1622 = vmatprep.subr.bf16.mxu0 0
      %1623 = vmatpush2.bf16.msra.mxu0 0
      %1624 = vmatprep.mubr.bf16.mxu0 0
      %1625 = vmatmul.mubr.bf16.gmra.mxu0 %v1063
      %v1626 = vpop.f32.mrf.mxu0
      %v1627 = vadd.f32 0.0, %v1626
      %v1628 = vpop.f32.mrf.mxu0
      %v1629 = vpop.f32.mrf.mxu0
      %v1630 = vadd.f32 0.0, %v1629
      %v1631 = vpop.f32.mrf.mxu0
      %1632 = vmatprep.mubr.bf16.mxu0 0
      %1633 = vmatmul.mubr.bf16.gmra.mxu0 %v1065
      %v1634 = vpop.f32.mrf.mxu0
      %v1635 = vadd.f32 0.0, %v1634
      %v1636 = vpop.f32.mrf.mxu0
      %v1637 = vpop.f32.mrf.mxu0
      %v1638 = vadd.f32 0.0, %v1637
      %v1639 = vpop.f32.mrf.mxu0
      %1640 = vmatprep.mubr.bf16.mxu0 0
      %1641 = vmatmul.mubr.bf16.gmra.mxu0 %v1067
      %v1642 = vpop.f32.mrf.mxu0
      %v1643 = vadd.f32 0.0, %v1642
      %v1644 = vpop.f32.mrf.mxu0
      %v1645 = vpop.f32.mrf.mxu0
      %v1646 = vadd.f32 0.0, %v1645
      %v1647 = vpop.f32.mrf.mxu0
      %1648 = vmatprep.mubr.bf16.mxu0 0
      %1649 = vmatmul.mubr.bf16.gmra.mxu0 %v1069
      %v1650 = vpop.f32.mrf.mxu0
      %v1651 = vadd.f32 0.0, %v1650
      %v1652 = vpop.f32.mrf.mxu0
      %v1653 = vpop.f32.mrf.mxu0
      %v1654 = vadd.f32 0.0, %v1653
      %v1655 = vpop.f32.mrf.mxu0
      %1656 = vmatprep.mubr.bf16.mxu0 0
      %1657 = vmatmul.mubr.bf16.gmra.mxu0 %v1071
      %v1658 = vpop.f32.mrf.mxu0
      %v1659 = vadd.f32 0.0, %v1658
      %v1660 = vpop.f32.mrf.mxu0
      %v1661 = vpop.f32.mrf.mxu0
      %v1662 = vadd.f32 0.0, %v1661
      %v1663 = vpop.f32.mrf.mxu0
      %1664 = vmatprep.mubr.bf16.mxu0 0
      %1665 = vmatmul.mubr.bf16.gmra.mxu0 %v1073
      %v1666 = vpop.f32.mrf.mxu0
      %v1667 = vadd.f32 0.0, %v1666
      %v1668 = vpop.f32.mrf.mxu0
      %v1669 = vpop.f32.mrf.mxu0
      %v1670 = vadd.f32 0.0, %v1669
      %v1671 = vpop.f32.mrf.mxu0
      %1672 = vmatprep.mubr.bf16.mxu0 0
      %1673 = vmatmul.mubr.bf16.gmra.mxu0 %v1075
      %v1674 = vpop.f32.mrf.mxu0
      %v1675 = vadd.f32 0.0, %v1674
      %v1676 = vpop.f32.mrf.mxu0
      %v1677 = vpop.f32.mrf.mxu0
      %v1678 = vadd.f32 0.0, %v1677
      %v1679 = vpop.f32.mrf.mxu0
      %1680 = vmatprep.mubr.bf16.mxu0 0
      %1681 = vmatmul.mubr.bf16.gmra.mxu0 %v1077
      %v1682 = vpop.f32.mrf.mxu0
      %v1683 = vadd.f32 0.0, %v1682
      %v1684 = vpop.f32.mrf.mxu0
      %v1685 = vpop.f32.mrf.mxu0
      %v1686 = vadd.f32 0.0, %v1685
      %v1687 = vpop.f32.mrf.mxu0
      %1688 = vmatprep.mubr.bf16.mxu0 0
      %1689 = vmatmul.mubr.bf16.gmra.mxu0 %v1079
      %v1690 = vpop.f32.mrf.mxu0
      %v1691 = vadd.f32 0.0, %v1690
      %v1692 = vpop.f32.mrf.mxu0
      %v1693 = vpop.f32.mrf.mxu0
      %v1694 = vadd.f32 0.0, %v1693
      %v1695 = vpop.f32.mrf.mxu0
      %1696 = vmatprep.mubr.bf16.mxu0 0
      %1697 = vmatmul.mubr.bf16.gmra.mxu0 %v1081
      %v1698 = vpop.f32.mrf.mxu0
      %v1699 = vadd.f32 0.0, %v1698
      %v1700 = vpop.f32.mrf.mxu0
      %v1701 = vpop.f32.mrf.mxu0
      %v1702 = vadd.f32 0.0, %v1701
      %v1703 = vpop.f32.mrf.mxu0
      %1704 = vmatprep.mubr.bf16.mxu0 0
      %1705 = vmatmul.mubr.bf16.gmra.mxu0 %v1083
      %v1706 = vpop.f32.mrf.mxu0
      %v1707 = vadd.f32 0.0, %v1706
      %v1708 = vpop.f32.mrf.mxu0
      %v1709 = vpop.f32.mrf.mxu0
      %v1710 = vadd.f32 0.0, %v1709
      %v1711 = vpop.f32.mrf.mxu0
      %1712 = vmatprep.mubr.bf16.mxu0 0
      %1713 = vmatmul.mubr.bf16.gmra.mxu0 %v1085
      %v1714 = vpop.f32.mrf.mxu0
      %v1715 = vadd.f32 0.0, %v1714
      %v1716 = vpop.f32.mrf.mxu0
      %v1717 = vpop.f32.mrf.mxu0
      %v1718 = vadd.f32 0.0, %v1717
      %v1719 = vpop.f32.mrf.mxu0
      %1720 = vmatprep.mubr.bf16.mxu0 0
      %1721 = vmatmul.mubr.bf16.gmra.mxu0 %v1087
      %v1722 = vpop.f32.mrf.mxu0
      %v1723 = vadd.f32 0.0, %v1722
      %v1724 = vpop.f32.mrf.mxu0
      %v1725 = vpop.f32.mrf.mxu0
      %v1726 = vadd.f32 0.0, %v1725
      %v1727 = vpop.f32.mrf.mxu0
      %1728 = vmatprep.mubr.bf16.mxu0 0
      %1729 = vmatmul.mubr.bf16.gmra.mxu0 %v1089
      %v1730 = vpop.f32.mrf.mxu0
      %v1731 = vadd.f32 0.0, %v1730
      %v1732 = vpop.f32.mrf.mxu0
      %v1733 = vpop.f32.mrf.mxu0
      %v1734 = vadd.f32 0.0, %v1733
      %v1735 = vpop.f32.mrf.mxu0
      %1736 = vmatprep.mubr.bf16.mxu0 0
      %1737 = vmatmul.mubr.bf16.gmra.mxu0 %v1091
      %v1738 = vpop.f32.mrf.mxu0
      %v1739 = vadd.f32 0.0, %v1738
      %v1740 = vpop.f32.mrf.mxu0
      %v1741 = vpop.f32.mrf.mxu0
      %v1742 = vadd.f32 0.0, %v1741
      %v1743 = vpop.f32.mrf.mxu0
      %1744 = vmatprep.mubr.bf16.mxu0 0
      %1745 = vmatmul.mubr.bf16.gmra.mxu0 %v1587
      %v1746 = vpop.f32.mrf.mxu0
      %v1747 = vadd.f32 0.0, %v1746
      %v1748 = vpop.f32.mrf.mxu0
      %v1749 = vpop.f32.mrf.mxu0
      %v1750 = vadd.f32 0.0, %v1749
      %v1751 = vpop.f32.mrf.mxu0
      %1752 = vdwg.mxu0
      %v1753 = vadd.f32 %v1552, %v1627
      %v1754 = vadd.f32 %v1553, %v1630
      %v1755 = vadd.f32 %v1554, %v1635
      %v1756 = vadd.f32 %v1555, %v1638
      %v1757 = vadd.f32 %v1556, %v1643
      %v1758 = vadd.f32 %v1557, %v1646
      %v1759 = vadd.f32 %v1558, %v1651
      %v1760 = vadd.f32 %v1559, %v1654
      %v1761 = vadd.f32 %v1560, %v1659
      %v1762 = vadd.f32 %v1561, %v1662
      %v1763 = vadd.f32 %v1562, %v1667
      %v1764 = vadd.f32 %v1563, %v1670
      %v1765 = vadd.f32 %v1564, %v1675
      %v1766 = vadd.f32 %v1565, %v1678
      %v1767 = vadd.f32 %v1566, %v1683
      %v1768 = vadd.f32 %v1567, %v1686
      %v1769 = vadd.f32 %v1568, %v1691
      %v1770 = vadd.f32 %v1569, %v1694
      %v1771 = vadd.f32 %v1570, %v1699
      %v1772 = vadd.f32 %v1571, %v1702
      %v1773 = vadd.f32 %v1572, %v1707
      %v1774 = vadd.f32 %v1573, %v1710
      %v1775 = vadd.f32 %v1574, %v1715
      %v1776 = vadd.f32 %v1575, %v1718
      %v1777 = vadd.f32 %v1576, %v1723
      %v1778 = vadd.f32 %v1577, %v1726
      %v1779 = vadd.f32 %v1578, %v1731
      %v1780 = vadd.f32 %v1579, %v1734
      %v1781 = vadd.f32 %v1580, %v1739
      %v1782 = vadd.f32 %v1581, %v1742
      %v1783 = vadd.f32 %v1582, %v1747
      %v1784 = vadd.f32 %v1583, %v1750
      %v1785 = vshrl.u32 %v647, 16
      %v1787 = vshll.u32 %v647, 16
      %v1789 = vrot.slane %v1787, 1
      %v1790 = vor.u32 %v1785, %v1789
      %v1792 = vshll.u32 %v648, 16
      %v1794 = vrot.slane %v1792, 1
      %v1795 = vsel %vm652, %v1790, %v1794
      %s1796 = scalar_lea.vmem %s4, 16
      %v1797 = vld [vmem:[%s1796] sm:$0xf]
      %v1799 = vsel %vm847, %v1795, 0
      %v1802 = vsel %vm896, %v1797, 0
      %1804 = vmatprep.subr.bf16.mxu0 0
      %1805 = vmatpush1.bf16.msra.mxu0 0
      %1806 = vmatprep.subr.bf16.mxu0 0
      %1807 = vmatpush1.bf16.msra.mxu0 0
      %1808 = vmatprep.subr.bf16.mxu0 0
      %1809 = vmatpush1.bf16.msra.mxu0 0
      %1810 = vmatprep.subr.bf16.mxu0 0
      %1811 = vmatpush1.bf16.msra.mxu0 0
      %1812 = vmatprep.subr.bf16.mxu0 0
      %1813 = vmatpush1.bf16.msra.mxu0 0
      %1814 = vmatprep.subr.bf16.mxu0 0
      %1815 = vmatpush1.bf16.msra.mxu0 0
      %1816 = vmatprep.subr.bf16.mxu0 0
      %1817 = vmatpush1.bf16.msra.mxu0 0
      %1818 = vmatprep.subr.bf16.mxu0 0
      %1819 = vmatpush1.bf16.msra.mxu0 %v1802
      %1820 = vmatprep.subr.bf16.mxu0 0
      %1821 = vmatpush2.bf16.msra.mxu0 0
      %1822 = vmatprep.subr.bf16.mxu0 0
      %1823 = vmatpush2.bf16.msra.mxu0 0
      %1824 = vmatprep.subr.bf16.mxu0 0
      %1825 = vmatpush2.bf16.msra.mxu0 0
      %1826 = vmatprep.subr.bf16.mxu0 0
      %1827 = vmatpush2.bf16.msra.mxu0 0
      %1828 = vmatprep.subr.bf16.mxu0 0
      %1829 = vmatpush2.bf16.msra.mxu0 0
      %1830 = vmatprep.subr.bf16.mxu0 0
      %1831 = vmatpush2.bf16.msra.mxu0 0
      %1832 = vmatprep.subr.bf16.mxu0 0
      %1833 = vmatpush2.bf16.msra.mxu0 0
      %1834 = vmatprep.subr.bf16.mxu0 0
      %1835 = vmatpush2.bf16.msra.mxu0 0
      %1836 = vmatprep.mubr.bf16.mxu0 0
      %1837 = vmatmul.mubr.bf16.gmra.mxu0 %v852
      %v1838 = vpop.f32.mrf.mxu0
      %v1839 = vadd.f32 0.0, %v1838
      %v1840 = vpop.f32.mrf.mxu0
      %v1841 = vpop.f32.mrf.mxu0
      %v1842 = vadd.f32 0.0, %v1841
      %v1843 = vpop.f32.mrf.mxu0
      %1844 = vmatprep.mubr.bf16.mxu0 0
      %1845 = vmatmul.mubr.bf16.gmra.mxu0 %v855
      %v1846 = vpop.f32.mrf.mxu0
      %v1847 = vadd.f32 0.0, %v1846
      %v1848 = vpop.f32.mrf.mxu0
      %v1849 = vpop.f32.mrf.mxu0
      %v1850 = vadd.f32 0.0, %v1849
      %v1851 = vpop.f32.mrf.mxu0
      %1852 = vmatprep.mubr.bf16.mxu0 0
      %1853 = vmatmul.mubr.bf16.gmra.mxu0 %v858
      %v1854 = vpop.f32.mrf.mxu0
      %v1855 = vadd.f32 0.0, %v1854
      %v1856 = vpop.f32.mrf.mxu0
      %v1857 = vpop.f32.mrf.mxu0
      %v1858 = vadd.f32 0.0, %v1857
      %v1859 = vpop.f32.mrf.mxu0
      %1860 = vmatprep.mubr.bf16.mxu0 0
      %1861 = vmatmul.mubr.bf16.gmra.mxu0 %v861
      %v1862 = vpop.f32.mrf.mxu0
      %v1863 = vadd.f32 0.0, %v1862
      %v1864 = vpop.f32.mrf.mxu0
      %v1865 = vpop.f32.mrf.mxu0
      %v1866 = vadd.f32 0.0, %v1865
      %v1867 = vpop.f32.mrf.mxu0
      %1868 = vmatprep.mubr.bf16.mxu0 0
      %1869 = vmatmul.mubr.bf16.gmra.mxu0 %v864
      %v1870 = vpop.f32.mrf.mxu0
      %v1871 = vadd.f32 0.0, %v1870
      %v1872 = vpop.f32.mrf.mxu0
      %v1873 = vpop.f32.mrf.mxu0
      %v1874 = vadd.f32 0.0, %v1873
      %v1875 = vpop.f32.mrf.mxu0
      %1876 = vmatprep.mubr.bf16.mxu0 0
      %1877 = vmatmul.mubr.bf16.gmra.mxu0 %v867
      %v1878 = vpop.f32.mrf.mxu0
      %v1879 = vadd.f32 0.0, %v1878
      %v1880 = vpop.f32.mrf.mxu0
      %v1881 = vpop.f32.mrf.mxu0
      %v1882 = vadd.f32 0.0, %v1881
      %v1883 = vpop.f32.mrf.mxu0
      %1884 = vmatprep.mubr.bf16.mxu0 0
      %1885 = vmatmul.mubr.bf16.gmra.mxu0 %v870
      %v1886 = vpop.f32.mrf.mxu0
      %v1887 = vadd.f32 0.0, %v1886
      %v1888 = vpop.f32.mrf.mxu0
      %v1889 = vpop.f32.mrf.mxu0
      %v1890 = vadd.f32 0.0, %v1889
      %v1891 = vpop.f32.mrf.mxu0
      %1892 = vmatprep.mubr.bf16.mxu0 0
      %1893 = vmatmul.mubr.bf16.gmra.mxu0 %v873
      %v1894 = vpop.f32.mrf.mxu0
      %v1895 = vadd.f32 0.0, %v1894
      %v1896 = vpop.f32.mrf.mxu0
      %v1897 = vpop.f32.mrf.mxu0
      %v1898 = vadd.f32 0.0, %v1897
      %v1899 = vpop.f32.mrf.mxu0
      %1900 = vmatprep.mubr.bf16.mxu0 0
      %1901 = vmatmul.mubr.bf16.gmra.mxu0 %v876
      %v1902 = vpop.f32.mrf.mxu0
      %v1903 = vadd.f32 0.0, %v1902
      %v1904 = vpop.f32.mrf.mxu0
      %v1905 = vpop.f32.mrf.mxu0
      %v1906 = vadd.f32 0.0, %v1905
      %v1907 = vpop.f32.mrf.mxu0
      %1908 = vmatprep.mubr.bf16.mxu0 0
      %1909 = vmatmul.mubr.bf16.gmra.mxu0 %v879
      %v1910 = vpop.f32.mrf.mxu0
      %v1911 = vadd.f32 0.0, %v1910
      %v1912 = vpop.f32.mrf.mxu0
      %v1913 = vpop.f32.mrf.mxu0
      %v1914 = vadd.f32 0.0, %v1913
      %v1915 = vpop.f32.mrf.mxu0
      %1916 = vmatprep.mubr.bf16.mxu0 0
      %1917 = vmatmul.mubr.bf16.gmra.mxu0 %v882
      %v1918 = vpop.f32.mrf.mxu0
      %v1919 = vadd.f32 0.0, %v1918
      %v1920 = vpop.f32.mrf.mxu0
      %v1921 = vpop.f32.mrf.mxu0
      %v1922 = vadd.f32 0.0, %v1921
      %v1923 = vpop.f32.mrf.mxu0
      %1924 = vmatprep.mubr.bf16.mxu0 0
      %1925 = vmatmul.mubr.bf16.gmra.mxu0 %v885
      %v1926 = vpop.f32.mrf.mxu0
      %v1927 = vadd.f32 0.0, %v1926
      %v1928 = vpop.f32.mrf.mxu0
      %v1929 = vpop.f32.mrf.mxu0
      %v1930 = vadd.f32 0.0, %v1929
      %v1931 = vpop.f32.mrf.mxu0
      %1932 = vmatprep.mubr.bf16.mxu0 0
      %1933 = vmatmul.mubr.bf16.gmra.mxu0 %v888
      %v1934 = vpop.f32.mrf.mxu0
      %v1935 = vadd.f32 0.0, %v1934
      %v1936 = vpop.f32.mrf.mxu0
      %v1937 = vpop.f32.mrf.mxu0
      %v1938 = vadd.f32 0.0, %v1937
      %v1939 = vpop.f32.mrf.mxu0
      %1940 = vmatprep.mubr.bf16.mxu0 0
      %1941 = vmatmul.mubr.bf16.gmra.mxu0 %v891
      %v1942 = vpop.f32.mrf.mxu0
      %v1943 = vadd.f32 0.0, %v1942
      %v1944 = vpop.f32.mrf.mxu0
      %v1945 = vpop.f32.mrf.mxu0
      %v1946 = vadd.f32 0.0, %v1945
      %v1947 = vpop.f32.mrf.mxu0
      %1948 = vmatprep.mubr.bf16.mxu0 0
      %1949 = vmatmul.mubr.bf16.gmra.mxu0 %v894
      %v1950 = vpop.f32.mrf.mxu0
      %v1951 = vadd.f32 0.0, %v1950
      %v1952 = vpop.f32.mrf.mxu0
      %v1953 = vpop.f32.mrf.mxu0
      %v1954 = vadd.f32 0.0, %v1953
      %v1955 = vpop.f32.mrf.mxu0
      %1956 = vmatprep.mubr.bf16.mxu0 0
      %1957 = vmatmul.mubr.bf16.gmra.mxu0 %v1799
      %v1958 = vpop.f32.mrf.mxu0
      %v1959 = vadd.f32 0.0, %v1958
      %v1960 = vpop.f32.mrf.mxu0
      %v1961 = vpop.f32.mrf.mxu0
      %v1962 = vadd.f32 0.0, %v1961
      %v1963 = vpop.f32.mrf.mxu0
      %1964 = vdwg.mxu0
      %v1965 = vadd.f32 %v1753, %v1839
      %v1966 = vadd.f32 %v1754, %v1842
      %v1967 = vadd.f32 %v1755, %v1847
      %v1968 = vadd.f32 %v1756, %v1850
      %v1969 = vadd.f32 %v1757, %v1855
      %v1970 = vadd.f32 %v1758, %v1858
      %v1971 = vadd.f32 %v1759, %v1863
      %v1972 = vadd.f32 %v1760, %v1866
      %v1973 = vadd.f32 %v1761, %v1871
      %v1974 = vadd.f32 %v1762, %v1874
      %v1975 = vadd.f32 %v1763, %v1879
      %v1976 = vadd.f32 %v1764, %v1882
      %v1977 = vadd.f32 %v1765, %v1887
      %v1978 = vadd.f32 %v1766, %v1890
      %v1979 = vadd.f32 %v1767, %v1895
      %v1980 = vadd.f32 %v1768, %v1898
      %v1981 = vadd.f32 %v1769, %v1903
      %v1982 = vadd.f32 %v1770, %v1906
      %v1983 = vadd.f32 %v1771, %v1911
      %v1984 = vadd.f32 %v1772, %v1914
      %v1985 = vadd.f32 %v1773, %v1919
      %v1986 = vadd.f32 %v1774, %v1922
      %v1987 = vadd.f32 %v1775, %v1927
      %v1988 = vadd.f32 %v1776, %v1930
      %v1989 = vadd.f32 %v1777, %v1935
      %v1990 = vadd.f32 %v1778, %v1938
      %v1991 = vadd.f32 %v1779, %v1943
      %v1992 = vadd.f32 %v1780, %v1946
      %v1993 = vadd.f32 %v1781, %v1951
      %v1994 = vadd.f32 %v1782, %v1954
      %v1995 = vadd.f32 %v1783, %v1959
      %v1996 = vadd.f32 %v1784, %v1962
      %v1999 = vrot.slane %v647, 1
      %v2000 = vrot.slane %v648, 1
      %v2001 = vsel %vm1289, %v1999, %v2000
      %s2002 = scalar_lea.vmem %s4, 20
      %v2003 = vld [vmem:[%s2002] sm:$0xf]
      %v2005 = vsel %vm847, %v2001, 0
      %v2008 = vsel %vm896, %v2003, 0
      %2010 = vmatprep.subr.bf16.mxu0 0
      %2011 = vmatpush1.bf16.msra.mxu0 0
      %2012 = vmatprep.subr.bf16.mxu0 0
      %2013 = vmatpush1.bf16.msra.mxu0 0
      %2014 = vmatprep.subr.bf16.mxu0 0
      %2015 = vmatpush1.bf16.msra.mxu0 0
      %2016 = vmatprep.subr.bf16.mxu0 0
      %2017 = vmatpush1.bf16.msra.mxu0 0
      %2018 = vmatprep.subr.bf16.mxu0 0
      %2019 = vmatpush1.bf16.msra.mxu0 0
      %2020 = vmatprep.subr.bf16.mxu0 0
      %2021 = vmatpush1.bf16.msra.mxu0 0
      %2022 = vmatprep.subr.bf16.mxu0 0
      %2023 = vmatpush1.bf16.msra.mxu0 0
      %2024 = vmatprep.subr.bf16.mxu0 0
      %2025 = vmatpush1.bf16.msra.mxu0 %v2008
      %2026 = vmatprep.subr.bf16.mxu0 0
      %2027 = vmatpush2.bf16.msra.mxu0 0
      %2028 = vmatprep.subr.bf16.mxu0 0
      %2029 = vmatpush2.bf16.msra.mxu0 0
      %2030 = vmatprep.subr.bf16.mxu0 0
      %2031 = vmatpush2.bf16.msra.mxu0 0
      %2032 = vmatprep.subr.bf16.mxu0 0
      %2033 = vmatpush2.bf16.msra.mxu0 0
      %2034 = vmatprep.subr.bf16.mxu0 0
      %2035 = vmatpush2.bf16.msra.mxu0 0
      %2036 = vmatprep.subr.bf16.mxu0 0
      %2037 = vmatpush2.bf16.msra.mxu0 0
      %2038 = vmatprep.subr.bf16.mxu0 0
      %2039 = vmatpush2.bf16.msra.mxu0 0
      %2040 = vmatprep.subr.bf16.mxu0 0
      %2041 = vmatpush2.bf16.msra.mxu0 0
      %2042 = vmatprep.mubr.bf16.mxu0 0
      %2043 = vmatmul.mubr.bf16.gmra.mxu0 %v1344
      %v2044 = vpop.f32.mrf.mxu0
      %v2045 = vadd.f32 0.0, %v2044
      %v2046 = vpop.f32.mrf.mxu0
      %v2047 = vpop.f32.mrf.mxu0
      %v2048 = vadd.f32 0.0, %v2047
      %v2049 = vpop.f32.mrf.mxu0
      %2050 = vmatprep.mubr.bf16.mxu0 0
      %2051 = vmatmul.mubr.bf16.gmra.mxu0 %v1347
      %v2052 = vpop.f32.mrf.mxu0
      %v2053 = vadd.f32 0.0, %v2052
      %v2054 = vpop.f32.mrf.mxu0
      %v2055 = vpop.f32.mrf.mxu0
      %v2056 = vadd.f32 0.0, %v2055
      %v2057 = vpop.f32.mrf.mxu0
      %2058 = vmatprep.mubr.bf16.mxu0 0
      %2059 = vmatmul.mubr.bf16.gmra.mxu0 %v1350
      %v2060 = vpop.f32.mrf.mxu0
      %v2061 = vadd.f32 0.0, %v2060
      %v2062 = vpop.f32.mrf.mxu0
      %v2063 = vpop.f32.mrf.mxu0
      %v2064 = vadd.f32 0.0, %v2063
      %v2065 = vpop.f32.mrf.mxu0
      %2066 = vmatprep.mubr.bf16.mxu0 0
      %2067 = vmatmul.mubr.bf16.gmra.mxu0 %v1353
      %v2068 = vpop.f32.mrf.mxu0
      %v2069 = vadd.f32 0.0, %v2068
      %v2070 = vpop.f32.mrf.mxu0
      %v2071 = vpop.f32.mrf.mxu0
      %v2072 = vadd.f32 0.0, %v2071
      %v2073 = vpop.f32.mrf.mxu0
      %2074 = vmatprep.mubr.bf16.mxu0 0
      %2075 = vmatmul.mubr.bf16.gmra.mxu0 %v1356
      %v2076 = vpop.f32.mrf.mxu0
      %v2077 = vadd.f32 0.0, %v2076
      %v2078 = vpop.f32.mrf.mxu0
      %v2079 = vpop.f32.mrf.mxu0
      %v2080 = vadd.f32 0.0, %v2079
      %v2081 = vpop.f32.mrf.mxu0
      %2082 = vmatprep.mubr.bf16.mxu0 0
      %2083 = vmatmul.mubr.bf16.gmra.mxu0 %v1359
      %v2084 = vpop.f32.mrf.mxu0
      %v2085 = vadd.f32 0.0, %v2084
      %v2086 = vpop.f32.mrf.mxu0
      %v2087 = vpop.f32.mrf.mxu0
      %v2088 = vadd.f32 0.0, %v2087
      %v2089 = vpop.f32.mrf.mxu0
      %2090 = vmatprep.mubr.bf16.mxu0 0
      %2091 = vmatmul.mubr.bf16.gmra.mxu0 %v1362
      %v2092 = vpop.f32.mrf.mxu0
      %v2093 = vadd.f32 0.0, %v2092
      %v2094 = vpop.f32.mrf.mxu0
      %v2095 = vpop.f32.mrf.mxu0
      %v2096 = vadd.f32 0.0, %v2095
      %v2097 = vpop.f32.mrf.mxu0
      %2098 = vmatprep.mubr.bf16.mxu0 0
      %2099 = vmatmul.mubr.bf16.gmra.mxu0 %v1365
      %v2100 = vpop.f32.mrf.mxu0
      %v2101 = vadd.f32 0.0, %v2100
      %v2102 = vpop.f32.mrf.mxu0
      %v2103 = vpop.f32.mrf.mxu0
      %v2104 = vadd.f32 0.0, %v2103
      %v2105 = vpop.f32.mrf.mxu0
      %2106 = vmatprep.mubr.bf16.mxu0 0
      %2107 = vmatmul.mubr.bf16.gmra.mxu0 %v1368
      %v2108 = vpop.f32.mrf.mxu0
      %v2109 = vadd.f32 0.0, %v2108
      %v2110 = vpop.f32.mrf.mxu0
      %v2111 = vpop.f32.mrf.mxu0
      %v2112 = vadd.f32 0.0, %v2111
      %v2113 = vpop.f32.mrf.mxu0
      %2114 = vmatprep.mubr.bf16.mxu0 0
      %2115 = vmatmul.mubr.bf16.gmra.mxu0 %v1371
      %v2116 = vpop.f32.mrf.mxu0
      %v2117 = vadd.f32 0.0, %v2116
      %v2118 = vpop.f32.mrf.mxu0
      %v2119 = vpop.f32.mrf.mxu0
      %v2120 = vadd.f32 0.0, %v2119
      %v2121 = vpop.f32.mrf.mxu0
      %2122 = vmatprep.mubr.bf16.mxu0 0
      %2123 = vmatmul.mubr.bf16.gmra.mxu0 %v1374
      %v2124 = vpop.f32.mrf.mxu0
      %v2125 = vadd.f32 0.0, %v2124
      %v2126 = vpop.f32.mrf.mxu0
      %v2127 = vpop.f32.mrf.mxu0
      %v2128 = vadd.f32 0.0, %v2127
      %v2129 = vpop.f32.mrf.mxu0
      %2130 = vmatprep.mubr.bf16.mxu0 0
      %2131 = vmatmul.mubr.bf16.gmra.mxu0 %v1377
      %v2132 = vpop.f32.mrf.mxu0
      %v2133 = vadd.f32 0.0, %v2132
      %v2134 = vpop.f32.mrf.mxu0
      %v2135 = vpop.f32.mrf.mxu0
      %v2136 = vadd.f32 0.0, %v2135
      %v2137 = vpop.f32.mrf.mxu0
      %2138 = vmatprep.mubr.bf16.mxu0 0
      %2139 = vmatmul.mubr.bf16.gmra.mxu0 %v1380
      %v2140 = vpop.f32.mrf.mxu0
      %v2141 = vadd.f32 0.0, %v2140
      %v2142 = vpop.f32.mrf.mxu0
      %v2143 = vpop.f32.mrf.mxu0
      %v2144 = vadd.f32 0.0, %v2143
      %v2145 = vpop.f32.mrf.mxu0
      %2146 = vmatprep.mubr.bf16.mxu0 0
      %2147 = vmatmul.mubr.bf16.gmra.mxu0 %v1383
      %v2148 = vpop.f32.mrf.mxu0
      %v2149 = vadd.f32 0.0, %v2148
      %v2150 = vpop.f32.mrf.mxu0
      %v2151 = vpop.f32.mrf.mxu0
      %v2152 = vadd.f32 0.0, %v2151
      %v2153 = vpop.f32.mrf.mxu0
      %2154 = vmatprep.mubr.bf16.mxu0 0
      %2155 = vmatmul.mubr.bf16.gmra.mxu0 %v1386
      %v2156 = vpop.f32.mrf.mxu0
      %v2157 = vadd.f32 0.0, %v2156
      %v2158 = vpop.f32.mrf.mxu0
      %v2159 = vpop.f32.mrf.mxu0
      %v2160 = vadd.f32 0.0, %v2159
      %v2161 = vpop.f32.mrf.mxu0
      %2162 = vmatprep.mubr.bf16.mxu0 0
      %2163 = vmatmul.mubr.bf16.gmra.mxu0 %v2005
      %v2164 = vpop.f32.mrf.mxu0
      %v2165 = vadd.f32 0.0, %v2164
      %v2166 = vpop.f32.mrf.mxu0
      %v2167 = vpop.f32.mrf.mxu0
      %v2168 = vadd.f32 0.0, %v2167
      %v2169 = vpop.f32.mrf.mxu0
      %2170 = vdwg.mxu0
      %v2171 = vadd.f32 %v1965, %v2045
      %v2172 = vadd.f32 %v1966, %v2048
      %v2173 = vadd.f32 %v1967, %v2053
      %v2174 = vadd.f32 %v1968, %v2056
      %v2175 = vadd.f32 %v1969, %v2061
      %v2176 = vadd.f32 %v1970, %v2064
      %v2177 = vadd.f32 %v1971, %v2069
      %v2178 = vadd.f32 %v1972, %v2072
      %v2179 = vadd.f32 %v1973, %v2077
      %v2180 = vadd.f32 %v1974, %v2080
      %v2181 = vadd.f32 %v1975, %v2085
      %v2182 = vadd.f32 %v1976, %v2088
      %v2183 = vadd.f32 %v1977, %v2093
      %v2184 = vadd.f32 %v1978, %v2096
      %v2185 = vadd.f32 %v1979, %v2101
      %v2186 = vadd.f32 %v1980, %v2104
      %v2187 = vadd.f32 %v1981, %v2109
      %v2188 = vadd.f32 %v1982, %v2112
      %v2189 = vadd.f32 %v1983, %v2117
      %v2190 = vadd.f32 %v1984, %v2120
      %v2191 = vadd.f32 %v1985, %v2125
      %v2192 = vadd.f32 %v1986, %v2128
      %v2193 = vadd.f32 %v1987, %v2133
      %v2194 = vadd.f32 %v1988, %v2136
      %v2195 = vadd.f32 %v1989, %v2141
      %v2196 = vadd.f32 %v1990, %v2144
      %v2197 = vadd.f32 %v1991, %v2149
      %v2198 = vadd.f32 %v1992, %v2152
      %v2199 = vadd.f32 %v1993, %v2157
      %v2200 = vadd.f32 %v1994, %v2160
      %v2201 = vadd.f32 %v1995, %v2165
      %v2202 = vadd.f32 %v1996, %v2168
      %s2203 = scalar_lea.vmem %s4, 24
      %v2204 = vld [vmem:[%s2203] sm:$0xf]
      %v2206 = vsel %vm847, %v649, 0
      %v2209 = vsel %vm896, %v2204, 0
      %2211 = vmatprep.subr.bf16.mxu0 0
      %2212 = vmatpush1.bf16.msra.mxu0 0
      %2213 = vmatprep.subr.bf16.mxu0 0
      %2214 = vmatpush1.bf16.msra.mxu0 0
      %2215 = vmatprep.subr.bf16.mxu0 0
      %2216 = vmatpush1.bf16.msra.mxu0 0
      %2217 = vmatprep.subr.bf16.mxu0 0
      %2218 = vmatpush1.bf16.msra.mxu0 0
      %2219 = vmatprep.subr.bf16.mxu0 0
      %2220 = vmatpush1.bf16.msra.mxu0 0
      %2221 = vmatprep.subr.bf16.mxu0 0
      %2222 = vmatpush1.bf16.msra.mxu0 0
      %2223 = vmatprep.subr.bf16.mxu0 0
      %2224 = vmatpush1.bf16.msra.mxu0 0
      %2225 = vmatprep.subr.bf16.mxu0 0
      %2226 = vmatpush1.bf16.msra.mxu0 %v2209
      %2227 = vmatprep.subr.bf16.mxu0 0
      %2228 = vmatpush2.bf16.msra.mxu0 0
      %2229 = vmatprep.subr.bf16.mxu0 0
      %2230 = vmatpush2.bf16.msra.mxu0 0
      %2231 = vmatprep.subr.bf16.mxu0 0
      %2232 = vmatpush2.bf16.msra.mxu0 0
      %2233 = vmatprep.subr.bf16.mxu0 0
      %2234 = vmatpush2.bf16.msra.mxu0 0
      %2235 = vmatprep.subr.bf16.mxu0 0
      %2236 = vmatpush2.bf16.msra.mxu0 0
      %2237 = vmatprep.subr.bf16.mxu0 0
      %2238 = vmatpush2.bf16.msra.mxu0 0
      %2239 = vmatprep.subr.bf16.mxu0 0
      %2240 = vmatpush2.bf16.msra.mxu0 0
      %2241 = vmatprep.subr.bf16.mxu0 0
      %2242 = vmatpush2.bf16.msra.mxu0 0
      %2243 = vmatprep.mubr.bf16.mxu0 0
      %2244 = vmatmul.mubr.bf16.gmra.mxu0 %v1065
      %v2245 = vpop.f32.mrf.mxu0
      %v2246 = vadd.f32 0.0, %v2245
      %v2247 = vpop.f32.mrf.mxu0
      %v2248 = vpop.f32.mrf.mxu0
      %v2249 = vadd.f32 0.0, %v2248
      %v2250 = vpop.f32.mrf.mxu0
      %2251 = vmatprep.mubr.bf16.mxu0 0
      %2252 = vmatmul.mubr.bf16.gmra.mxu0 %v1067
      %v2253 = vpop.f32.mrf.mxu0
      %v2254 = vadd.f32 0.0, %v2253
      %v2255 = vpop.f32.mrf.mxu0
      %v2256 = vpop.f32.mrf.mxu0
      %v2257 = vadd.f32 0.0, %v2256
      %v2258 = vpop.f32.mrf.mxu0
      %2259 = vmatprep.mubr.bf16.mxu0 0
      %2260 = vmatmul.mubr.bf16.gmra.mxu0 %v1069
      %v2261 = vpop.f32.mrf.mxu0
      %v2262 = vadd.f32 0.0, %v2261
      %v2263 = vpop.f32.mrf.mxu0
      %v2264 = vpop.f32.mrf.mxu0
      %v2265 = vadd.f32 0.0, %v2264
      %v2266 = vpop.f32.mrf.mxu0
      %2267 = vmatprep.mubr.bf16.mxu0 0
      %2268 = vmatmul.mubr.bf16.gmra.mxu0 %v1071
      %v2269 = vpop.f32.mrf.mxu0
      %v2270 = vadd.f32 0.0, %v2269
      %v2271 = vpop.f32.mrf.mxu0
      %v2272 = vpop.f32.mrf.mxu0
      %v2273 = vadd.f32 0.0, %v2272
      %v2274 = vpop.f32.mrf.mxu0
      %2275 = vmatprep.mubr.bf16.mxu0 0
      %2276 = vmatmul.mubr.bf16.gmra.mxu0 %v1073
      %v2277 = vpop.f32.mrf.mxu0
      %v2278 = vadd.f32 0.0, %v2277
      %v2279 = vpop.f32.mrf.mxu0
      %v2280 = vpop.f32.mrf.mxu0
      %v2281 = vadd.f32 0.0, %v2280
      %v2282 = vpop.f32.mrf.mxu0
      %2283 = vmatprep.mubr.bf16.mxu0 0
      %2284 = vmatmul.mubr.bf16.gmra.mxu0 %v1075
      %v2285 = vpop.f32.mrf.mxu0
      %v2286 = vadd.f32 0.0, %v2285
      %v2287 = vpop.f32.mrf.mxu0
      %v2288 = vpop.f32.mrf.mxu0
      %v2289 = vadd.f32 0.0, %v2288
      %v2290 = vpop.f32.mrf.mxu0
      %2291 = vmatprep.mubr.bf16.mxu0 0
      %2292 = vmatmul.mubr.bf16.gmra.mxu0 %v1077
      %v2293 = vpop.f32.mrf.mxu0
      %v2294 = vadd.f32 0.0, %v2293
      %v2295 = vpop.f32.mrf.mxu0
      %v2296 = vpop.f32.mrf.mxu0
      %v2297 = vadd.f32 0.0, %v2296
      %v2298 = vpop.f32.mrf.mxu0
      %2299 = vmatprep.mubr.bf16.mxu0 0
      %2300 = vmatmul.mubr.bf16.gmra.mxu0 %v1079
      %v2301 = vpop.f32.mrf.mxu0
      %v2302 = vadd.f32 0.0, %v2301
      %v2303 = vpop.f32.mrf.mxu0
      %v2304 = vpop.f32.mrf.mxu0
      %v2305 = vadd.f32 0.0, %v2304
      %v2306 = vpop.f32.mrf.mxu0
      %2307 = vmatprep.mubr.bf16.mxu0 0
      %2308 = vmatmul.mubr.bf16.gmra.mxu0 %v1081
      %v2309 = vpop.f32.mrf.mxu0
      %v2310 = vadd.f32 0.0, %v2309
      %v2311 = vpop.f32.mrf.mxu0
      %v2312 = vpop.f32.mrf.mxu0
      %v2313 = vadd.f32 0.0, %v2312
      %v2314 = vpop.f32.mrf.mxu0
      %2315 = vmatprep.mubr.bf16.mxu0 0
      %2316 = vmatmul.mubr.bf16.gmra.mxu0 %v1083
      %v2317 = vpop.f32.mrf.mxu0
      %v2318 = vadd.f32 0.0, %v2317
      %v2319 = vpop.f32.mrf.mxu0
      %v2320 = vpop.f32.mrf.mxu0
      %v2321 = vadd.f32 0.0, %v2320
      %v2322 = vpop.f32.mrf.mxu0
      %2323 = vmatprep.mubr.bf16.mxu0 0
      %2324 = vmatmul.mubr.bf16.gmra.mxu0 %v1085
      %v2325 = vpop.f32.mrf.mxu0
      %v2326 = vadd.f32 0.0, %v2325
      %v2327 = vpop.f32.mrf.mxu0
      %v2328 = vpop.f32.mrf.mxu0
      %v2329 = vadd.f32 0.0, %v2328
      %v2330 = vpop.f32.mrf.mxu0
      %2331 = vmatprep.mubr.bf16.mxu0 0
      %2332 = vmatmul.mubr.bf16.gmra.mxu0 %v1087
      %v2333 = vpop.f32.mrf.mxu0
      %v2334 = vadd.f32 0.0, %v2333
      %v2335 = vpop.f32.mrf.mxu0
      %v2336 = vpop.f32.mrf.mxu0
      %v2337 = vadd.f32 0.0, %v2336
      %v2338 = vpop.f32.mrf.mxu0
      %2339 = vmatprep.mubr.bf16.mxu0 0
      %2340 = vmatmul.mubr.bf16.gmra.mxu0 %v1089
      %v2341 = vpop.f32.mrf.mxu0
      %v2342 = vadd.f32 0.0, %v2341
      %v2343 = vpop.f32.mrf.mxu0
      %v2344 = vpop.f32.mrf.mxu0
      %v2345 = vadd.f32 0.0, %v2344
      %v2346 = vpop.f32.mrf.mxu0
      %2347 = vmatprep.mubr.bf16.mxu0 0
      %2348 = vmatmul.mubr.bf16.gmra.mxu0 %v1091
      %v2349 = vpop.f32.mrf.mxu0
      %v2350 = vadd.f32 0.0, %v2349
      %v2351 = vpop.f32.mrf.mxu0
      %v2352 = vpop.f32.mrf.mxu0
      %v2353 = vadd.f32 0.0, %v2352
      %v2354 = vpop.f32.mrf.mxu0
      %2355 = vmatprep.mubr.bf16.mxu0 0
      %2356 = vmatmul.mubr.bf16.gmra.mxu0 %v1587
      %v2357 = vpop.f32.mrf.mxu0
      %v2358 = vadd.f32 0.0, %v2357
      %v2359 = vpop.f32.mrf.mxu0
      %v2360 = vpop.f32.mrf.mxu0
      %v2361 = vadd.f32 0.0, %v2360
      %v2362 = vpop.f32.mrf.mxu0
      %2363 = vmatprep.mubr.bf16.mxu0 0
      %2364 = vmatmul.mubr.bf16.gmra.mxu0 %v2206
      %v2365 = vpop.f32.mrf.mxu0
      %v2366 = vadd.f32 0.0, %v2365
      %v2367 = vpop.f32.mrf.mxu0
      %v2368 = vpop.f32.mrf.mxu0
      %v2369 = vadd.f32 0.0, %v2368
      %v2370 = vpop.f32.mrf.mxu0
      %2371 = vdwg.mxu0
      %v2372 = vadd.f32 %v2171, %v2246
      %v2373 = vadd.f32 %v2172, %v2249
      %v2374 = vadd.f32 %v2173, %v2254
      %v2375 = vadd.f32 %v2174, %v2257
      %v2376 = vadd.f32 %v2175, %v2262
      %v2377 = vadd.f32 %v2176, %v2265
      %v2378 = vadd.f32 %v2177, %v2270
      %v2379 = vadd.f32 %v2178, %v2273
      %v2380 = vadd.f32 %v2179, %v2278
      %v2381 = vadd.f32 %v2180, %v2281
      %v2382 = vadd.f32 %v2181, %v2286
      %v2383 = vadd.f32 %v2182, %v2289
      %v2384 = vadd.f32 %v2183, %v2294
      %v2385 = vadd.f32 %v2184, %v2297
      %v2386 = vadd.f32 %v2185, %v2302
      %v2387 = vadd.f32 %v2186, %v2305
      %v2388 = vadd.f32 %v2187, %v2310
      %v2389 = vadd.f32 %v2188, %v2313
      %v2390 = vadd.f32 %v2189, %v2318
      %v2391 = vadd.f32 %v2190, %v2321
      %v2392 = vadd.f32 %v2191, %v2326
      %v2393 = vadd.f32 %v2192, %v2329
      %v2394 = vadd.f32 %v2193, %v2334
      %v2395 = vadd.f32 %v2194, %v2337
      %v2396 = vadd.f32 %v2195, %v2342
      %v2397 = vadd.f32 %v2196, %v2345
      %v2398 = vadd.f32 %v2197, %v2350
      %v2399 = vadd.f32 %v2198, %v2353
      %v2400 = vadd.f32 %v2199, %v2358
      %v2401 = vadd.f32 %v2200, %v2361
      %v2402 = vadd.f32 %v2201, %v2366
      %v2403 = vadd.f32 %v2202, %v2369
      %v2404 = vshrl.u32 %v649, 16
      %v2406 = vshll.u32 %v649, 16
      %v2408 = vrot.slane %v2406, 1
      %v2409 = vor.u32 %v2404, %v2408
      %v2411 = vshll.u32 %v650, 16
      %v2413 = vrot.slane %v2411, 1
      %v2414 = vsel %vm652, %v2409, %v2413
      %s2415 = scalar_lea.vmem %s4, 28
      %v2416 = vld [vmem:[%s2415] sm:$0xf]
      %v2418 = vsel %vm847, %v2414, 0
      %v2421 = vsel %vm896, %v2416, 0
      %2423 = vmatprep.subr.bf16.mxu0 0
      %2424 = vmatpush1.bf16.msra.mxu0 0
      %2425 = vmatprep.subr.bf16.mxu0 0
      %2426 = vmatpush1.bf16.msra.mxu0 0
      %2427 = vmatprep.subr.bf16.mxu0 0
      %2428 = vmatpush1.bf16.msra.mxu0 0
      %2429 = vmatprep.subr.bf16.mxu0 0
      %2430 = vmatpush1.bf16.msra.mxu0 0
      %2431 = vmatprep.subr.bf16.mxu0 0
      %2432 = vmatpush1.bf16.msra.mxu0 0
      %2433 = vmatprep.subr.bf16.mxu0 0
      %2434 = vmatpush1.bf16.msra.mxu0 0
      %2435 = vmatprep.subr.bf16.mxu0 0
      %2436 = vmatpush1.bf16.msra.mxu0 0
      %2437 = vmatprep.subr.bf16.mxu0 0
      %2438 = vmatpush1.bf16.msra.mxu0 %v2421
      %2439 = vmatprep.subr.bf16.mxu0 0
      %2440 = vmatpush2.bf16.msra.mxu0 0
      %2441 = vmatprep.subr.bf16.mxu0 0
      %2442 = vmatpush2.bf16.msra.mxu0 0
      %2443 = vmatprep.subr.bf16.mxu0 0
      %2444 = vmatpush2.bf16.msra.mxu0 0
      %2445 = vmatprep.subr.bf16.mxu0 0
      %2446 = vmatpush2.bf16.msra.mxu0 0
      %2447 = vmatprep.subr.bf16.mxu0 0
      %2448 = vmatpush2.bf16.msra.mxu0 0
      %2449 = vmatprep.subr.bf16.mxu0 0
      %2450 = vmatpush2.bf16.msra.mxu0 0
      %2451 = vmatprep.subr.bf16.mxu0 0
      %2452 = vmatpush2.bf16.msra.mxu0 0
      %2453 = vmatprep.subr.bf16.mxu0 0
      %2454 = vmatpush2.bf16.msra.mxu0 0
      %2455 = vmatprep.mubr.bf16.mxu0 0
      %2456 = vmatmul.mubr.bf16.gmra.mxu0 %v855
      %v2457 = vpop.f32.mrf.mxu0
      %v2458 = vadd.f32 0.0, %v2457
      %v2459 = vpop.f32.mrf.mxu0
      %v2460 = vpop.f32.mrf.mxu0
      %v2461 = vadd.f32 0.0, %v2460
      %v2462 = vpop.f32.mrf.mxu0
      %2463 = vmatprep.mubr.bf16.mxu0 0
      %2464 = vmatmul.mubr.bf16.gmra.mxu0 %v858
      %v2465 = vpop.f32.mrf.mxu0
      %v2466 = vadd.f32 0.0, %v2465
      %v2467 = vpop.f32.mrf.mxu0
      %v2468 = vpop.f32.mrf.mxu0
      %v2469 = vadd.f32 0.0, %v2468
      %v2470 = vpop.f32.mrf.mxu0
      %2471 = vmatprep.mubr.bf16.mxu0 0
      %2472 = vmatmul.mubr.bf16.gmra.mxu0 %v861
      %v2473 = vpop.f32.mrf.mxu0
      %v2474 = vadd.f32 0.0, %v2473
      %v2475 = vpop.f32.mrf.mxu0
      %v2476 = vpop.f32.mrf.mxu0
      %v2477 = vadd.f32 0.0, %v2476
      %v2478 = vpop.f32.mrf.mxu0
      %2479 = vmatprep.mubr.bf16.mxu0 0
      %2480 = vmatmul.mubr.bf16.gmra.mxu0 %v864
      %v2481 = vpop.f32.mrf.mxu0
      %v2482 = vadd.f32 0.0, %v2481
      %v2483 = vpop.f32.mrf.mxu0
      %v2484 = vpop.f32.mrf.mxu0
      %v2485 = vadd.f32 0.0, %v2484
      %v2486 = vpop.f32.mrf.mxu0
      %2487 = vmatprep.mubr.bf16.mxu0 0
      %2488 = vmatmul.mubr.bf16.gmra.mxu0 %v867
      %v2489 = vpop.f32.mrf.mxu0
      %v2490 = vadd.f32 0.0, %v2489
      %v2491 = vpop.f32.mrf.mxu0
      %v2492 = vpop.f32.mrf.mxu0
      %v2493 = vadd.f32 0.0, %v2492
      %v2494 = vpop.f32.mrf.mxu0
      %2495 = vmatprep.mubr.bf16.mxu0 0
      %2496 = vmatmul.mubr.bf16.gmra.mxu0 %v870
      %v2497 = vpop.f32.mrf.mxu0
      %v2498 = vadd.f32 0.0, %v2497
      %v2499 = vpop.f32.mrf.mxu0
      %v2500 = vpop.f32.mrf.mxu0
      %v2501 = vadd.f32 0.0, %v2500
      %v2502 = vpop.f32.mrf.mxu0
      %2503 = vmatprep.mubr.bf16.mxu0 0
      %2504 = vmatmul.mubr.bf16.gmra.mxu0 %v873
      %v2505 = vpop.f32.mrf.mxu0
      %v2506 = vadd.f32 0.0, %v2505
      %v2507 = vpop.f32.mrf.mxu0
      %v2508 = vpop.f32.mrf.mxu0
      %v2509 = vadd.f32 0.0, %v2508
      %v2510 = vpop.f32.mrf.mxu0
      %2511 = vmatprep.mubr.bf16.mxu0 0
      %2512 = vmatmul.mubr.bf16.gmra.mxu0 %v876
      %v2513 = vpop.f32.mrf.mxu0
      %v2514 = vadd.f32 0.0, %v2513
      %v2515 = vpop.f32.mrf.mxu0
      %v2516 = vpop.f32.mrf.mxu0
      %v2517 = vadd.f32 0.0, %v2516
      %v2518 = vpop.f32.mrf.mxu0
      %2519 = vmatprep.mubr.bf16.mxu0 0
      %2520 = vmatmul.mubr.bf16.gmra.mxu0 %v879
      %v2521 = vpop.f32.mrf.mxu0
      %v2522 = vadd.f32 0.0, %v2521
      %v2523 = vpop.f32.mrf.mxu0
      %v2524 = vpop.f32.mrf.mxu0
      %v2525 = vadd.f32 0.0, %v2524
      %v2526 = vpop.f32.mrf.mxu0
      %2527 = vmatprep.mubr.bf16.mxu0 0
      %2528 = vmatmul.mubr.bf16.gmra.mxu0 %v882
      %v2529 = vpop.f32.mrf.mxu0
      %v2530 = vadd.f32 0.0, %v2529
      %v2531 = vpop.f32.mrf.mxu0
      %v2532 = vpop.f32.mrf.mxu0
      %v2533 = vadd.f32 0.0, %v2532
      %v2534 = vpop.f32.mrf.mxu0
      %2535 = vmatprep.mubr.bf16.mxu0 0
      %2536 = vmatmul.mubr.bf16.gmra.mxu0 %v885
      %v2537 = vpop.f32.mrf.mxu0
      %v2538 = vadd.f32 0.0, %v2537
      %v2539 = vpop.f32.mrf.mxu0
      %v2540 = vpop.f32.mrf.mxu0
      %v2541 = vadd.f32 0.0, %v2540
      %v2542 = vpop.f32.mrf.mxu0
      %2543 = vmatprep.mubr.bf16.mxu0 0
      %2544 = vmatmul.mubr.bf16.gmra.mxu0 %v888
      %v2545 = vpop.f32.mrf.mxu0
      %v2546 = vadd.f32 0.0, %v2545
      %v2547 = vpop.f32.mrf.mxu0
      %v2548 = vpop.f32.mrf.mxu0
      %v2549 = vadd.f32 0.0, %v2548
      %v2550 = vpop.f32.mrf.mxu0
      %2551 = vmatprep.mubr.bf16.mxu0 0
      %2552 = vmatmul.mubr.bf16.gmra.mxu0 %v891
      %v2553 = vpop.f32.mrf.mxu0
      %v2554 = vadd.f32 0.0, %v2553
      %v2555 = vpop.f32.mrf.mxu0
      %v2556 = vpop.f32.mrf.mxu0
      %v2557 = vadd.f32 0.0, %v2556
      %v2558 = vpop.f32.mrf.mxu0
      %2559 = vmatprep.mubr.bf16.mxu0 0
      %2560 = vmatmul.mubr.bf16.gmra.mxu0 %v894
      %v2561 = vpop.f32.mrf.mxu0
      %v2562 = vadd.f32 0.0, %v2561
      %v2563 = vpop.f32.mrf.mxu0
      %v2564 = vpop.f32.mrf.mxu0
      %v2565 = vadd.f32 0.0, %v2564
      %v2566 = vpop.f32.mrf.mxu0
      %2567 = vmatprep.mubr.bf16.mxu0 0
      %2568 = vmatmul.mubr.bf16.gmra.mxu0 %v1799
      %v2569 = vpop.f32.mrf.mxu0
      %v2570 = vadd.f32 0.0, %v2569
      %v2571 = vpop.f32.mrf.mxu0
      %v2572 = vpop.f32.mrf.mxu0
      %v2573 = vadd.f32 0.0, %v2572
      %v2574 = vpop.f32.mrf.mxu0
      %2575 = vmatprep.mubr.bf16.mxu0 0
      %2576 = vmatmul.mubr.bf16.gmra.mxu0 %v2418
      %v2577 = vpop.f32.mrf.mxu0
      %v2578 = vadd.f32 0.0, %v2577
      %v2579 = vpop.f32.mrf.mxu0
      %v2580 = vpop.f32.mrf.mxu0
      %v2581 = vadd.f32 0.0, %v2580
      %v2582 = vpop.f32.mrf.mxu0
      %2583 = vdwg.mxu0
      %v2584 = vadd.f32 %v2372, %v2458
      %v2585 = vadd.f32 %v2373, %v2461
      %v2586 = vadd.f32 %v2374, %v2466
      %v2587 = vadd.f32 %v2375, %v2469
      %v2588 = vadd.f32 %v2376, %v2474
      %v2589 = vadd.f32 %v2377, %v2477
      %v2590 = vadd.f32 %v2378, %v2482
      %v2591 = vadd.f32 %v2379, %v2485
      %v2592 = vadd.f32 %v2380, %v2490
      %v2593 = vadd.f32 %v2381, %v2493
      %v2594 = vadd.f32 %v2382, %v2498
      %v2595 = vadd.f32 %v2383, %v2501
      %v2596 = vadd.f32 %v2384, %v2506
      %v2597 = vadd.f32 %v2385, %v2509
      %v2598 = vadd.f32 %v2386, %v2514
      %v2599 = vadd.f32 %v2387, %v2517
      %v2600 = vadd.f32 %v2388, %v2522
      %v2601 = vadd.f32 %v2389, %v2525
      %v2602 = vadd.f32 %v2390, %v2530
      %v2603 = vadd.f32 %v2391, %v2533
      %v2604 = vadd.f32 %v2392, %v2538
      %v2605 = vadd.f32 %v2393, %v2541
      %v2606 = vadd.f32 %v2394, %v2546
      %v2607 = vadd.f32 %v2395, %v2549
      %v2608 = vadd.f32 %v2396, %v2554
      %v2609 = vadd.f32 %v2397, %v2557
      %v2610 = vadd.f32 %v2398, %v2562
      %v2611 = vadd.f32 %v2399, %v2565
      %v2612 = vadd.f32 %v2400, %v2570
      %v2613 = vadd.f32 %v2401, %v2573
      %v2614 = vadd.f32 %v2402, %v2578
      %v2615 = vadd.f32 %v2403, %v2581
      %v2618 = vrot.slane %v649, 1
      %v2619 = vrot.slane %v650, 1
      %v2620 = vsel %vm1289, %v2618, %v2619
      %s2621 = scalar_lea.vmem %s4, 32
      %v2622 = vld [vmem:[%s2621] sm:$0xf]
      %v2624 = vsel %vm847, %v2620, 0
      %v2627 = vsel %vm896, %v2622, 0
      %2629 = vmatprep.subr.bf16.mxu0 0
      %2630 = vmatpush1.bf16.msra.mxu0 0
      %2631 = vmatprep.subr.bf16.mxu0 0
      %2632 = vmatpush1.bf16.msra.mxu0 0
      %2633 = vmatprep.subr.bf16.mxu0 0
      %2634 = vmatpush1.bf16.msra.mxu0 0
      %2635 = vmatprep.subr.bf16.mxu0 0
      %2636 = vmatpush1.bf16.msra.mxu0 0
      %2637 = vmatprep.subr.bf16.mxu0 0
      %2638 = vmatpush1.bf16.msra.mxu0 0
      %2639 = vmatprep.subr.bf16.mxu0 0
      %2640 = vmatpush1.bf16.msra.mxu0 0
      %2641 = vmatprep.subr.bf16.mxu0 0
      %2642 = vmatpush1.bf16.msra.mxu0 0
      %2643 = vmatprep.subr.bf16.mxu0 0
      %2644 = vmatpush1.bf16.msra.mxu0 %v2627
      %2645 = vmatprep.subr.bf16.mxu0 0
      %2646 = vmatpush2.bf16.msra.mxu0 0
      %2647 = vmatprep.subr.bf16.mxu0 0
      %2648 = vmatpush2.bf16.msra.mxu0 0
      %2649 = vmatprep.subr.bf16.mxu0 0
      %2650 = vmatpush2.bf16.msra.mxu0 0
      %2651 = vmatprep.subr.bf16.mxu0 0
      %2652 = vmatpush2.bf16.msra.mxu0 0
      %2653 = vmatprep.subr.bf16.mxu0 0
      %2654 = vmatpush2.bf16.msra.mxu0 0
      %2655 = vmatprep.subr.bf16.mxu0 0
      %2656 = vmatpush2.bf16.msra.mxu0 0
      %2657 = vmatprep.subr.bf16.mxu0 0
      %2658 = vmatpush2.bf16.msra.mxu0 0
      %2659 = vmatprep.subr.bf16.mxu0 0
      %2660 = vmatpush2.bf16.msra.mxu0 0
      %2661 = vmatprep.mubr.bf16.mxu0 0
      %2662 = vmatmul.mubr.bf16.gmra.mxu0 %v1347
      %v2663 = vpop.f32.mrf.mxu0
      %v2664 = vadd.f32 0.0, %v2663
      %v2665 = vpop.f32.mrf.mxu0
      %v2666 = vpop.f32.mrf.mxu0
      %v2667 = vadd.f32 0.0, %v2666
      %v2668 = vpop.f32.mrf.mxu0
      %2669 = vmatprep.mubr.bf16.mxu0 0
      %2670 = vmatmul.mubr.bf16.gmra.mxu0 %v1350
      %v2671 = vpop.f32.mrf.mxu0
      %v2672 = vadd.f32 0.0, %v2671
      %v2673 = vpop.f32.mrf.mxu0
      %v2674 = vpop.f32.mrf.mxu0
      %v2675 = vadd.f32 0.0, %v2674
      %v2676 = vpop.f32.mrf.mxu0
      %2677 = vmatprep.mubr.bf16.mxu0 0
      %2678 = vmatmul.mubr.bf16.gmra.mxu0 %v1353
      %v2679 = vpop.f32.mrf.mxu0
      %v2680 = vadd.f32 0.0, %v2679
      %v2681 = vpop.f32.mrf.mxu0
      %v2682 = vpop.f32.mrf.mxu0
      %v2683 = vadd.f32 0.0, %v2682
      %v2684 = vpop.f32.mrf.mxu0
      %2685 = vmatprep.mubr.bf16.mxu0 0
      %2686 = vmatmul.mubr.bf16.gmra.mxu0 %v1356
      %v2687 = vpop.f32.mrf.mxu0
      %v2688 = vadd.f32 0.0, %v2687
      %v2689 = vpop.f32.mrf.mxu0
      %v2690 = vpop.f32.mrf.mxu0
      %v2691 = vadd.f32 0.0, %v2690
      %v2692 = vpop.f32.mrf.mxu0
      %2693 = vmatprep.mubr.bf16.mxu0 0
      %2694 = vmatmul.mubr.bf16.gmra.mxu0 %v1359
      %v2695 = vpop.f32.mrf.mxu0
      %v2696 = vadd.f32 0.0, %v2695
      %v2697 = vpop.f32.mrf.mxu0
      %v2698 = vpop.f32.mrf.mxu0
      %v2699 = vadd.f32 0.0, %v2698
      %v2700 = vpop.f32.mrf.mxu0
      %2701 = vmatprep.mubr.bf16.mxu0 0
      %2702 = vmatmul.mubr.bf16.gmra.mxu0 %v1362
      %v2703 = vpop.f32.mrf.mxu0
      %v2704 = vadd.f32 0.0, %v2703
      %v2705 = vpop.f32.mrf.mxu0
      %v2706 = vpop.f32.mrf.mxu0
      %v2707 = vadd.f32 0.0, %v2706
      %v2708 = vpop.f32.mrf.mxu0
      %2709 = vmatprep.mubr.bf16.mxu0 0
      %2710 = vmatmul.mubr.bf16.gmra.mxu0 %v1365
      %v2711 = vpop.f32.mrf.mxu0
      %v2712 = vadd.f32 0.0, %v2711
      %v2713 = vpop.f32.mrf.mxu0
      %v2714 = vpop.f32.mrf.mxu0
      %v2715 = vadd.f32 0.0, %v2714
      %v2716 = vpop.f32.mrf.mxu0
      %2717 = vmatprep.mubr.bf16.mxu0 0
      %2718 = vmatmul.mubr.bf16.gmra.mxu0 %v1368
      %v2719 = vpop.f32.mrf.mxu0
      %v2720 = vadd.f32 0.0, %v2719
      %v2721 = vpop.f32.mrf.mxu0
      %v2722 = vpop.f32.mrf.mxu0
      %v2723 = vadd.f32 0.0, %v2722
      %v2724 = vpop.f32.mrf.mxu0
      %2725 = vmatprep.mubr.bf16.mxu0 0
      %2726 = vmatmul.mubr.bf16.gmra.mxu0 %v1371
      %v2727 = vpop.f32.mrf.mxu0
      %v2728 = vadd.f32 0.0, %v2727
      %v2729 = vpop.f32.mrf.mxu0
      %v2730 = vpop.f32.mrf.mxu0
      %v2731 = vadd.f32 0.0, %v2730
      %v2732 = vpop.f32.mrf.mxu0
      %2733 = vmatprep.mubr.bf16.mxu0 0
      %2734 = vmatmul.mubr.bf16.gmra.mxu0 %v1374
      %v2735 = vpop.f32.mrf.mxu0
      %v2736 = vadd.f32 0.0, %v2735
      %v2737 = vpop.f32.mrf.mxu0
      %v2738 = vpop.f32.mrf.mxu0
      %v2739 = vadd.f32 0.0, %v2738
      %v2740 = vpop.f32.mrf.mxu0
      %2741 = vmatprep.mubr.bf16.mxu0 0
      %2742 = vmatmul.mubr.bf16.gmra.mxu0 %v1377
      %v2743 = vpop.f32.mrf.mxu0
      %v2744 = vadd.f32 0.0, %v2743
      %v2745 = vpop.f32.mrf.mxu0
      %v2746 = vpop.f32.mrf.mxu0
      %v2747 = vadd.f32 0.0, %v2746
      %v2748 = vpop.f32.mrf.mxu0
      %2749 = vmatprep.mubr.bf16.mxu0 0
      %2750 = vmatmul.mubr.bf16.gmra.mxu0 %v1380
      %v2751 = vpop.f32.mrf.mxu0
      %v2752 = vadd.f32 0.0, %v2751
      %v2753 = vpop.f32.mrf.mxu0
      %v2754 = vpop.f32.mrf.mxu0
      %v2755 = vadd.f32 0.0, %v2754
      %v2756 = vpop.f32.mrf.mxu0
      %2757 = vmatprep.mubr.bf16.mxu0 0
      %2758 = vmatmul.mubr.bf16.gmra.mxu0 %v1383
      %v2759 = vpop.f32.mrf.mxu0
      %v2760 = vadd.f32 0.0, %v2759
      %v2761 = vpop.f32.mrf.mxu0
      %v2762 = vpop.f32.mrf.mxu0
      %v2763 = vadd.f32 0.0, %v2762
      %v2764 = vpop.f32.mrf.mxu0
      %2765 = vmatprep.mubr.bf16.mxu0 0
      %2766 = vmatmul.mubr.bf16.gmra.mxu0 %v1386
      %v2767 = vpop.f32.mrf.mxu0
      %v2768 = vadd.f32 0.0, %v2767
      %v2769 = vpop.f32.mrf.mxu0
      %v2770 = vpop.f32.mrf.mxu0
      %v2771 = vadd.f32 0.0, %v2770
      %v2772 = vpop.f32.mrf.mxu0
      %2773 = vmatprep.mubr.bf16.mxu0 0
      %2774 = vmatmul.mubr.bf16.gmra.mxu0 %v2005
      %v2775 = vpop.f32.mrf.mxu0
      %v2776 = vadd.f32 0.0, %v2775
      %v2777 = vpop.f32.mrf.mxu0
      %v2778 = vpop.f32.mrf.mxu0
      %v2779 = vadd.f32 0.0, %v2778
      %v2780 = vpop.f32.mrf.mxu0
      %2781 = vmatprep.mubr.bf16.mxu0 0
      %2782 = vmatmul.mubr.bf16.gmra.mxu0 %v2624
      %v2783 = vpop.f32.mrf.mxu0
      %v2784 = vadd.f32 0.0, %v2783
      %v2785 = vpop.f32.mrf.mxu0
      %v2786 = vpop.f32.mrf.mxu0
      %v2787 = vadd.f32 0.0, %v2786
      %v2788 = vpop.f32.mrf.mxu0
      %2789 = vdwg.mxu0
      %v2790 = vadd.f32 %v2584, %v2664
      %v2791 = vadd.f32 %v2585, %v2667
      %v2792 = vadd.f32 %v2586, %v2672
      %v2793 = vadd.f32 %v2587, %v2675
      %v2794 = vadd.f32 %v2588, %v2680
      %v2795 = vadd.f32 %v2589, %v2683
      %v2796 = vadd.f32 %v2590, %v2688
      %v2797 = vadd.f32 %v2591, %v2691
      %v2798 = vadd.f32 %v2592, %v2696
      %v2799 = vadd.f32 %v2593, %v2699
      %v2800 = vadd.f32 %v2594, %v2704
      %v2801 = vadd.f32 %v2595, %v2707
      %v2802 = vadd.f32 %v2596, %v2712
      %v2803 = vadd.f32 %v2597, %v2715
      %v2804 = vadd.f32 %v2598, %v2720
      %v2805 = vadd.f32 %v2599, %v2723
      %v2806 = vadd.f32 %v2600, %v2728
      %v2807 = vadd.f32 %v2601, %v2731
      %v2808 = vadd.f32 %v2602, %v2736
      %v2809 = vadd.f32 %v2603, %v2739
      %v2810 = vadd.f32 %v2604, %v2744
      %v2811 = vadd.f32 %v2605, %v2747
      %v2812 = vadd.f32 %v2606, %v2752
      %v2813 = vadd.f32 %v2607, %v2755
      %v2814 = vadd.f32 %v2608, %v2760
      %v2815 = vadd.f32 %v2609, %v2763
      %v2816 = vadd.f32 %v2610, %v2768
      %v2817 = vadd.f32 %v2611, %v2771
      %v2818 = vadd.f32 %v2612, %v2776
      %v2819 = vadd.f32 %v2613, %v2779
      %v2820 = vadd.f32 %v2614, %v2784
      %v2821 = vadd.f32 %v2615, %v2787
      %v2822 = vld [vmem:[%s3] sm:$0xf]
      %v2824 = vsel %vm896, %v2822, 0
      %2826 = vmatprep.subr.bf16.mxu0 0
      %2827 = vmatpush1.bf16.msra.mxu0 0
      %2828 = vmatprep.subr.bf16.mxu0 0
      %2829 = vmatpush1.bf16.msra.mxu0 0
      %2830 = vmatprep.subr.bf16.mxu0 0
      %2831 = vmatpush1.bf16.msra.mxu0 0
      %2832 = vmatprep.subr.bf16.mxu0 0
      %2833 = vmatpush1.bf16.msra.mxu0 0
      %2834 = vmatprep.subr.bf16.mxu0 0
      %2835 = vmatpush1.bf16.msra.mxu0 0
      %2836 = vmatprep.subr.bf16.mxu0 0
      %2837 = vmatpush1.bf16.msra.mxu0 0
      %2838 = vmatprep.subr.bf16.mxu0 0
      %2839 = vmatpush1.bf16.msra.mxu0 0
      %2840 = vmatprep.subr.bf16.mxu0 0
      %2841 = vmatpush1.bf16.msra.mxu0 %v2824
      %2842 = vmatprep.subr.bf16.mxu0 0
      %2843 = vmatpush2.bf16.msra.mxu0 0
      %2844 = vmatprep.subr.bf16.mxu0 0
      %2845 = vmatpush2.bf16.msra.mxu0 0
      %2846 = vmatprep.subr.bf16.mxu0 0
      %2847 = vmatpush2.bf16.msra.mxu0 0
      %2848 = vmatprep.subr.bf16.mxu0 0
      %2849 = vmatpush2.bf16.msra.mxu0 0
      %2850 = vmatprep.subr.bf16.mxu0 0
      %2851 = vmatpush2.bf16.msra.mxu0 0
      %2852 = vmatprep.subr.bf16.mxu0 0
      %2853 = vmatpush2.bf16.msra.mxu0 0
      %2854 = vmatprep.subr.bf16.mxu0 0
      %2855 = vmatpush2.bf16.msra.mxu0 0
      %2856 = vmatprep.subr.bf16.mxu0 0
      %2857 = vmatpush2.bf16.msra.mxu0 0
      %2858 = vmatprep.mubr.bf16.mxu0 0
      %2859 = vmatmul.mubr.bf16.gmra.mxu0 %v852
      %v2860 = vpop.f32.mrf.mxu0
      %v2861 = vadd.f32 0.0, %v2860
      %v2862 = vpop.f32.mrf.mxu0
      %v2863 = vpop.f32.mrf.mxu0
      %v2864 = vadd.f32 0.0, %v2863
      %v2865 = vpop.f32.mrf.mxu0
      %2866 = vmatprep.mubr.bf16.mxu0 0
      %2867 = vmatmul.mubr.bf16.gmra.mxu0 %v855
      %v2868 = vpop.f32.mrf.mxu0
      %v2869 = vadd.f32 0.0, %v2868
      %v2870 = vpop.f32.mrf.mxu0
      %v2871 = vpop.f32.mrf.mxu0
      %v2872 = vadd.f32 0.0, %v2871
      %v2873 = vpop.f32.mrf.mxu0
      %2874 = vmatprep.mubr.bf16.mxu0 0
      %2875 = vmatmul.mubr.bf16.gmra.mxu0 %v858
      %v2876 = vpop.f32.mrf.mxu0
      %v2877 = vadd.f32 0.0, %v2876
      %v2878 = vpop.f32.mrf.mxu0
      %v2879 = vpop.f32.mrf.mxu0
      %v2880 = vadd.f32 0.0, %v2879
      %v2881 = vpop.f32.mrf.mxu0
      %2882 = vmatprep.mubr.bf16.mxu0 0
      %2883 = vmatmul.mubr.bf16.gmra.mxu0 %v861
      %v2884 = vpop.f32.mrf.mxu0
      %v2885 = vadd.f32 0.0, %v2884
      %v2886 = vpop.f32.mrf.mxu0
      %v2887 = vpop.f32.mrf.mxu0
      %v2888 = vadd.f32 0.0, %v2887
      %v2889 = vpop.f32.mrf.mxu0
      %2890 = vmatprep.mubr.bf16.mxu0 0
      %2891 = vmatmul.mubr.bf16.gmra.mxu0 %v864
      %v2892 = vpop.f32.mrf.mxu0
      %v2893 = vadd.f32 0.0, %v2892
      %v2894 = vpop.f32.mrf.mxu0
      %v2895 = vpop.f32.mrf.mxu0
      %v2896 = vadd.f32 0.0, %v2895
      %v2897 = vpop.f32.mrf.mxu0
      %2898 = vmatprep.mubr.bf16.mxu0 0
      %2899 = vmatmul.mubr.bf16.gmra.mxu0 %v867
      %v2900 = vpop.f32.mrf.mxu0
      %v2901 = vadd.f32 0.0, %v2900
      %v2902 = vpop.f32.mrf.mxu0
      %v2903 = vpop.f32.mrf.mxu0
      %v2904 = vadd.f32 0.0, %v2903
      %v2905 = vpop.f32.mrf.mxu0
      %2906 = vmatprep.mubr.bf16.mxu0 0
      %2907 = vmatmul.mubr.bf16.gmra.mxu0 %v870
      %v2908 = vpop.f32.mrf.mxu0
      %v2909 = vadd.f32 0.0, %v2908
      %v2910 = vpop.f32.mrf.mxu0
      %v2911 = vpop.f32.mrf.mxu0
      %v2912 = vadd.f32 0.0, %v2911
      %v2913 = vpop.f32.mrf.mxu0
      %2914 = vmatprep.mubr.bf16.mxu0 0
      %2915 = vmatmul.mubr.bf16.gmra.mxu0 %v873
      %v2916 = vpop.f32.mrf.mxu0
      %v2917 = vadd.f32 0.0, %v2916
      %v2918 = vpop.f32.mrf.mxu0
      %v2919 = vpop.f32.mrf.mxu0
      %v2920 = vadd.f32 0.0, %v2919
      %v2921 = vpop.f32.mrf.mxu0
      %2922 = vmatprep.mubr.bf16.mxu0 0
      %2923 = vmatmul.mubr.bf16.gmra.mxu0 %v876
      %v2924 = vpop.f32.mrf.mxu0
      %v2925 = vadd.f32 0.0, %v2924
      %v2926 = vpop.f32.mrf.mxu0
      %v2927 = vpop.f32.mrf.mxu0
      %v2928 = vadd.f32 0.0, %v2927
      %v2929 = vpop.f32.mrf.mxu0
      %2930 = vmatprep.mubr.bf16.mxu0 0
      %2931 = vmatmul.mubr.bf16.gmra.mxu0 %v879
      %v2932 = vpop.f32.mrf.mxu0
      %v2933 = vadd.f32 0.0, %v2932
      %v2934 = vpop.f32.mrf.mxu0
      %v2935 = vpop.f32.mrf.mxu0
      %v2936 = vadd.f32 0.0, %v2935
      %v2937 = vpop.f32.mrf.mxu0
      %2938 = vmatprep.mubr.bf16.mxu0 0
      %2939 = vmatmul.mubr.bf16.gmra.mxu0 %v882
      %v2940 = vpop.f32.mrf.mxu0
      %v2941 = vadd.f32 0.0, %v2940
      %v2942 = vpop.f32.mrf.mxu0
      %v2943 = vpop.f32.mrf.mxu0
      %v2944 = vadd.f32 0.0, %v2943
      %v2945 = vpop.f32.mrf.mxu0
      %2946 = vmatprep.mubr.bf16.mxu0 0
      %2947 = vmatmul.mubr.bf16.gmra.mxu0 %v885
      %v2948 = vpop.f32.mrf.mxu0
      %v2949 = vadd.f32 0.0, %v2948
      %v2950 = vpop.f32.mrf.mxu0
      %v2951 = vpop.f32.mrf.mxu0
      %v2952 = vadd.f32 0.0, %v2951
      %v2953 = vpop.f32.mrf.mxu0
      %2954 = vmatprep.mubr.bf16.mxu0 0
      %2955 = vmatmul.mubr.bf16.gmra.mxu0 %v888
      %v2956 = vpop.f32.mrf.mxu0
      %v2957 = vadd.f32 0.0, %v2956
      %v2958 = vpop.f32.mrf.mxu0
      %v2959 = vpop.f32.mrf.mxu0
      %v2960 = vadd.f32 0.0, %v2959
      %v2961 = vpop.f32.mrf.mxu0
      %2962 = vmatprep.mubr.bf16.mxu0 0
      %2963 = vmatmul.mubr.bf16.gmra.mxu0 %v891
      %v2964 = vpop.f32.mrf.mxu0
      %v2965 = vadd.f32 0.0, %v2964
      %v2966 = vpop.f32.mrf.mxu0
      %v2967 = vpop.f32.mrf.mxu0
      %v2968 = vadd.f32 0.0, %v2967
      %v2969 = vpop.f32.mrf.mxu0
      %2970 = vmatprep.mubr.bf16.mxu0 0
      %2971 = vmatmul.mubr.bf16.gmra.mxu0 %v894
      %v2972 = vpop.f32.mrf.mxu0
      %v2973 = vadd.f32 0.0, %v2972
      %v2974 = vpop.f32.mrf.mxu0
      %v2975 = vpop.f32.mrf.mxu0
      %v2976 = vadd.f32 0.0, %v2975
      %v2977 = vpop.f32.mrf.mxu0
      %2978 = vmatprep.mubr.bf16.mxu0 0
      %2979 = vmatmul.mubr.bf16.gmra.mxu0 %v1799
      %v2980 = vpop.f32.mrf.mxu0
      %v2981 = vadd.f32 0.0, %v2980
      %v2982 = vpop.f32.mrf.mxu0
      %v2983 = vpop.f32.mrf.mxu0
      %v2984 = vadd.f32 0.0, %v2983
      %v2985 = vpop.f32.mrf.mxu0
      %2986 = vdwg.mxu0
      %3019 = vrot.lane.b32.xlu0 %v2790, 16
      %v3020 = vpop.permute.xlu0 %3019
      %3021 = vrot.lane.b32.xlu0 %v2791, 16
      %v3022 = vpop.permute.xlu0 %3021
      %3023 = vrot.lane.b32.xlu0 %v2792, 16
      %v3024 = vpop.permute.xlu0 %3023
      %3025 = vrot.lane.b32.xlu0 %v2793, 16
      %v3026 = vpop.permute.xlu0 %3025
      %3027 = vrot.lane.b32.xlu0 %v2794, 16
      %v3028 = vpop.permute.xlu0 %3027
      %3029 = vrot.lane.b32.xlu0 %v2795, 16
      %v3030 = vpop.permute.xlu0 %3029
      %3031 = vrot.lane.b32.xlu0 %v2796, 16
      %v3032 = vpop.permute.xlu0 %3031
      %3033 = vrot.lane.b32.xlu0 %v2797, 16
      %v3034 = vpop.permute.xlu0 %3033
      %3035 = vrot.lane.b32.xlu0 %v2798, 16
      %v3036 = vpop.permute.xlu0 %3035
      %3037 = vrot.lane.b32.xlu0 %v2799, 16
      %v3038 = vpop.permute.xlu0 %3037
      %3039 = vrot.lane.b32.xlu0 %v2800, 16
      %v3040 = vpop.permute.xlu0 %3039
      %3041 = vrot.lane.b32.xlu0 %v2801, 16
      %v3042 = vpop.permute.xlu0 %3041
      %3043 = vrot.lane.b32.xlu0 %v2802, 16
      %v3044 = vpop.permute.xlu0 %3043
      %3045 = vrot.lane.b32.xlu0 %v2803, 16
      %v3046 = vpop.permute.xlu0 %3045
      %3047 = vrot.lane.b32.xlu0 %v2804, 16
      %v3048 = vpop.permute.xlu0 %3047
      %3049 = vrot.lane.b32.xlu0 %v2805, 16
      %v3050 = vpop.permute.xlu0 %3049
      %3051 = vrot.lane.b32.xlu0 %v2806, 16
      %v3052 = vpop.permute.xlu0 %3051
      %3053 = vrot.lane.b32.xlu0 %v2807, 16
      %v3054 = vpop.permute.xlu0 %3053
      %3055 = vrot.lane.b32.xlu0 %v2808, 16
      %v3056 = vpop.permute.xlu0 %3055
      %3057 = vrot.lane.b32.xlu0 %v2809, 16
      %v3058 = vpop.permute.xlu0 %3057
      %3059 = vrot.lane.b32.xlu0 %v2810, 16
      %v3060 = vpop.permute.xlu0 %3059
      %3061 = vrot.lane.b32.xlu0 %v2811, 16
      %v3062 = vpop.permute.xlu0 %3061
      %3063 = vrot.lane.b32.xlu0 %v2812, 16
      %v3064 = vpop.permute.xlu0 %3063
      %3065 = vrot.lane.b32.xlu0 %v2813, 16
      %v3066 = vpop.permute.xlu0 %3065
      %3067 = vrot.lane.b32.xlu0 %v2814, 16
      %v3068 = vpop.permute.xlu0 %3067
      %3069 = vrot.lane.b32.xlu0 %v2815, 16
      %v3070 = vpop.permute.xlu0 %3069
      %3071 = vrot.lane.b32.xlu0 %v2816, 16
      %v3072 = vpop.permute.xlu0 %3071
      %3073 = vrot.lane.b32.xlu0 %v2817, 16
      %v3074 = vpop.permute.xlu0 %3073
      %3075 = vrot.lane.b32.xlu0 %v2818, 16
      %v3076 = vpop.permute.xlu0 %3075
      %3077 = vrot.lane.b32.xlu0 %v2819, 16
      %v3078 = vpop.permute.xlu0 %3077
      %3079 = vrot.lane.b32.xlu0 %v2820, 16
      %v3080 = vpop.permute.xlu0 %3079
      %3081 = vrot.lane.b32.xlu0 %v2821, 16
      %v3082 = vpop.permute.xlu0 %3081
      %vm3115 = vcmask 130048
      %v3116 = vsel %vm3115, %v2861, %v3020
      %v3117 = vsel %vm3115, %v2864, %v3022
      %v3118 = vsel %vm3115, %v2869, %v3024
      %v3119 = vsel %vm3115, %v2872, %v3026
      %v3120 = vsel %vm3115, %v2877, %v3028
      %v3121 = vsel %vm3115, %v2880, %v3030
      %v3122 = vsel %vm3115, %v2885, %v3032
      %v3123 = vsel %vm3115, %v2888, %v3034
      %v3124 = vsel %vm3115, %v2893, %v3036
      %v3125 = vsel %vm3115, %v2896, %v3038
      %v3126 = vsel %vm3115, %v2901, %v3040
      %v3127 = vsel %vm3115, %v2904, %v3042
      %v3128 = vsel %vm3115, %v2909, %v3044
      %v3129 = vsel %vm3115, %v2912, %v3046
      %v3130 = vsel %vm3115, %v2917, %v3048
      %v3131 = vsel %vm3115, %v2920, %v3050
      %v3132 = vsel %vm3115, %v2925, %v3052
      %v3133 = vsel %vm3115, %v2928, %v3054
      %v3134 = vsel %vm3115, %v2933, %v3056
      %v3135 = vsel %vm3115, %v2936, %v3058
      %v3136 = vsel %vm3115, %v2941, %v3060
      %v3137 = vsel %vm3115, %v2944, %v3062
      %v3138 = vsel %vm3115, %v2949, %v3064
      %v3139 = vsel %vm3115, %v2952, %v3066
      %v3140 = vsel %vm3115, %v2957, %v3068
      %v3141 = vsel %vm3115, %v2960, %v3070
      %v3142 = vsel %vm3115, %v2965, %v3072
      %v3143 = vsel %vm3115, %v2968, %v3074
      %v3144 = vsel %vm3115, %v2973, %v3076
      %v3145 = vsel %vm3115, %v2976, %v3078
      %v3146 = vsel %vm3115, %v2981, %v3080
      %v3147 = vsel %vm3115, %v2984, %v3082
      %vm3148 = vcmask 261120
      %3149 = vst.msk [vmem:[%s289] sm:$0xff] %vm3148, %v3116
      %3150 = vst.msk [vmem:[%s289 + $0x8] sm:$0xff] %vm3148, %v3117
      %3151 = vst.msk [vmem:[%s289 + $0x10] sm:$0xff] %vm3148, %v3118
      %3152 = vst.msk [vmem:[%s289 + $0x18] sm:$0xff] %vm3148, %v3119
      %3153 = vst.msk [vmem:[%s289 + $0x20] sm:$0xff] %vm3148, %v3120
      %3154 = vst.msk [vmem:[%s289 + $0x28] sm:$0xff] %vm3148, %v3121
      %3155 = vst.msk [vmem:[%s289 + $0x30] sm:$0xff] %vm3148, %v3122
      %3156 = vst.msk [vmem:[%s289 + $0x38] sm:$0xff] %vm3148, %v3123
      %3157 = vst.msk [vmem:[%s289 + $0x40] sm:$0xff] %vm3148, %v3124
      %3158 = vst.msk [vmem:[%s289 + $0x48] sm:$0xff] %vm3148, %v3125
      %3159 = vst.msk [vmem:[%s289 + $0x50] sm:$0xff] %vm3148, %v3126
      %3160 = vst.msk [vmem:[%s289 + $0x58] sm:$0xff] %vm3148, %v3127
      %3161 = vst.msk [vmem:[%s289 + $0x60] sm:$0xff] %vm3148, %v3128
      %3162 = vst.msk [vmem:[%s289 + $0x68] sm:$0xff] %vm3148, %v3129
      %3163 = vst.msk [vmem:[%s289 + $0x70] sm:$0xff] %vm3148, %v3130
      %3164 = vst.msk [vmem:[%s289 + $0x78] sm:$0xff] %vm3148, %v3131
      %3165 = vst.msk [vmem:[%s289 + $0x80] sm:$0xff] %vm3148, %v3132
      %3166 = vst.msk [vmem:[%s289 + $0x88] sm:$0xff] %vm3148, %v3133
      %3167 = vst.msk [vmem:[%s289 + $0x90] sm:$0xff] %vm3148, %v3134
      %3168 = vst.msk [vmem:[%s289 + $0x98] sm:$0xff] %vm3148, %v3135
      %3169 = vst.msk [vmem:[%s289 + $0xa0] sm:$0xff] %vm3148, %v3136
      %3170 = vst.msk [vmem:[%s289 + $0xa8] sm:$0xff] %vm3148, %v3137
      %3171 = vst.msk [vmem:[%s289 + $0xb0] sm:$0xff] %vm3148, %v3138
      %3172 = vst.msk [vmem:[%s289 + $0xb8] sm:$0xff] %vm3148, %v3139
      %3173 = vst.msk [vmem:[%s289 + $0xc0] sm:$0xff] %vm3148, %v3140
      %3174 = vst.msk [vmem:[%s289 + $0xc8] sm:$0xff] %vm3148, %v3141
      %3175 = vst.msk [vmem:[%s289 + $0xd0] sm:$0xff] %vm3148, %v3142
      %3176 = vst.msk [vmem:[%s289 + $0xd8] sm:$0xff] %vm3148, %v3143
      %3177 = vst.msk [vmem:[%s289 + $0xe0] sm:$0xff] %vm3148, %v3144
      %3178 = vst.msk [vmem:[%s289 + $0xe8] sm:$0xff] %vm3148, %v3145
      %3179 = vst.msk [vmem:[%s289 + $0xf0] sm:$0xff] %vm3148, %v3146
      %3180 = vst.msk [vmem:[%s289 + $0xf8] sm:$0xff] %vm3148, %v3147
      %v3181 = vsel %vm3148, %v3116, 0.0
      %v3182 = vsel %vm3148, %v3117, 0.0
      %v3183 = vadd.f32 %v3181, %v3182
      %v3184 = vsel %vm3148, %v3118, 0.0
      %v3185 = vadd.f32 %v3183, %v3184
      %v3186 = vsel %vm3148, %v3119, 0.0
      %v3187 = vadd.f32 %v3185, %v3186
      %v3188 = vsel %vm3148, %v3120, 0.0
      %v3189 = vadd.f32 %v3187, %v3188
      %v3190 = vsel %vm3148, %v3121, 0.0
      %v3191 = vadd.f32 %v3189, %v3190
      %v3192 = vsel %vm3148, %v3122, 0.0
      %v3193 = vadd.f32 %v3191, %v3192
      %v3194 = vsel %vm3148, %v3123, 0.0
      %v3195 = vadd.f32 %v3193, %v3194
      %v3196 = vsel %vm3148, %v3124, 0.0
      %v3197 = vadd.f32 %v3195, %v3196
      %v3198 = vsel %vm3148, %v3125, 0.0
      %v3199 = vadd.f32 %v3197, %v3198
      %v3200 = vsel %vm3148, %v3126, 0.0
      %v3201 = vadd.f32 %v3199, %v3200
      %v3202 = vsel %vm3148, %v3127, 0.0
      %v3203 = vadd.f32 %v3201, %v3202
      %v3204 = vsel %vm3148, %v3128, 0.0
      %v3205 = vadd.f32 %v3203, %v3204
      %v3206 = vsel %vm3148, %v3129, 0.0
      %v3207 = vadd.f32 %v3205, %v3206
      %v3208 = vsel %vm3148, %v3130, 0.0
      %v3209 = vadd.f32 %v3207, %v3208
      %v3210 = vsel %vm3148, %v3131, 0.0
      %v3211 = vadd.f32 %v3209, %v3210
      %v3212 = vsel %vm3148, %v3132, 0.0
      %v3213 = vadd.f32 %v3211, %v3212
      %v3214 = vsel %vm3148, %v3133, 0.0
      %v3215 = vadd.f32 %v3213, %v3214
      %v3216 = vsel %vm3148, %v3134, 0.0
      %v3217 = vadd.f32 %v3215, %v3216
      %v3218 = vsel %vm3148, %v3135, 0.0
      %v3219 = vadd.f32 %v3217, %v3218
      %v3220 = vsel %vm3148, %v3136, 0.0
      %v3221 = vadd.f32 %v3219, %v3220
      %v3222 = vsel %vm3148, %v3137, 0.0
      %v3223 = vadd.f32 %v3221, %v3222
      %v3224 = vsel %vm3148, %v3138, 0.0
      %v3225 = vadd.f32 %v3223, %v3224
      %v3226 = vsel %vm3148, %v3139, 0.0
      %v3227 = vadd.f32 %v3225, %v3226
      %v3228 = vsel %vm3148, %v3140, 0.0
      %v3229 = vadd.f32 %v3227, %v3228
      %v3230 = vsel %vm3148, %v3141, 0.0
      %v3231 = vadd.f32 %v3229, %v3230
      %v3232 = vsel %vm3148, %v3142, 0.0
      %v3233 = vadd.f32 %v3231, %v3232
      %v3234 = vsel %vm3148, %v3143, 0.0
      %v3235 = vadd.f32 %v3233, %v3234
      %v3236 = vsel %vm3148, %v3144, 0.0
      %v3237 = vadd.f32 %v3235, %v3236
      %v3238 = vsel %vm3148, %v3145, 0.0
      %v3239 = vadd.f32 %v3237, %v3238
      %v3240 = vsel %vm3148, %v3146, 0.0
      %v3241 = vadd.f32 %v3239, %v3240
      %v3242 = vsel %vm3148, %v3147, 0.0
      %v3243 = vadd.f32 %v3241, %v3242
      %v3244 = vrot.slane %v3243, 4
      %v3245 = vadd.f32 %v3243, %v3244
      %v3246 = vrot.slane %v3245, 2
      %v3247 = vadd.f32 %v3245, %v3246
      %v3248 = vrot.slane %v3247, 1
      %v3249 = vadd.f32 %v3247, %v3248
      %vm3250 = vcmask 253952
      %3251 = vst.msk [vmem:[%s292] sm:$0x1] %vm3250, %v3249
      %v3252 = vmul.f32 %v3116, %v3116
      %v3253 = vmul.f32 %v3117, %v3117
      %v3254 = vmul.f32 %v3118, %v3118
      %v3255 = vmul.f32 %v3119, %v3119
      %v3256 = vmul.f32 %v3120, %v3120
      %v3257 = vmul.f32 %v3121, %v3121
      %v3258 = vmul.f32 %v3122, %v3122
      %v3259 = vmul.f32 %v3123, %v3123
      %v3260 = vmul.f32 %v3124, %v3124
      %v3261 = vmul.f32 %v3125, %v3125
      %v3262 = vmul.f32 %v3126, %v3126
      %v3263 = vmul.f32 %v3127, %v3127
      %v3264 = vmul.f32 %v3128, %v3128
      %v3265 = vmul.f32 %v3129, %v3129
      %v3266 = vmul.f32 %v3130, %v3130
      %v3267 = vmul.f32 %v3131, %v3131
      %v3268 = vmul.f32 %v3132, %v3132
      %v3269 = vmul.f32 %v3133, %v3133
      %v3270 = vmul.f32 %v3134, %v3134
      %v3271 = vmul.f32 %v3135, %v3135
      %v3272 = vmul.f32 %v3136, %v3136
      %v3273 = vmul.f32 %v3137, %v3137
      %v3274 = vmul.f32 %v3138, %v3138
      %v3275 = vmul.f32 %v3139, %v3139
      %v3276 = vmul.f32 %v3140, %v3140
      %v3277 = vmul.f32 %v3141, %v3141
      %v3278 = vmul.f32 %v3142, %v3142
      %v3279 = vmul.f32 %v3143, %v3143
      %v3280 = vmul.f32 %v3144, %v3144
      %v3281 = vmul.f32 %v3145, %v3145
      %v3282 = vmul.f32 %v3146, %v3146
      %v3283 = vmul.f32 %v3147, %v3147
      %v3284 = vsel %vm3148, %v3252, 0.0
      %v3285 = vsel %vm3148, %v3253, 0.0
      %v3286 = vadd.f32 %v3284, %v3285
      %v3287 = vsel %vm3148, %v3254, 0.0
      %v3288 = vadd.f32 %v3286, %v3287
      %v3289 = vsel %vm3148, %v3255, 0.0
      %v3290 = vadd.f32 %v3288, %v3289
      %v3291 = vsel %vm3148, %v3256, 0.0
      %v3292 = vadd.f32 %v3290, %v3291
      %v3293 = vsel %vm3148, %v3257, 0.0
      %v3294 = vadd.f32 %v3292, %v3293
      %v3295 = vsel %vm3148, %v3258, 0.0
      %v3296 = vadd.f32 %v3294, %v3295
      %v3297 = vsel %vm3148, %v3259, 0.0
      %v3298 = vadd.f32 %v3296, %v3297
      %v3299 = vsel %vm3148, %v3260, 0.0
      %v3300 = vadd.f32 %v3298, %v3299
      %v3301 = vsel %vm3148, %v3261, 0.0
      %v3302 = vadd.f32 %v3300, %v3301
      %v3303 = vsel %vm3148, %v3262, 0.0
      %v3304 = vadd.f32 %v3302, %v3303
      %v3305 = vsel %vm3148, %v3263, 0.0
      %v3306 = vadd.f32 %v3304, %v3305
      %v3307 = vsel %vm3148, %v3264, 0.0
      %v3308 = vadd.f32 %v3306, %v3307
      %v3309 = vsel %vm3148, %v3265, 0.0
      %v3310 = vadd.f32 %v3308, %v3309
      %v3311 = vsel %vm3148, %v3266, 0.0
      %v3312 = vadd.f32 %v3310, %v3311
      %v3313 = vsel %vm3148, %v3267, 0.0
      %v3314 = vadd.f32 %v3312, %v3313
      %v3315 = vsel %vm3148, %v3268, 0.0
      %v3316 = vadd.f32 %v3314, %v3315
      %v3317 = vsel %vm3148, %v3269, 0.0
      %v3318 = vadd.f32 %v3316, %v3317
      %v3319 = vsel %vm3148, %v3270, 0.0
      %v3320 = vadd.f32 %v3318, %v3319
      %v3321 = vsel %vm3148, %v3271, 0.0
      %v3322 = vadd.f32 %v3320, %v3321
      %v3323 = vsel %vm3148, %v3272, 0.0
      %v3324 = vadd.f32 %v3322, %v3323
      %v3325 = vsel %vm3148, %v3273, 0.0
      %v3326 = vadd.f32 %v3324, %v3325
      %v3327 = vsel %vm3148, %v3274, 0.0
      %v3328 = vadd.f32 %v3326, %v3327
      %v3329 = vsel %vm3148, %v3275, 0.0
      %v3330 = vadd.f32 %v3328, %v3329
      %v3331 = vsel %vm3148, %v3276, 0.0
      %v3332 = vadd.f32 %v3330, %v3331
      %v3333 = vsel %vm3148, %v3277, 0.0
      %v3334 = vadd.f32 %v3332, %v3333
      %v3335 = vsel %vm3148, %v3278, 0.0
      %v3336 = vadd.f32 %v3334, %v3335
      %v3337 = vsel %vm3148, %v3279, 0.0
      %v3338 = vadd.f32 %v3336, %v3337
      %v3339 = vsel %vm3148, %v3280, 0.0
      %v3340 = vadd.f32 %v3338, %v3339
      %v3341 = vsel %vm3148, %v3281, 0.0
      %v3342 = vadd.f32 %v3340, %v3341
      %v3343 = vsel %vm3148, %v3282, 0.0
      %v3344 = vadd.f32 %v3342, %v3343
      %v3345 = vsel %vm3148, %v3283, 0.0
      %v3346 = vadd.f32 %v3344, %v3345
      %v3347 = vrot.slane %v3346, 4
      %v3348 = vadd.f32 %v3346, %v3347
      %v3349 = vrot.slane %v3348, 2
      %v3350 = vadd.f32 %v3348, %v3349
      %v3351 = vrot.slane %v3350, 1
      %v3352 = vadd.f32 %v3350, %v3351
      %3353 = vst.msk [vmem:[%s295] sm:$0x1] %vm3250, %v3352
      %p3354 = scmp.lt.s32.totalorder %s19, 1
      %s3355 = scalar_select %p3354, %s19, 1
      %s3356 = smul.addr %s3355, 32
      %s3357 = smul.addr %s3356, 8
      %s3358 = scalar_lea.vmem %s5, %s3357
      %p3359 = scmp.lt.s32.totalorder %s19, 1
      %s3360 = scalar_select %p3359, %s19, 1
      %s3361 = scalar_lea.vmem %s6, %s3360
      %p3362 = scmp.lt.s32.totalorder %s19, 1
      %s3363 = scalar_select %p3362, %s19, 1
      %s3364 = scalar_lea.vmem %s7, %s3363
      // Predicated region
      $region41: #{fire_module_forward.4} parent=39 // pred_check
        %p3365 = pneg %p147
      $region42: #{fire_module_forward.4} parent=39 // pred_check_branch
        %3367 = sbr.rel (%p3365) target = $region44
      $region43: #{fire_module_forward.4} parent=39 // pred_region
        _
      $region44: #{fire_module_forward.4} parent=39 // pred_fallthru
        _
      // Predicated region
      $region45: #{fire_module_forward.4} parent=39 // pred_check
        %p3368 = pneg %p173
      $region46: #{fire_module_forward.4} parent=39 // pred_check_branch
        %3370 = sbr.rel (%p3368) target = $region48
      $region47: #{fire_module_forward.4} parent=39 // pred_region
        _
      $region48: #{fire_module_forward.4} parent=39 // pred_fallthru
        _
      // Predicated region
      $region49: #{fire_module_forward.4} parent=39 // pred_check
        %p3371 = pneg %p199
      $region50: #{fire_module_forward.4} parent=39 // pred_check_branch
        %3373 = sbr.rel (%p3371) target = $region52
      $region51: #{fire_module_forward.4} parent=39 // pred_region
        _
      $region52: #{fire_module_forward.4} parent=39 // pred_fallthru
        _
    $region40: #{fire_module_forward.4} parent=5 // pred_fallthru
      _
    %p3374 = scmp.le.s32.totalorder 2, %s14
    // Predicated region
    $region53: #{fire_module_forward.4} parent=5 // pred_check
      %p3375 = pneg %p3374
    $region54: #{fire_module_forward.4} parent=5 // pred_check_branch
      %3377 = sbr.rel (%p3375) target = $region56
    $region55: #{fire_module_forward.4} parent=5 // pred_region
      %s3378 = ssub.s32 %s14, 2
      // Predicated region
      $region57: #{fire_module_forward.4} parent=55 // pred_check
        %p3379 = pneg %p153
      $region58: #{fire_module_forward.4} parent=55 // pred_check_branch
        %3381 = sbr.rel (%p3379) target = $region60
      $region59: #{fire_module_forward.4} parent=55 // pred_region
        %p3382 = scmp.lt.s32.totalorder %s20, 1
        %s3383 = scalar_select %p3382, %s20, 1
        %s3384 = smul.addr %s3383, 32
        %s3385 = smul.addr %s3384, 8
        %s3386 = scalar_lea.vmem %s5, %s3385
      $region60: #{fire_module_forward.4} parent=55 // pred_fallthru
        _
      // Predicated region
      $region61: #{fire_module_forward.4} parent=55 // pred_check
        %p3387 = pneg %p179
      $region62: #{fire_module_forward.4} parent=55 // pred_check_branch
        %3389 = sbr.rel (%p3387) target = $region64
      $region63: #{fire_module_forward.4} parent=55 // pred_region
        %p3390 = scmp.lt.s32.totalorder %s20, 1
        %s3391 = scalar_select %p3390, %s20, 1
        %s3392 = scalar_lea.vmem %s6, %s3391
      $region64: #{fire_module_forward.4} parent=55 // pred_fallthru
        _
      // Predicated region
      $region65: #{fire_module_forward.4} parent=55 // pred_check
        %p3393 = pneg %p205
      $region66: #{fire_module_forward.4} parent=55 // pred_check_branch
        %3395 = sbr.rel (%p3393) target = $region68
      $region67: #{fire_module_forward.4} parent=55 // pred_region
        %p3396 = scmp.lt.s32.totalorder %s20, 1
        %s3397 = scalar_select %p3396, %s20, 1
        %s3398 = scalar_lea.vmem %s7, %s3397
      $region68: #{fire_module_forward.4} parent=55 // pred_fallthru
        _
    $region56: #{fire_module_forward.4} parent=5 // pred_fallthru
      _
  $region6: #{fire_module_forward.4} parent=0 // loop_footer
    %s18 = sadd.s32 1, %s14
  $region7: #{fire_module_forward.4} parent=0 // loop_footer_branch
    %13 = sbr.rel target = $region3
  $region8: #{fire_module_forward.4} parent=0 // loop_exit
    _

</llo_original>
